<compile_context>
chip_gen: v6e
topology: v6e:2x2x1
jax: 0.10.0
libtpu: 0.0.40
codegen_flags: <defaults>
</compile_context>

<pallas_src>
import math
from functools import partial

import jax
import jax.numpy as jnp
from jax import lax
from jax.experimental import pallas as pl
from jax.experimental.pallas import tpu as pltpu

_BN_EPS = 1e-5
_LN_EPS = 1e-5
_CONV_K = 5


def _full_spec(shape):
    """Whole-array block (constant index map)."""
    nd = len(shape)
    return pl.BlockSpec(shape, lambda *_: (0,) * nd)


def _layer_spec(shape):
    """Block one leading 'layer' axis; rest of the array stays whole."""
    rest = tuple(shape[1:])
    nd = len(rest)
    return pl.BlockSpec((1,) + rest, lambda l: (l,) + (0,) * nd)


# ----------------------------------------------------------------------------
# Squasher stage: Conv1d + LeakyReLU + BatchNorm1d (+ MaxPool1d) in ONE kernel
# (whole batch, one matmul per pooling phase, one BN reduction)
# ----------------------------------------------------------------------------

def _squasher_kernel(xp_ref, w_ref, b_ref, g_ref, bb_ref, o_ref, *,
                     taps_even, taps_odd, l_out, c_in, eps):
    """xp_ref : (B, L_pad/2, 2*c_in) fp32  pair-packed, replicate-padded input
       w_ref  : (K*c_in, C_out)      bf16  conv weight, tap-major along rows
       b/g/bb : (1, C_out)           fp32  conv bias / BN gamma / BN beta
       o_ref  : (B, l_out, C_out)    fp32
    taps_* are static (row_offset, col_offset) pairs; taps_odd is None for the
    stride-2 stage and present for the stride-1 + MaxPool(2) stages."""
    batch = o_ref.shape[0]
    c_out = o_ref.shape[2]
    bias = b_ref[...]

    def conv_phase(taps):
        # Build the im2col LHS in VMEM from static rectangular slices of the
        # pair-packed input, then ONE (B*l_out, K*c_in) @ (K*c_in, C_out) GEMM.
        cols = [xp_ref[:, r0:r0 + l_out, c0:c0 + c_in].reshape(batch * l_out, c_in)
                for (r0, c0) in taps]
        lhs = jnp.concatenate(cols, axis=1).astype(jnp.bfloat16)
        y = jnp.dot(lhs, w_ref[...], preferred_element_type=jnp.float32) + bias
        return jnp.where(y >= 0.0, y, 0.2 * y)            # LeakyReLU(0.2)

    y_even = conv_phase(taps_even)                          # (B*l_out, C_out)
    y_odd = conv_phase(taps_odd) if taps_odd is not None else None

    # BatchNorm1d (training mode): per-channel stats over batch x all pre-pool
    # positions (Conv -> LeakyReLU -> BN -> MaxPool order), single reduction.
    y_all = y_even if y_odd is None else jnp.concatenate([y_even, y_odd], axis=0)
    mean = jnp.mean(y_all, axis=0, keepdims=True)
    var = jnp.mean((y_all - mean) ** 2, axis=0, keepdims=True)   # biased var
    scale = g_ref[...] * lax.rsqrt(var + eps)
    shift = bb_ref[...] - mean * scale

    out = y_even * scale + shift
    if y_odd is not None:
        out = jnp.maximum(out, y_odd * scale + shift)        # MaxPool1d(2)
    o_ref[...] = out.reshape(batch, l_out, c_out)


def squasher_layer(x, p, *, pooled):
    """x: (B, L, C_in) channel-last.  pooled=False -> stride-2 conv stage,
    pooled=True -> stride-1 conv + MaxPool1d(2).  Output: (B, L//2, C_out)."""
    B, L, c_in = x.shape
    assert L % 2 == 0
    c_out = p["w"].shape[1]
    l_out = L // 2

    # Replicate pad (pad=2) then pack adjacent time-step pairs along channels so
    # every conv tap / pooling phase becomes a static rectangular in-kernel slice.
    xp = jnp.pad(x, ((0, 0), (2, 2), (0, 0)), mode="edge")
    xp2 = xp.reshape(B, (L + 4) // 2, 2 * c_in)

    # even phase: output j reads padded row 2j+k -> packed (j + k//2, k%2)
    taps_even = tuple((k // 2, (k % 2) * c_in) for k in range(_CONV_K))
    # odd phase (pooled stages only): output 2m+1 reads padded row 2m+1+k
    taps_odd = (tuple(((k + 1) // 2, ((k + 1) % 2) * c_in) for k in range(_CONV_K))
                if pooled else None)

    return pl.pallas_call(
        partial(_squasher_kernel, taps_even=taps_even, taps_odd=taps_odd,
                l_out=l_out, c_in=c_in, eps=_BN_EPS),
        out_shape=jax.ShapeDtypeStruct((B, l_out, c_out), jnp.float32),
        grid=(1,),   # BN statistics couple the whole batch -> single grid step
        in_specs=[
            _full_spec(xp2.shape),
            _full_spec(p["w"].shape),
            _full_spec((1, c_out)),
            _full_spec((1, c_out)),
            _full_spec((1, c_out)),
        ],
        out_specs=_full_spec((B, l_out, c_out)),
        compiler_params=pltpu.CompilerParams(dimension_semantics=("arbitrary",)),
    )(xp2, p["w"], p["b"], p["bn_g"], p["bn_b"])


# ----------------------------------------------------------------------------
# ONE pallas_call for embedding + ALL encoder layers (grid over layers,
# activation persists in a VMEM scratch between layers)
# ----------------------------------------------------------------------------

def _encoder_stack_kernel(x_ref, lin_w_ref, lin_b_ref, pos_ref,
                          wqkv_ref, bqkv_ref, wo_ref, bo_ref,
                          ln1g_ref, ln1b_ref, w1_ref, b1_ref, w2_ref, b2_ref,
                          ln2g_ref, ln2b_ref, o_ref, act_ref, *,
                          batch, seq, num_heads, eps):
    lyr = pl.program_id(0)

    # --- step 0: LinearEmbedding + PositionEmbedding into the resident scratch
    @pl.when(lyr == 0)
    def _embed():
        y = jnp.dot(x_ref[...].astype(jnp.bfloat16), lin_w_ref[...],
                    preferred_element_type=jnp.float32)
        act_ref[...] = y + lin_b_ref[...] + pos_ref[...]

    x = act_ref[...]                                   # (B*T, D) fp32
    BT, D = x.shape
    H = num_heads
    Dh = D // H

    # --- fused QKV projection for the whole flattened batch (one GEMM) -------
    xb = x.astype(jnp.bfloat16)
    qkv = jnp.dot(xb, wqkv_ref[0], preferred_element_type=jnp.float32)
    qkv = qkv + bqkv_ref[0]                            # (B*T, 3D), q pre-scaled

    # --- head-batched attention (g = B*H leading batch dim) ------------------
    q_s, k_s, v_s = [], [], []
    for b in range(batch):
        rows = qkv[b * seq:(b + 1) * seq]              # (T, 3D) sublane-aligned
        for h in range(H):
            q_s.append(rows[:, h * Dh:(h + 1) * Dh])
            k_s.append(rows[:, D + h * Dh:D + (h + 1) * Dh])
            v_s.append(rows[:, 2 * D + h * Dh:2 * D + (h + 1) * Dh])
    q3 = jnp.stack(q_s, axis=0).astype(jnp.bfloat16)   # (B*H, T, Dh)
    k3 = jnp.stack(k_s, axis=0).astype(jnp.bfloat16)
    v3 = jnp.stack(v_s, axis=0).astype(jnp.bfloat16)

    s = jnp.einsum('gqd,gkd->gqk', q3, k3, preferred_element_type=jnp.float32)
    s = s - jnp.max(s, axis=-1, keepdims=True)
    p = jnp.exp(s)
    p = p * pl.reciprocal(jnp.sum(p, axis=-1, keepdims=True), approx=True)
    ctx = jnp.einsum('gqk,gkd->gqd', p.astype(jnp.bfloat16), v3,
                     preferred_element_type=jnp.float32)   # (B*H, T, Dh)

    # re-assemble (B*T, D) context, then ONE output-projection GEMM
    ctx_rows = [jnp.concatenate([ctx[b * H + h] for h in range(H)], axis=1)
                for b in range(batch)]                      # each (T, D)
    ctx_flat = jnp.concatenate(ctx_rows, axis=0).astype(jnp.bfloat16)
    attn = jnp.dot(ctx_flat, wo_ref[0],
                   preferred_element_type=jnp.float32) + bo_ref[0]

    # --- residual + LayerNorm 1 (fp32 epilogue) -------------------------------
    h1 = x + attn
    mu = jnp.mean(h1, axis=-1, keepdims=True)
    var = jnp.mean((h1 - mu) ** 2, axis=-1, keepdims=True)
    h1 = (h1 - mu) * lax.rsqrt(var + eps) * ln1g_ref[0] + ln1b_ref[0]

    # --- FFN ------------------------------------------------------------------
    f = jnp.dot(h1.astype(jnp.bfloat16), w1_ref[0],
                preferred_element_type=jnp.float32) + b1_ref[0]
    f = jax.nn.gelu(f, approximate=True)   # TODO(synk): torch default is exact erf
    f = jnp.dot(f.astype(jnp.bfloat16), w2_ref[0],
                preferred_element_type=jnp.float32) + b2_ref[0]

    # --- residual + LayerNorm 2 ------------------------------------------------
    h2 = h1 + f
    mu2 = jnp.mean(h2, axis=-1, keepdims=True)
    var2 = jnp.mean((h2 - mu2) ** 2, axis=-1, keepdims=True)
    y = (h2 - mu2) * lax.rsqrt(var2 + eps) * ln2g_ref[0] + ln2b_ref[0]

    act_ref[...] = y
    o_ref[...] = y


def encoder_stack(x_flat, p, batch, seq, num_heads):
    """x_flat: (B*T, D) fp32.  Runs embedding + all layers in one pallas_call."""
    BT, D = x_flat.shape
    L = p["wqkv"].shape[0]
    I = p["w1"].shape[2]
    pos_bt = jnp.tile(p["pos"], (batch, 1))                 # (B*T, D)

    return pl.pallas_call(
        partial(_encoder_stack_kernel, batch=batch, seq=seq,
                num_heads=num_heads, eps=_LN_EPS),
        out_shape=jax.ShapeDtypeStruct((BT, D), jnp.float32),
        grid=(L,),
        in_specs=[
            _full_spec((BT, D)),            # x (squasher output, flattened)
            _full_spec((D, D)),             # lin_w
            _full_spec((1, D)),             # lin_b
            _full_spec((BT, D)),            # pos (tiled over batch)
            _layer_spec((L, D, 3 * D)),     # wqkv
            _layer_spec((L, 1, 3 * D)),     # bqkv
            _layer_spec((L, D, D)),         # wo
            _layer_spec((L, 1, D)),         # bo
            _layer_spec((L, 1, D)),         # ln1_g
            _layer_spec((L, 1, D)),         # ln1_b
            _layer_spec((L, D, I)),         # w1
            _layer_spec((L, 1, I)),         # b1
            _layer_spec((L, I, D)),         # w2
            _layer_spec((L, 1, D)),         # b2
            _layer_spec((L, 1, D)),         # ln2_g
            _layer_spec((L, 1, D)),         # ln2_b
        ],
        out_specs=_full_spec((BT, D)),
        scratch_shapes=[pltpu.VMEM((BT, D), jnp.float32)],
        compiler_params=pltpu.CompilerParams(dimension_semantics=("arbitrary",)),
    )(x_flat, p["lin_w"], p["lin_b"], pos_bt,
      p["wqkv"], p["bqkv"], p["wo"], p["bo"],
      p["ln1_g"], p["ln1_b"], p["w1"], p["b1"], p["w2"], p["b2"],
      p["ln2_g"], p["ln2_b"])


# ----------------------------------------------------------------------------
# Forward pass (matches the torch module's forward semantics, channel-last)
# ----------------------------------------------------------------------------

def transformer_encoder_forward(params, inputs, cfg):
    """inputs: (B, T, in_dim) fp32 — the same tensor the torch forward receives."""
    tc = cfg["transformer_config"]
    x = inputs.astype(jnp.float32)
    # squasher: torch permutes to NCW for Conv1d and back; here channel-last.
    for li, sp in enumerate(params["squasher"]):
        x = squasher_layer(x, sp, pooled=(li > 0))
    B, Tq, D = x.shape
    # embedding + pos-emb + all encoder layers fused into ONE kernel
    y = encoder_stack(x.reshape(B * Tq, D), params["enc"], B, Tq,
                      tc["num_attention_heads"])
    return y.reshape(B, Tq, D)


# ----------------------------------------------------------------------------
# Deterministic parameter construction + one-time layout/dtype preparation
# ----------------------------------------------------------------------------

def init_params(key, cfg):
    """Raw params in torch layouts: Conv1d (C_out, C_in, K), Linear (out, in)."""
    tc = cfg["transformer_config"]
    size, dim = tc["in_dim"], tc["hidden_size"]
    qf, nlayers = tc["quant_factor"], tc["num_hidden_layers"]
    inter, Lq = tc["intermediate_size"], tc["quant_sequence_length"]

    keys = iter(jax.random.split(key, 256))

    def nrm(shape, s=0.05):
        return s * jax.random.normal(next(keys), shape, jnp.float32)

    raw = {"squasher": [], "transformer": []}
    in_c = size
    for _ in range(qf):
        raw["squasher"].append(dict(
            w=nrm((dim, in_c, _CONV_K), 0.1),
            b=nrm((dim,), 0.1),
            bn_g=1.0 + nrm((dim,), 0.1),
            bn_b=nrm((dim,), 0.1)))
        in_c = dim

    raw["lin_w"] = nrm((dim, dim))
    raw["lin_b"] = nrm((dim,))
    raw["pos_emb"] = nrm((Lq, dim))

    for _ in range(nlayers):
        raw["transformer"].append(dict(
            wq=nrm((dim, dim)), bq=nrm((dim,)),
            wk=nrm((dim, dim)), bk=nrm((dim,)),
            wv=nrm((dim, dim)), bv=nrm((dim,)),
            wo=nrm((dim, dim)), bo=nrm((dim,)),
            ln1_g=1.0 + nrm((dim,)), ln1_b=nrm((dim,)),
            w1=nrm((inter, dim)), b1=nrm((inter,)),
            w2=nrm((dim, inter)), b2=nrm((dim,)),
            ln2_g=1.0 + nrm((dim,)), ln2_b=nrm((dim,))))
    return raw


def prepare_params(raw, cfg):
    """One-time, hoisted out of the forward pass:
       * Conv weights -> tap-major (K*C_in, C_out) bf16 (im2col contraction layout)
       * Q/K/V weights fused to (D, 3D), 1/sqrt(Dh) folded into wq/bq
       * per-layer tensors stacked with a leading layer axis for the fused stack
       * (1, N) biases, bf16 matmul weights, fp32 epilogue params."""
    tc = cfg["transformer_config"]
    num_heads = tc["num_attention_heads"]

    def row(v):
        return v.reshape(1, -1).astype(jnp.float32)

    prm = {"squasher": []}
    for p in raw["squasher"]:
        w = jnp.transpose(p["w"], (2, 1, 0))                 # (K, C_in, C_out)
        K, Ci, Co = w.shape
        prm["squasher"].append(dict(
            w=w.reshape(K * Ci, Co).astype(jnp.bfloat16),
            b=row(p["b"]), bn_g=row(p["bn_g"]), bn_b=row(p["bn_b"])))

    D = raw["lin_w"].shape[0]
    scale = 1.0 / math.sqrt(D // num_heads)

    wqkv, bqkv, wo, bo = [], [], [], []
    ln1g, ln1b, w1, b1, w2, b2, ln2g, ln2b = ([] for _ in range(8))
    for p in raw["transformer"]:
        wq_s = (p["wq"] * scale).T                           # fold attention scale
        bq_s = p["bq"] * scale
        wqkv.append(jnp.concatenate([wq_s, p["wk"].T, p["wv"].T], axis=1))  # (D,3D)
        bqkv.append(jnp.concatenate([bq_s, p["bk"], p["bv"]]).reshape(1, -1))
        wo.append(p["wo"].T); bo.append(p["bo"].reshape(1, -1))
        ln1g.append(p["ln1_g"].reshape(1, -1)); ln1b.append(p["ln1_b"].reshape(1, -1))
        w1.append(p["w1"].T); b1.append(p["b1"].reshape(1, -1))
        w2.append(p["w2"].T); b2.append(p["b2"].reshape(1, -1))
        ln2g.append(p["ln2_g"].reshape(1, -1)); ln2b.append(p["ln2_b"].reshape(1, -1))

    def stk(lst, dt=jnp.float32):
        return jnp.stack(lst).astype(dt)

    prm["enc"] = dict(
        lin_w=raw["lin_w"].T.astype(jnp.bfloat16),
        lin_b=row(raw["lin_b"]),
        pos=raw["pos_emb"].astype(jnp.float32),
        wqkv=stk(wqkv, jnp.bfloat16), bqkv=stk(bqkv),
        wo=stk(wo, jnp.bfloat16), bo=stk(bo),
        ln1_g=stk(ln1g), ln1_b=stk(ln1b),
        w1=stk(w1, jnp.bfloat16), b1=stk(b1),
        w2=stk(w2, jnp.bfloat16), b2=stk(b2),
        ln2_g=stk(ln2g), ln2_b=stk(ln2b))
    return prm


# ----------------------------------------------------------------------------
if __name__ == "__main__":
    CONFIG = {
        "transformer_config": {
            "in_dim": 16,
            "hidden_size": 32,
            "quant_factor": 2,            # T: 32 -> 16 (stride-2 conv) -> 8 (maxpool)
            "quant_sequence_length": 8,
            "num_hidden_layers": 2,
            "num_attention_heads": 4,
            "intermediate_size": 64,
        }
    }

    key = jax.random.PRNGKey(0)
    k_param, k_in = jax.random.split(key)
    params = prepare_params(init_params(k_param, CONFIG), CONFIG)

    B, T = 2, 32
    inputs = jax.random.normal(
        k_in, (B, T, CONFIG["transformer_config"]["in_dim"]), dtype=jnp.float32)

    fwd = jax.jit(lambda p, x: transformer_encoder_forward(p, x, CONFIG))
    out = jax.block_until_ready(fwd(params, inputs))

    expected = (B, CONFIG["transformer_config"]["quant_sequence_length"],
                CONFIG["transformer_config"]["hidden_size"])
    assert out.shape == expected, (out.shape, expected)
    assert bool(jnp.all(jnp.isfinite(out)))
    print("KERNEL_OK")
</pallas_src>

<mosaic_0001>
module attributes {stable_mosaic.version = 11 : i64} {
  func.func @_squasher_kernel(%arg0: i32, %arg1: memref<2x18x32xf32, #tpu.memory_space<vmem>>, %arg2: memref<80x32xbf16, #tpu.memory_space<vmem>>, %arg3: memref<1x32xf32, #tpu.memory_space<vmem>>, %arg4: memref<1x32xf32, #tpu.memory_space<vmem>>, %arg5: memref<1x32xf32, #tpu.memory_space<vmem>>, %arg6: memref<2x16x32xf32, #tpu.memory_space<vmem>>) attributes {dimension_semantics = [#tpu.dimension_semantics<arbitrary>], iteration_bounds = array<i64: 1>, scalar_prefetch = 0 : i64, scratch_operands = 0 : i64, tpu.core_type = #tpu.core_type<tc>, window_params = [{pipeline_mode = #tpu.pipeline_mode<synchronous>, transform_indices = @transform_0, window_bounds = array<i64: 2, 18, 32>}, {pipeline_mode = #tpu.pipeline_mode<synchronous>, transform_indices = @transform_1, window_bounds = array<i64: 80, 32>}, {pipeline_mode = #tpu.pipeline_mode<synchronous>, transform_indices = @transform_2, window_bounds = array<i64: 1, 32>}, {pipeline_mode = #tpu.pipeline_mode<synchronous>, transform_indices = @transform_3, window_bounds = array<i64: 1, 32>}, {pipeline_mode = #tpu.pipeline_mode<synchronous>, transform_indices = @transform_4, window_bounds = array<i64: 1, 32>}, {pipeline_mode = #tpu.pipeline_mode<synchronous>, transform_indices = @transform_5, window_bounds = array<i64: 2, 16, 32>}]} {
    %c0 = arith.constant 0 : index
    %c0_0 = arith.constant 0 : index
    %0 = vector.load %arg3[%c0, %c0_0] : memref<1x32xf32, #tpu.memory_space<vmem>>, vector<1x32xf32>
    %c0_1 = arith.constant 0 : index
    %c0_2 = arith.constant 0 : index
    %c0_3 = arith.constant 0 : index
    %1 = vector.load %arg1[%c0_1, %c0_2, %c0_3] : memref<2x18x32xf32, #tpu.memory_space<vmem>>, vector<2x16x16xf32>
    %2 = vector.shape_cast %1 : vector<2x16x16xf32> to vector<32x16xf32>
    %c0_4 = arith.constant 0 : index
    %c0_5 = arith.constant 0 : index
    %c16 = arith.constant 16 : index
    %3 = vector.load %arg1[%c0_4, %c0_5, %c16] : memref<2x18x32xf32, #tpu.memory_space<vmem>>, vector<2x16x16xf32>
    %4 = vector.shape_cast %3 : vector<2x16x16xf32> to vector<32x16xf32>
    %c0_6 = arith.constant 0 : index
    %c1 = arith.constant 1 : index
    %c0_7 = arith.constant 0 : index
    %5 = vector.load %arg1[%c0_6, %c1, %c0_7] : memref<2x18x32xf32, #tpu.memory_space<vmem>>, vector<2x16x16xf32>
    %6 = vector.shape_cast %5 : vector<2x16x16xf32> to vector<32x16xf32>
    %c0_8 = arith.constant 0 : index
    %c1_9 = arith.constant 1 : index
    %c16_10 = arith.constant 16 : index
    %7 = vector.load %arg1[%c0_8, %c1_9, %c16_10] : memref<2x18x32xf32, #tpu.memory_space<vmem>>, vector<2x16x16xf32>
    %8 = vector.shape_cast %7 : vector<2x16x16xf32> to vector<32x16xf32>
    %c0_11 = arith.constant 0 : index
    %c2 = arith.constant 2 : index
    %c0_12 = arith.constant 0 : index
    %9 = vector.load %arg1[%c0_11, %c2, %c0_12] : memref<2x18x32xf32, #tpu.memory_space<vmem>>, vector<2x16x16xf32>
    %10 = vector.shape_cast %9 : vector<2x16x16xf32> to vector<32x16xf32>
    %11 = tpu.concatenate %2, %4, %6, %8, %10 in 1 : vector<32x16xf32>, vector<32x16xf32>, vector<32x16xf32>, vector<32x16xf32>, vector<32x16xf32> -> vector<32x80xf32>
    %12 = arith.truncf %11 : vector<32x80xf32> to vector<32x80xbf16>
    %c0_13 = arith.constant 0 : index
    %c0_14 = arith.constant 0 : index
    %13 = vector.load %arg2[%c0_13, %c0_14] : memref<80x32xbf16, #tpu.memory_space<vmem>>, vector<80x32xbf16>
    %cst = arith.constant dense<0.000000e+00> : vector<32x32xf32>
    %14 = tpu.matmul %12, %13, %cst {dimension_numbers = #tpu.dot_dimension_numbers<[1], [0], [0], [1], [0, 0, 1, 1], [], []>} : vector<32x80xbf16>, vector<80x32xbf16>, vector<32x32xf32> -> vector<32x32xf32>
    %15 = vector.broadcast %0 : vector<1x32xf32> to vector<32x32xf32>
    %16 = arith.addf %14, %15 : vector<32x32xf32>
    %cst_15 = arith.constant 0.000000e+00 : f32
    %17 = vector.broadcast %cst_15 : f32 to vector<32x32xf32>
    %18 = arith.cmpf oge, %16, %17 : vector<32x32xf32>
    %cst_16 = arith.constant 2.000000e-01 : f32
    %19 = vector.broadcast %cst_16 : f32 to vector<32x32xf32>
    %20 = arith.mulf %19, %16 : vector<32x32xf32>
    %21 = arith.select %18, %16, %20 : vector<32x32xi1>, vector<32x32xf32>
    %cst_17 = arith.constant dense<0.000000e+00> : vector<32xf32>
    %22 = vector.multi_reduction <add>, %21, %cst_17 [0] : vector<32x32xf32> to vector<32xf32>
    %23 = vector.shape_cast %22 : vector<32xf32> to vector<1x32xf32>
    %cst_18 = arith.constant 3.200000e+01 : f32
    %24 = vector.broadcast %cst_18 : f32 to vector<1x32xf32>
    %25 = arith.divf %23, %24 : vector<1x32xf32>
    %26 = vector.broadcast %25 : vector<1x32xf32> to vector<32x32xf32>
    %27 = arith.subf %21, %26 : vector<32x32xf32>
    %28 = arith.mulf %27, %27 : vector<32x32xf32>
    %cst_19 = arith.constant dense<0.000000e+00> : vector<32xf32>
    %29 = vector.multi_reduction <add>, %28, %cst_19 [0] : vector<32x32xf32> to vector<32xf32>
    %30 = vector.shape_cast %29 : vector<32xf32> to vector<1x32xf32>
    %cst_20 = arith.constant 3.200000e+01 : f32
    %31 = vector.broadcast %cst_20 : f32 to vector<1x32xf32>
    %32 = arith.divf %30, %31 : vector<1x32xf32>
    %c0_21 = arith.constant 0 : index
    %c0_22 = arith.constant 0 : index
    %33 = vector.load %arg4[%c0_21, %c0_22] : memref<1x32xf32, #tpu.memory_space<vmem>>, vector<1x32xf32>
    %cst_23 = arith.constant 9.99999974E-6 : f32
    %34 = vector.broadcast %cst_23 : f32 to vector<1x32xf32>
    %35 = arith.addf %32, %34 : vector<1x32xf32>
    %36 = math.rsqrt %35 : vector<1x32xf32>
    %37 = arith.mulf %33, %36 : vector<1x32xf32>
    %c0_24 = arith.constant 0 : index
    %c0_25 = arith.constant 0 : index
    %38 = vector.load %arg5[%c0_24, %c0_25] : memref<1x32xf32, #tpu.memory_space<vmem>>, vector<1x32xf32>
    %39 = arith.mulf %25, %37 : vector<1x32xf32>
    %40 = arith.subf %38, %39 : vector<1x32xf32>
    %41 = vector.broadcast %37 : vector<1x32xf32> to vector<32x32xf32>
    %42 = arith.mulf %21, %41 : vector<32x32xf32>
    %43 = vector.broadcast %40 : vector<1x32xf32> to vector<32x32xf32>
    %44 = arith.addf %42, %43 : vector<32x32xf32>
    %45 = vector.shape_cast %44 : vector<32x32xf32> to vector<2x16x32xf32>
    %c0_26 = arith.constant 0 : index
    %c0_27 = arith.constant 0 : index
    %c0_28 = arith.constant 0 : index
    %46 = vector.load %arg6[%c0_26, %c0_27, %c0_28] : memref<2x16x32xf32, #tpu.memory_space<vmem>>, vector<2x16x32xf32>
    tpu.vector_store %arg6[%c0_26, %c0_27, %c0_28], %45 {strides = array<i32>} : memref<2x16x32xf32, #tpu.memory_space<vmem>>, vector<2x16x32xf32>,
    return
  }
  func.func @transform_0(%arg0: i32) -> (i32, i32, i32) {
    %c0_i32 = arith.constant 0 : i32
    %c0_i32_0 = arith.constant 0 : i32
    %c0_i32_1 = arith.constant 0 : i32
    %c0_i32_2 = arith.constant 0 : i32
    return %c0_i32, %c0_i32_0, %c0_i32_1 : i32, i32, i32
  }
  func.func @transform_1(%arg0: i32) -> (i32, i32) {
    %c0_i32 = arith.constant 0 : i32
    %c0_i32_0 = arith.constant 0 : i32
    %c0_i32_1 = arith.constant 0 : i32
    return %c0_i32, %c0_i32_0 : i32, i32
  }
  func.func @transform_2(%arg0: i32) -> (i32, i32) {
    %c0_i32 = arith.constant 0 : i32
    %c0_i32_0 = arith.constant 0 : i32
    %c0_i32_1 = arith.constant 0 : i32
    return %c0_i32, %c0_i32_0 : i32, i32
  }
  func.func @transform_3(%arg0: i32) -> (i32, i32) {
    %c0_i32 = arith.constant 0 : i32
    %c0_i32_0 = arith.constant 0 : i32
    %c0_i32_1 = arith.constant 0 : i32
    return %c0_i32, %c0_i32_0 : i32, i32
  }
  func.func @transform_4(%arg0: i32) -> (i32, i32) {
    %c0_i32 = arith.constant 0 : i32
    %c0_i32_0 = arith.constant 0 : i32
    %c0_i32_1 = arith.constant 0 : i32
    return %c0_i32, %c0_i32_0 : i32, i32
  }
  func.func @transform_5(%arg0: i32) -> (i32, i32, i32) {
    %c0_i32 = arith.constant 0 : i32
    %c0_i32_0 = arith.constant 0 : i32
    %c0_i32_1 = arith.constant 0 : i32
    %c0_i32_2 = arith.constant 0 : i32
    return %c0_i32, %c0_i32_0, %c0_i32_1 : i32, i32, i32
  }
}

module attributes {stable_mosaic.version = 11 : i64} {
  func.func @_squasher_kernel(%arg0: i32, %arg1: memref<2x10x64xf32, #tpu.memory_space<vmem>>, %arg2: memref<160x32xbf16, #tpu.memory_space<vmem>>, %arg3: memref<1x32xf32, #tpu.memory_space<vmem>>, %arg4: memref<1x32xf32, #tpu.memory_space<vmem>>, %arg5: memref<1x32xf32, #tpu.memory_space<vmem>>, %arg6: memref<2x8x32xf32, #tpu.memory_space<vmem>>) attributes {dimension_semantics = [#tpu.dimension_semantics<arbitrary>], iteration_bounds = array<i64: 1>, scalar_prefetch = 0 : i64, scratch_operands = 0 : i64, tpu.core_type = #tpu.core_type<tc>, window_params = [{pipeline_mode = #tpu.pipeline_mode<synchronous>, transform_indices = @transform_0, window_bounds = array<i64: 2, 10, 64>}, {pipeline_mode = #tpu.pipeline_mode<synchronous>, transform_indices = @transform_1, window_bounds = array<i64: 160, 32>}, {pipeline_mode = #tpu.pipeline_mode<synchronous>, transform_indices = @transform_2, window_bounds = array<i64: 1, 32>}, {pipeline_mode = #tpu.pipeline_mode<synchronous>, transform_indices = @transform_3, window_bounds = array<i64: 1, 32>}, {pipeline_mode = #tpu.pipeline_mode<synchronous>, transform_indices = @transform_4, window_bounds = array<i64: 1, 32>}, {pipeline_mode = #tpu.pipeline_mode<synchronous>, transform_indices = @transform_5, window_bounds = array<i64: 2, 8, 32>}]} {
    %c0 = arith.constant 0 : index
    %c0_0 = arith.constant 0 : index
    %0 = vector.load %arg3[%c0, %c0_0] : memref<1x32xf32, #tpu.memory_space<vmem>>, vector<1x32xf32>
    %c0_1 = arith.constant 0 : index
    %c0_2 = arith.constant 0 : index
    %c0_3 = arith.constant 0 : index
    %1 = vector.load %arg1[%c0_1, %c0_2, %c0_3] : memref<2x10x64xf32, #tpu.memory_space<vmem>>, vector<2x8x32xf32>
    %2 = vector.shape_cast %1 : vector<2x8x32xf32> to vector<16x32xf32>
    %c0_4 = arith.constant 0 : index
    %c0_5 = arith.constant 0 : index
    %c32 = arith.constant 32 : index
    %3 = vector.load %arg1[%c0_4, %c0_5, %c32] : memref<2x10x64xf32, #tpu.memory_space<vmem>>, vector<2x8x32xf32>
    %4 = vector.shape_cast %3 : vector<2x8x32xf32> to vector<16x32xf32>
    %c0_6 = arith.constant 0 : index
    %c1 = arith.constant 1 : index
    %c0_7 = arith.constant 0 : index
    %5 = vector.load %arg1[%c0_6, %c1, %c0_7] : memref<2x10x64xf32, #tpu.memory_space<vmem>>, vector<2x8x32xf32>
    %6 = vector.shape_cast %5 : vector<2x8x32xf32> to vector<16x32xf32>
    %c0_8 = arith.constant 0 : index
    %c1_9 = arith.constant 1 : index
    %c32_10 = arith.constant 32 : index
    %7 = vector.load %arg1[%c0_8, %c1_9, %c32_10] : memref<2x10x64xf32, #tpu.memory_space<vmem>>, vector<2x8x32xf32>
    %8 = vector.shape_cast %7 : vector<2x8x32xf32> to vector<16x32xf32>
    %c0_11 = arith.constant 0 : index
    %c2 = arith.constant 2 : index
    %c0_12 = arith.constant 0 : index
    %9 = vector.load %arg1[%c0_11, %c2, %c0_12] : memref<2x10x64xf32, #tpu.memory_space<vmem>>, vector<2x8x32xf32>
    %10 = vector.shape_cast %9 : vector<2x8x32xf32> to vector<16x32xf32>
    %11 = tpu.concatenate %2, %4, %6, %8, %10 in 1 : vector<16x32xf32>, vector<16x32xf32>, vector<16x32xf32>, vector<16x32xf32>, vector<16x32xf32> -> vector<16x160xf32>
    %12 = arith.truncf %11 : vector<16x160xf32> to vector<16x160xbf16>
    %c0_13 = arith.constant 0 : index
    %c0_14 = arith.constant 0 : index
    %13 = vector.load %arg2[%c0_13, %c0_14] : memref<160x32xbf16, #tpu.memory_space<vmem>>, vector<160x32xbf16>
    %cst = arith.constant dense<0.000000e+00> : vector<16x32xf32>
    %14 = tpu.matmul %12, %13, %cst {dimension_numbers = #tpu.dot_dimension_numbers<[1], [0], [0], [1], [0, 0, 1, 1], [], []>} : vector<16x160xbf16>, vector<160x32xbf16>, vector<16x32xf32> -> vector<16x32xf32>
    %15 = vector.broadcast %0 : vector<1x32xf32> to vector<16x32xf32>
    %16 = arith.addf %14, %15 : vector<16x32xf32>
    %cst_15 = arith.constant 0.000000e+00 : f32
    %17 = vector.broadcast %cst_15 : f32 to vector<16x32xf32>
    %18 = arith.cmpf oge, %16, %17 : vector<16x32xf32>
    %cst_16 = arith.constant 2.000000e-01 : f32
    %19 = vector.broadcast %cst_16 : f32 to vector<16x32xf32>
    %20 = arith.mulf %19, %16 : vector<16x32xf32>
    %21 = arith.select %18, %16, %20 : vector<16x32xi1>, vector<16x32xf32>
    %c0_17 = arith.constant 0 : index
    %c0_18 = arith.constant 0 : index
    %c32_19 = arith.constant 32 : index
    %22 = vector.load %arg1[%c0_17, %c0_18, %c32_19] : memref<2x10x64xf32, #tpu.memory_space<vmem>>, vector<2x8x32xf32>
    %23 = vector.shape_cast %22 : vector<2x8x32xf32> to vector<16x32xf32>
    %c0_20 = arith.constant 0 : index
    %c1_21 = arith.constant 1 : index
    %c0_22 = arith.constant 0 : index
    %24 = vector.load %arg1[%c0_20, %c1_21, %c0_22] : memref<2x10x64xf32, #tpu.memory_space<vmem>>, vector<2x8x32xf32>
    %25 = vector.shape_cast %24 : vector<2x8x32xf32> to vector<16x32xf32>
    %c0_23 = arith.constant 0 : index
    %c1_24 = arith.constant 1 : index
    %c32_25 = arith.constant 32 : index
    %26 = vector.load %arg1[%c0_23, %c1_24, %c32_25] : memref<2x10x64xf32, #tpu.memory_space<vmem>>, vector<2x8x32xf32>
    %27 = vector.shape_cast %26 : vector<2x8x32xf32> to vector<16x32xf32>
    %c0_26 = arith.constant 0 : index
    %c2_27 = arith.constant 2 : index
    %c0_28 = arith.constant 0 : index
    %28 = vector.load %arg1[%c0_26, %c2_27, %c0_28] : memref<2x10x64xf32, #tpu.memory_space<vmem>>, vector<2x8x32xf32>
    %29 = vector.shape_cast %28 : vector<2x8x32xf32> to vector<16x32xf32>
    %c0_29 = arith.constant 0 : index
    %c2_30 = arith.constant 2 : index
    %c32_31 = arith.constant 32 : index
    %30 = vector.load %arg1[%c0_29, %c2_30, %c32_31] : memref<2x10x64xf32, #tpu.memory_space<vmem>>, vector<2x8x32xf32>
    %31 = vector.shape_cast %30 : vector<2x8x32xf32> to vector<16x32xf32>
    %32 = tpu.concatenate %23, %25, %27, %29, %31 in 1 : vector<16x32xf32>, vector<16x32xf32>, vector<16x32xf32>, vector<16x32xf32>, vector<16x32xf32> -> vector<16x160xf32>
    %33 = arith.truncf %32 : vector<16x160xf32> to vector<16x160xbf16>
    %c0_32 = arith.constant 0 : index
    %c0_33 = arith.constant 0 : index
    %34 = vector.load %arg2[%c0_32, %c0_33] : memref<160x32xbf16, #tpu.memory_space<vmem>>, vector<160x32xbf16>
    %cst_34 = arith.constant dense<0.000000e+00> : vector<16x32xf32>
    %35 = tpu.matmul %33, %34, %cst_34 {dimension_numbers = #tpu.dot_dimension_numbers<[1], [0], [0], [1], [0, 0, 1, 1], [], []>} : vector<16x160xbf16>, vector<160x32xbf16>, vector<16x32xf32> -> vector<16x32xf32>
    %36 = vector.broadcast %0 : vector<1x32xf32> to vector<16x32xf32>
    %37 = arith.addf %35, %36 : vector<16x32xf32>
    %cst_35 = arith.constant 0.000000e+00 : f32
    %38 = vector.broadcast %cst_35 : f32 to vector<16x32xf32>
    %39 = arith.cmpf oge, %37, %38 : vector<16x32xf32>
    %cst_36 = arith.constant 2.000000e-01 : f32
    %40 = vector.broadcast %cst_36 : f32 to vector<16x32xf32>
    %41 = arith.mulf %40, %37 : vector<16x32xf32>
    %42 = arith.select %39, %37, %41 : vector<16x32xi1>, vector<16x32xf32>
    %43 = tpu.concatenate %21, %42 in 0 : vector<16x32xf32>, vector<16x32xf32> -> vector<32x32xf32>
    %cst_37 = arith.constant dense<0.000000e+00> : vector<32xf32>
    %44 = vector.multi_reduction <add>, %43, %cst_37 [0] : vector<32x32xf32> to vector<32xf32>
    %45 = vector.shape_cast %44 : vector<32xf32> to vector<1x32xf32>
    %cst_38 = arith.constant 3.200000e+01 : f32
    %46 = vector.broadcast %cst_38 : f32 to vector<1x32xf32>
    %47 = arith.divf %45, %46 : vector<1x32xf32>
    %48 = vector.broadcast %47 : vector<1x32xf32> to vector<32x32xf32>
    %49 = arith.subf %43, %48 : vector<32x32xf32>
    %50 = arith.mulf %49, %49 : vector<32x32xf32>
    %cst_39 = arith.constant dense<0.000000e+00> : vector<32xf32>
    %51 = vector.multi_reduction <add>, %50, %cst_39 [0] : vector<32x32xf32> to vector<32xf32>
    %52 = vector.shape_cast %51 : vector<32xf32> to vector<1x32xf32>
    %cst_40 = arith.constant 3.200000e+01 : f32
    %53 = vector.broadcast %cst_40 : f32 to vector<1x32xf32>
    %54 = arith.divf %52, %53 : vector<1x32xf32>
    %c0_41 = arith.constant 0 : index
    %c0_42 = arith.constant 0 : index
    %55 = vector.load %arg4[%c0_41, %c0_42] : memref<1x32xf32, #tpu.memory_space<vmem>>, vector<1x32xf32>
    %cst_43 = arith.constant 9.99999974E-6 : f32
    %56 = vector.broadcast %cst_43 : f32 to vector<1x32xf32>
    %57 = arith.addf %54, %56 : vector<1x32xf32>
    %58 = math.rsqrt %57 : vector<1x32xf32>
    %59 = arith.mulf %55, %58 : vector<1x32xf32>
    %c0_44 = arith.constant 0 : index
    %c0_45 = arith.constant 0 : index
    %60 = vector.load %arg5[%c0_44, %c0_45] : memref<1x32xf32, #tpu.memory_space<vmem>>, vector<1x32xf32>
    %61 = arith.mulf %47, %59 : vector<1x32xf32>
    %62 = arith.subf %60, %61 : vector<1x32xf32>
    %63 = vector.broadcast %59 : vector<1x32xf32> to vector<16x32xf32>
    %64 = arith.mulf %21, %63 : vector<16x32xf32>
    %65 = vector.broadcast %62 : vector<1x32xf32> to vector<16x32xf32>
    %66 = arith.addf %64, %65 : vector<16x32xf32>
    %67 = vector.broadcast %59 : vector<1x32xf32> to vector<16x32xf32>
    %68 = arith.mulf %42, %67 : vector<16x32xf32>
    %69 = vector.broadcast %62 : vector<1x32xf32> to vector<16x32xf32>
    %70 = arith.addf %68, %69 : vector<16x32xf32>
    %71 = arith.maximumf %66, %70 : vector<16x32xf32>
    %72 = vector.shape_cast %71 : vector<16x32xf32> to vector<2x8x32xf32>
    %c0_46 = arith.constant 0 : index
    %c0_47 = arith.constant 0 : index
    %c0_48 = arith.constant 0 : index
    %73 = vector.load %arg6[%c0_46, %c0_47, %c0_48] : memref<2x8x32xf32, #tpu.memory_space<vmem>>, vector<2x8x32xf32>
    tpu.vector_store %arg6[%c0_46, %c0_47, %c0_48], %72 {strides = array<i32>} : memref<2x8x32xf32, #tpu.memory_space<vmem>>, vector<2x8x32xf32>,
    return
  }
  func.func @transform_0(%arg0: i32) -> (i32, i32, i32) {
    %c0_i32 = arith.constant 0 : i32
    %c0_i32_0 = arith.constant 0 : i32
    %c0_i32_1 = arith.constant 0 : i32
    %c0_i32_2 = arith.constant 0 : i32
    return %c0_i32, %c0_i32_0, %c0_i32_1 : i32, i32, i32
  }
  func.func @transform_1(%arg0: i32) -> (i32, i32) {
    %c0_i32 = arith.constant 0 : i32
    %c0_i32_0 = arith.constant 0 : i32
    %c0_i32_1 = arith.constant 0 : i32
    return %c0_i32, %c0_i32_0 : i32, i32
  }
  func.func @transform_2(%arg0: i32) -> (i32, i32) {
    %c0_i32 = arith.constant 0 : i32
    %c0_i32_0 = arith.constant 0 : i32
    %c0_i32_1 = arith.constant 0 : i32
    return %c0_i32, %c0_i32_0 : i32, i32
  }
  func.func @transform_3(%arg0: i32) -> (i32, i32) {
    %c0_i32 = arith.constant 0 : i32
    %c0_i32_0 = arith.constant 0 : i32
    %c0_i32_1 = arith.constant 0 : i32
    return %c0_i32, %c0_i32_0 : i32, i32
  }
  func.func @transform_4(%arg0: i32) -> (i32, i32) {
    %c0_i32 = arith.constant 0 : i32
    %c0_i32_0 = arith.constant 0 : i32
    %c0_i32_1 = arith.constant 0 : i32
    return %c0_i32, %c0_i32_0 : i32, i32
  }
  func.func @transform_5(%arg0: i32) -> (i32, i32, i32) {
    %c0_i32 = arith.constant 0 : i32
    %c0_i32_0 = arith.constant 0 : i32
    %c0_i32_1 = arith.constant 0 : i32
    %c0_i32_2 = arith.constant 0 : i32
    return %c0_i32, %c0_i32_0, %c0_i32_1 : i32, i32, i32
  }
}

module attributes {stable_mosaic.version = 11 : i64} {
  func.func @_encoder_stack_kernel(%arg0: i32, %arg1: memref<16x32xf32, #tpu.memory_space<vmem>>, %arg2: memref<32x32xbf16, #tpu.memory_space<vmem>>, %arg3: memref<1x32xf32, #tpu.memory_space<vmem>>, %arg4: memref<16x32xf32, #tpu.memory_space<vmem>>, %arg5: memref<1x32x96xbf16, #tpu.memory_space<vmem>>, %arg6: memref<1x1x96xf32, #tpu.memory_space<vmem>>, %arg7: memref<1x32x32xbf16, #tpu.memory_space<vmem>>, %arg8: memref<1x1x32xf32, #tpu.memory_space<vmem>>, %arg9: memref<1x1x32xf32, #tpu.memory_space<vmem>>, %arg10: memref<1x1x32xf32, #tpu.memory_space<vmem>>, %arg11: memref<1x32x64xbf16, #tpu.memory_space<vmem>>, %arg12: memref<1x1x64xf32, #tpu.memory_space<vmem>>, %arg13: memref<1x64x32xbf16, #tpu.memory_space<vmem>>, %arg14: memref<1x1x32xf32, #tpu.memory_space<vmem>>, %arg15: memref<1x1x32xf32, #tpu.memory_space<vmem>>, %arg16: memref<1x1x32xf32, #tpu.memory_space<vmem>>, %arg17: memref<16x32xf32, #tpu.memory_space<vmem>>, %arg18: memref<16x32xf32, #tpu.memory_space<vmem>>) attributes {dimension_semantics = [#tpu.dimension_semantics<arbitrary>], iteration_bounds = array<i64: 2>, scalar_prefetch = 0 : i64, scratch_operands = 1 : i64, tpu.core_type = #tpu.core_type<tc>, window_params = [{pipeline_mode = #tpu.pipeline_mode<synchronous>, transform_indices = @transform_0, window_bounds = array<i64: 16, 32>}, {pipeline_mode = #tpu.pipeline_mode<synchronous>, transform_indices = @transform_1, window_bounds = array<i64: 32, 32>}, {pipeline_mode = #tpu.pipeline_mode<synchronous>, transform_indices = @transform_2, window_bounds = array<i64: 1, 32>}, {pipeline_mode = #tpu.pipeline_mode<synchronous>, transform_indices = @transform_3, window_bounds = array<i64: 16, 32>}, {transform_indices = @transform_4, window_bounds = array<i64: 1, 32, 96>}, {transform_indices = @transform_5, window_bounds = array<i64: 1, 1, 96>}, {transform_indices = @transform_6, window_bounds = array<i64: 1, 32, 32>}, {transform_indices = @transform_7, window_bounds = array<i64: 1, 1, 32>}, {transform_indices = @transform_8, window_bounds = array<i64: 1, 1, 32>}, {transform_indices = @transform_9, window_bounds = array<i64: 1, 1, 32>}, {transform_indices = @transform_10, window_bounds = array<i64: 1, 32, 64>}, {transform_indices = @transform_11, window_bounds = array<i64: 1, 1, 64>}, {transform_indices = @transform_12, window_bounds = array<i64: 1, 64, 32>}, {transform_indices = @transform_13, window_bounds = array<i64: 1, 1, 32>}, {transform_indices = @transform_14, window_bounds = array<i64: 1, 1, 32>}, {transform_indices = @transform_15, window_bounds = array<i64: 1, 1, 32>}, {pipeline_mode = #tpu.pipeline_mode<synchronous>, transform_indices = @transform_16, window_bounds = array<i64: 16, 32>}]} {
    %c0_i32 = arith.constant 0 : i32
    %0 = arith.cmpi eq, %arg0, %c0_i32 : i32
    %1 = arith.extui %0 : i1 to i32
    %c0_i32_0 = arith.constant 0 : i32
    %2 = arith.cmpi ne, %1, %c0_i32_0 : i32
    scf.if %2 {
      %c0_63 = arith.constant 0 : index
      %c0_64 = arith.constant 0 : index
      %193 = vector.load %arg1[%c0_63, %c0_64] : memref<16x32xf32, #tpu.memory_space<vmem>>, vector<16x32xf32>
      %194 = arith.truncf %193 : vector<16x32xf32> to vector<16x32xbf16>
      %c0_65 = arith.constant 0 : index
      %c0_66 = arith.constant 0 : index
      %195 = vector.load %arg2[%c0_65, %c0_66] : memref<32x32xbf16, #tpu.memory_space<vmem>>, vector<32x32xbf16>
      %cst_67 = arith.constant dense<0.000000e+00> : vector<16x32xf32>
      %196 = tpu.matmul %194, %195, %cst_67 {dimension_numbers = #tpu.dot_dimension_numbers<[1], [0], [0], [1], [0, 0, 1, 1], [], []>} : vector<16x32xbf16>, vector<32x32xbf16>, vector<16x32xf32> -> vector<16x32xf32>
      %c0_68 = arith.constant 0 : index
      %c0_69 = arith.constant 0 : index
      %197 = vector.load %arg3[%c0_68, %c0_69] : memref<1x32xf32, #tpu.memory_space<vmem>>, vector<1x32xf32>
      %198 = vector.broadcast %197 : vector<1x32xf32> to vector<16x32xf32>
      %199 = arith.addf %196, %198 : vector<16x32xf32>
      %c0_70 = arith.constant 0 : index
      %c0_71 = arith.constant 0 : index
      %200 = vector.load %arg4[%c0_70, %c0_71] : memref<16x32xf32, #tpu.memory_space<vmem>>, vector<16x32xf32>
      %201 = arith.addf %199, %200 : vector<16x32xf32>
      %c0_72 = arith.constant 0 : index
      %c0_73 = arith.constant 0 : index
      %202 = vector.load %arg18[%c0_72, %c0_73] : memref<16x32xf32, #tpu.memory_space<vmem>>, vector<16x32xf32>
      tpu.vector_store %arg18[%c0_72, %c0_73], %201 {strides = array<i32>} : memref<16x32xf32, #tpu.memory_space<vmem>>, vector<16x32xf32>,
    } else {
    }
    %c0 = arith.constant 0 : index
    %c0_1 = arith.constant 0 : index
    %3 = vector.load %arg18[%c0, %c0_1] : memref<16x32xf32, #tpu.memory_space<vmem>>, vector<16x32xf32>
    %4 = arith.truncf %3 : vector<16x32xf32> to vector<16x32xbf16>
    %c0_2 = arith.constant 0 : index
    %c0_3 = arith.constant 0 : index
    %c0_4 = arith.constant 0 : index
    %5 = vector.load %arg5[%c0_2, %c0_3, %c0_4] : memref<1x32x96xbf16, #tpu.memory_space<vmem>>, vector<1x32x96xbf16>
    %6 = vector.shape_cast %5 : vector<1x32x96xbf16> to vector<32x96xbf16>
    %cst = arith.constant dense<0.000000e+00> : vector<16x96xf32>
    %7 = tpu.matmul %4, %6, %cst {dimension_numbers = #tpu.dot_dimension_numbers<[1], [0], [0], [1], [0, 0, 1, 1], [], []>} : vector<16x32xbf16>, vector<32x96xbf16>, vector<16x96xf32> -> vector<16x96xf32>
    %c0_5 = arith.constant 0 : index
    %c0_6 = arith.constant 0 : index
    %c0_7 = arith.constant 0 : index
    %8 = vector.load %arg6[%c0_5, %c0_6, %c0_7] : memref<1x1x96xf32, #tpu.memory_space<vmem>>, vector<1x1x96xf32>
    %9 = vector.shape_cast %8 : vector<1x1x96xf32> to vector<1x96xf32>
    %10 = vector.broadcast %9 : vector<1x96xf32> to vector<16x96xf32>
    %11 = arith.addf %7, %10 : vector<16x96xf32>
    %12 = vector.extract_strided_slice %11 {offsets = [0, 0], sizes = [8, 96], strides = [1, 1]} : vector<16x96xf32> to vector<8x96xf32>
    %13 = vector.extract_strided_slice %12 {offsets = [0, 0], sizes = [8, 8], strides = [1, 1]} : vector<8x96xf32> to vector<8x8xf32>
    %14 = vector.extract_strided_slice %12 {offsets = [0, 32], sizes = [8, 8], strides = [1, 1]} : vector<8x96xf32> to vector<8x8xf32>
    %15 = vector.extract_strided_slice %12 {offsets = [0, 64], sizes = [8, 8], strides = [1, 1]} : vector<8x96xf32> to vector<8x8xf32>
    %16 = vector.extract_strided_slice %12 {offsets = [0, 8], sizes = [8, 8], strides = [1, 1]} : vector<8x96xf32> to vector<8x8xf32>
    %17 = vector.extract_strided_slice %12 {offsets = [0, 40], sizes = [8, 8], strides = [1, 1]} : vector<8x96xf32> to vector<8x8xf32>
    %18 = vector.extract_strided_slice %12 {offsets = [0, 72], sizes = [8, 8], strides = [1, 1]} : vector<8x96xf32> to vector<8x8xf32>
    %19 = vector.extract_strided_slice %12 {offsets = [0, 16], sizes = [8, 8], strides = [1, 1]} : vector<8x96xf32> to vector<8x8xf32>
    %20 = vector.extract_strided_slice %12 {offsets = [0, 48], sizes = [8, 8], strides = [1, 1]} : vector<8x96xf32> to vector<8x8xf32>
    %21 = vector.extract_strided_slice %12 {offsets = [0, 80], sizes = [8, 8], strides = [1, 1]} : vector<8x96xf32> to vector<8x8xf32>
    %22 = vector.extract_strided_slice %12 {offsets = [0, 24], sizes = [8, 8], strides = [1, 1]} : vector<8x96xf32> to vector<8x8xf32>
    %23 = vector.extract_strided_slice %12 {offsets = [0, 56], sizes = [8, 8], strides = [1, 1]} : vector<8x96xf32> to vector<8x8xf32>
    %24 = vector.extract_strided_slice %12 {offsets = [0, 88], sizes = [8, 8], strides = [1, 1]} : vector<8x96xf32> to vector<8x8xf32>
    %25 = vector.extract_strided_slice %11 {offsets = [8, 0], sizes = [8, 96], strides = [1, 1]} : vector<16x96xf32> to vector<8x96xf32>
    %26 = vector.extract_strided_slice %25 {offsets = [0, 0], sizes = [8, 8], strides = [1, 1]} : vector<8x96xf32> to vector<8x8xf32>
    %27 = vector.extract_strided_slice %25 {offsets = [0, 32], sizes = [8, 8], strides = [1, 1]} : vector<8x96xf32> to vector<8x8xf32>
    %28 = vector.extract_strided_slice %25 {offsets = [0, 64], sizes = [8, 8], strides = [1, 1]} : vector<8x96xf32> to vector<8x8xf32>
    %29 = vector.extract_strided_slice %25 {offsets = [0, 8], sizes = [8, 8], strides = [1, 1]} : vector<8x96xf32> to vector<8x8xf32>
    %30 = vector.extract_strided_slice %25 {offsets = [0, 40], sizes = [8, 8], strides = [1, 1]} : vector<8x96xf32> to vector<8x8xf32>
    %31 = vector.extract_strided_slice %25 {offsets = [0, 72], sizes = [8, 8], strides = [1, 1]} : vector<8x96xf32> to vector<8x8xf32>
    %32 = vector.extract_strided_slice %25 {offsets = [0, 16], sizes = [8, 8], strides = [1, 1]} : vector<8x96xf32> to vector<8x8xf32>
    %33 = vector.extract_strided_slice %25 {offsets = [0, 48], sizes = [8, 8], strides = [1, 1]} : vector<8x96xf32> to vector<8x8xf32>
    %34 = vector.extract_strided_slice %25 {offsets = [0, 80], sizes = [8, 8], strides = [1, 1]} : vector<8x96xf32> to vector<8x8xf32>
    %35 = vector.extract_strided_slice %25 {offsets = [0, 24], sizes = [8, 8], strides = [1, 1]} : vector<8x96xf32> to vector<8x8xf32>
    %36 = vector.extract_strided_slice %25 {offsets = [0, 56], sizes = [8, 8], strides = [1, 1]} : vector<8x96xf32> to vector<8x8xf32>
    %37 = vector.extract_strided_slice %25 {offsets = [0, 88], sizes = [8, 8], strides = [1, 1]} : vector<8x96xf32> to vector<8x8xf32>
    %38 = vector.shape_cast %13 : vector<8x8xf32> to vector<1x8x8xf32>
    %39 = vector.shape_cast %16 : vector<8x8xf32> to vector<1x8x8xf32>
    %40 = vector.shape_cast %19 : vector<8x8xf32> to vector<1x8x8xf32>
    %41 = vector.shape_cast %22 : vector<8x8xf32> to vector<1x8x8xf32>
    %42 = vector.shape_cast %26 : vector<8x8xf32> to vector<1x8x8xf32>
    %43 = vector.shape_cast %29 : vector<8x8xf32> to vector<1x8x8xf32>
    %44 = vector.shape_cast %32 : vector<8x8xf32> to vector<1x8x8xf32>
    %45 = vector.shape_cast %35 : vector<8x8xf32> to vector<1x8x8xf32>
    %46 = tpu.concatenate %38, %39, %40, %41, %42, %43, %44, %45 in 0 : vector<1x8x8xf32>, vector<1x8x8xf32>, vector<1x8x8xf32>, vector<1x8x8xf32>, vector<1x8x8xf32>, vector<1x8x8xf32>, vector<1x8x8xf32>, vector<1x8x8xf32> -> vector<8x8x8xf32>
    %47 = arith.truncf %46 : vector<8x8x8xf32> to vector<8x8x8xbf16>
    %48 = vector.shape_cast %14 : vector<8x8xf32> to vector<1x8x8xf32>
    %49 = vector.shape_cast %17 : vector<8x8xf32> to vector<1x8x8xf32>
    %50 = vector.shape_cast %20 : vector<8x8xf32> to vector<1x8x8xf32>
    %51 = vector.shape_cast %23 : vector<8x8xf32> to vector<1x8x8xf32>
    %52 = vector.shape_cast %27 : vector<8x8xf32> to vector<1x8x8xf32>
    %53 = vector.shape_cast %30 : vector<8x8xf32> to vector<1x8x8xf32>
    %54 = vector.shape_cast %33 : vector<8x8xf32> to vector<1x8x8xf32>
    %55 = vector.shape_cast %36 : vector<8x8xf32> to vector<1x8x8xf32>
    %56 = tpu.concatenate %48, %49, %50, %51, %52, %53, %54, %55 in 0 : vector<1x8x8xf32>, vector<1x8x8xf32>, vector<1x8x8xf32>, vector<1x8x8xf32>, vector<1x8x8xf32>, vector<1x8x8xf32>, vector<1x8x8xf32>, vector<1x8x8xf32> -> vector<8x8x8xf32>
    %57 = arith.truncf %56 : vector<8x8x8xf32> to vector<8x8x8xbf16>
    %58 = vector.shape_cast %15 : vector<8x8xf32> to vector<1x8x8xf32>
    %59 = vector.shape_cast %18 : vector<8x8xf32> to vector<1x8x8xf32>
    %60 = vector.shape_cast %21 : vector<8x8xf32> to vector<1x8x8xf32>
    %61 = vector.shape_cast %24 : vector<8x8xf32> to vector<1x8x8xf32>
    %62 = vector.shape_cast %28 : vector<8x8xf32> to vector<1x8x8xf32>
    %63 = vector.shape_cast %31 : vector<8x8xf32> to vector<1x8x8xf32>
    %64 = vector.shape_cast %34 : vector<8x8xf32> to vector<1x8x8xf32>
    %65 = vector.shape_cast %37 : vector<8x8xf32> to vector<1x8x8xf32>
    %66 = tpu.concatenate %58, %59, %60, %61, %62, %63, %64, %65 in 0 : vector<1x8x8xf32>, vector<1x8x8xf32>, vector<1x8x8xf32>, vector<1x8x8xf32>, vector<1x8x8xf32>, vector<1x8x8xf32>, vector<1x8x8xf32>, vector<1x8x8xf32> -> vector<8x8x8xf32>
    %67 = arith.truncf %66 : vector<8x8x8xf32> to vector<8x8x8xbf16>
    "tpu.trace_start"() <{level = 10 : i32, message = "gqd,gkd->gqk"}> : () -> ()
    %cst_8 = arith.constant dense<0.000000e+00> : vector<8x8x8xf32>
    %68 = tpu.matmul %47, %57, %cst_8 {dimension_numbers = #tpu.dot_dimension_numbers<[2], [2], [1], [1], [0, 0, 0, 1, 1, 1], [0], [0]>} : vector<8x8x8xbf16>, vector<8x8x8xbf16>, vector<8x8x8xf32> -> vector<8x8x8xf32>
    "tpu.trace_stop"() : () -> ()
    %cst_9 = arith.constant dense<0xFF800000> : vector<8x8xf32>
    %69 = vector.multi_reduction <maximumf>, %68, %cst_9 [2] : vector<8x8x8xf32> to vector<8x8xf32>
    %70 = vector.shape_cast %69 : vector<8x8xf32> to vector<8x8x1xf32>
    %71 = vector.broadcast %70 : vector<8x8x1xf32> to vector<8x8x8xf32>
    %72 = arith.subf %68, %71 : vector<8x8x8xf32>
    %73 = math.exp %72 : vector<8x8x8xf32>
    %cst_10 = arith.constant dense<0.000000e+00> : vector<8x8xf32>
    %74 = vector.multi_reduction <add>, %73, %cst_10 [2] : vector<8x8x8xf32> to vector<8x8xf32>
    %75 = vector.shape_cast %74 : vector<8x8xf32> to vector<8x8x1xf32>
    %76 = tpu.reciprocal %75 {approx = true} : vector<8x8x1xf32> -> vector<8x8x1xf32>
    %77 = vector.broadcast %76 : vector<8x8x1xf32> to vector<8x8x8xf32>
    %78 = arith.mulf %73, %77 : vector<8x8x8xf32>
    %79 = arith.truncf %78 : vector<8x8x8xf32> to vector<8x8x8xbf16>
    "tpu.trace_start"() <{level = 10 : i32, message = "gqk,gkd->gqd"}> : () -> ()
    %cst_11 = arith.constant dense<0.000000e+00> : vector<8x8x8xf32>
    %80 = tpu.matmul %79, %67, %cst_11 {dimension_numbers = #tpu.dot_dimension_numbers<[2], [1], [1], [2], [0, 0, 0, 1, 1, 2], [0], [0]>} : vector<8x8x8xbf16>, vector<8x8x8xbf16>, vector<8x8x8xf32> -> vector<8x8x8xf32>
    "tpu.trace_stop"() : () -> ()
    %81 = vector.extract_strided_slice %80 {offsets = [0, 0, 0], sizes = [1, 8, 8], strides = [1, 1, 1]} : vector<8x8x8xf32> to vector<1x8x8xf32>
    %82 = vector.shape_cast %81 : vector<1x8x8xf32> to vector<8x8xf32>
    %83 = vector.extract_strided_slice %80 {offsets = [1, 0, 0], sizes = [1, 8, 8], strides = [1, 1, 1]} : vector<8x8x8xf32> to vector<1x8x8xf32>
    %84 = vector.shape_cast %83 : vector<1x8x8xf32> to vector<8x8xf32>
    %85 = vector.extract_strided_slice %80 {offsets = [2, 0, 0], sizes = [1, 8, 8], strides = [1, 1, 1]} : vector<8x8x8xf32> to vector<1x8x8xf32>
    %86 = vector.shape_cast %85 : vector<1x8x8xf32> to vector<8x8xf32>
    %87 = vector.extract_strided_slice %80 {offsets = [3, 0, 0], sizes = [1, 8, 8], strides = [1, 1, 1]} : vector<8x8x8xf32> to vector<1x8x8xf32>
    %88 = vector.shape_cast %87 : vector<1x8x8xf32> to vector<8x8xf32>
    %89 = tpu.concatenate %82, %84, %86, %88 in 1 : vector<8x8xf32>, vector<8x8xf32>, vector<8x8xf32>, vector<8x8xf32> -> vector<8x32xf32>
    %90 = vector.extract_strided_slice %80 {offsets = [4, 0, 0], sizes = [1, 8, 8], strides = [1, 1, 1]} : vector<8x8x8xf32> to vector<1x8x8xf32>
    %91 = vector.shape_cast %90 : vector<1x8x8xf32> to vector<8x8xf32>
    %92 = vector.extract_strided_slice %80 {offsets = [5, 0, 0], sizes = [1, 8, 8], strides = [1, 1, 1]} : vector<8x8x8xf32> to vector<1x8x8xf32>
    %93 = vector.shape_cast %92 : vector<1x8x8xf32> to vector<8x8xf32>
    %94 = vector.extract_strided_slice %80 {offsets = [6, 0, 0], sizes = [1, 8, 8], strides = [1, 1, 1]} : vector<8x8x8xf32> to vector<1x8x8xf32>
    %95 = vector.shape_cast %94 : vector<1x8x8xf32> to vector<8x8xf32>
    %96 = vector.extract_strided_slice %80 {offsets = [7, 0, 0], sizes = [1, 8, 8], strides = [1, 1, 1]} : vector<8x8x8xf32> to vector<1x8x8xf32>
    %97 = vector.shape_cast %96 : vector<1x8x8xf32> to vector<8x8xf32>
    %98 = tpu.concatenate %91, %93, %95, %97 in 1 : vector<8x8xf32>, vector<8x8xf32>, vector<8x8xf32>, vector<8x8xf32> -> vector<8x32xf32>
    %99 = tpu.concatenate %89, %98 in 0 : vector<8x32xf32>, vector<8x32xf32> -> vector<16x32xf32>
    %100 = arith.truncf %99 : vector<16x32xf32> to vector<16x32xbf16>
    %c0_12 = arith.constant 0 : index
    %c0_13 = arith.constant 0 : index
    %c0_14 = arith.constant 0 : index
    %101 = vector.load %arg7[%c0_12, %c0_13, %c0_14] : memref<1x32x32xbf16, #tpu.memory_space<vmem>>, vector<1x32x32xbf16>
    %102 = vector.shape_cast %101 : vector<1x32x32xbf16> to vector<32x32xbf16>
    %cst_15 = arith.constant dense<0.000000e+00> : vector<16x32xf32>
    %103 = tpu.matmul %100, %102, %cst_15 {dimension_numbers = #tpu.dot_dimension_numbers<[1], [0], [0], [1], [0, 0, 1, 1], [], []>} : vector<16x32xbf16>, vector<32x32xbf16>, vector<16x32xf32> -> vector<16x32xf32>
    %c0_16 = arith.constant 0 : index
    %c0_17 = arith.constant 0 : index
    %c0_18 = arith.constant 0 : index
    %104 = vector.load %arg8[%c0_16, %c0_17, %c0_18] : memref<1x1x32xf32, #tpu.memory_space<vmem>>, vector<1x1x32xf32>
    %105 = vector.shape_cast %104 : vector<1x1x32xf32> to vector<1x32xf32>
    %106 = vector.broadcast %105 : vector<1x32xf32> to vector<16x32xf32>
    %107 = arith.addf %103, %106 : vector<16x32xf32>
    %108 = arith.addf %3, %107 : vector<16x32xf32>
    %cst_19 = arith.constant dense<0.000000e+00> : vector<16xf32>
    %109 = vector.multi_reduction <add>, %108, %cst_19 [1] : vector<16x32xf32> to vector<16xf32>
    %110 = vector.shape_cast %109 : vector<16xf32> to vector<16x1xf32>
    %cst_20 = arith.constant 3.200000e+01 : f32
    %111 = vector.broadcast %cst_20 : f32 to vector<16x1xf32>
    %112 = arith.divf %110, %111 : vector<16x1xf32>
    %113 = vector.broadcast %112 : vector<16x1xf32> to vector<16x32xf32>
    %114 = arith.subf %108, %113 : vector<16x32xf32>
    %115 = arith.mulf %114, %114 : vector<16x32xf32>
    %cst_21 = arith.constant dense<0.000000e+00> : vector<16xf32>
    %116 = vector.multi_reduction <add>, %115, %cst_21 [1] : vector<16x32xf32> to vector<16xf32>
    %117 = vector.shape_cast %116 : vector<16xf32> to vector<16x1xf32>
    %cst_22 = arith.constant 3.200000e+01 : f32
    %118 = vector.broadcast %cst_22 : f32 to vector<16x1xf32>
    %119 = arith.divf %117, %118 : vector<16x1xf32>
    %120 = vector.broadcast %112 : vector<16x1xf32> to vector<16x32xf32>
    %121 = arith.subf %108, %120 : vector<16x32xf32>
    %cst_23 = arith.constant 9.99999974E-6 : f32
    %122 = vector.broadcast %cst_23 : f32 to vector<16x1xf32>
    %123 = arith.addf %119, %122 : vector<16x1xf32>
    %124 = math.rsqrt %123 : vector<16x1xf32>
    %125 = vector.broadcast %124 : vector<16x1xf32> to vector<16x32xf32>
    %126 = arith.mulf %121, %125 : vector<16x32xf32>
    %c0_24 = arith.constant 0 : index
    %c0_25 = arith.constant 0 : index
    %c0_26 = arith.constant 0 : index
    %127 = vector.load %arg9[%c0_24, %c0_25, %c0_26] : memref<1x1x32xf32, #tpu.memory_space<vmem>>, vector<1x1x32xf32>
    %128 = vector.shape_cast %127 : vector<1x1x32xf32> to vector<1x32xf32>
    %129 = vector.broadcast %128 : vector<1x32xf32> to vector<16x32xf32>
    %130 = arith.mulf %126, %129 : vector<16x32xf32>
    %c0_27 = arith.constant 0 : index
    %c0_28 = arith.constant 0 : index
    %c0_29 = arith.constant 0 : index
    %131 = vector.load %arg10[%c0_27, %c0_28, %c0_29] : memref<1x1x32xf32, #tpu.memory_space<vmem>>, vector<1x1x32xf32>
    %132 = vector.shape_cast %131 : vector<1x1x32xf32> to vector<1x32xf32>
    %133 = vector.broadcast %132 : vector<1x32xf32> to vector<16x32xf32>
    %134 = arith.addf %130, %133 : vector<16x32xf32>
    %135 = arith.truncf %134 : vector<16x32xf32> to vector<16x32xbf16>
    %c0_30 = arith.constant 0 : index
    %c0_31 = arith.constant 0 : index
    %c0_32 = arith.constant 0 : index
    %136 = vector.load %arg11[%c0_30, %c0_31, %c0_32] : memref<1x32x64xbf16, #tpu.memory_space<vmem>>, vector<1x32x64xbf16>
    %137 = vector.shape_cast %136 : vector<1x32x64xbf16> to vector<32x64xbf16>
    %cst_33 = arith.constant dense<0.000000e+00> : vector<16x64xf32>
    %138 = tpu.matmul %135, %137, %cst_33 {dimension_numbers = #tpu.dot_dimension_numbers<[1], [0], [0], [1], [0, 0, 1, 1], [], []>} : vector<16x32xbf16>, vector<32x64xbf16>, vector<16x64xf32> -> vector<16x64xf32>
    %c0_34 = arith.constant 0 : index
    %c0_35 = arith.constant 0 : index
    %c0_36 = arith.constant 0 : index
    %139 = vector.load %arg12[%c0_34, %c0_35, %c0_36] : memref<1x1x64xf32, #tpu.memory_space<vmem>>, vector<1x1x64xf32>
    %140 = vector.shape_cast %139 : vector<1x1x64xf32> to vector<1x64xf32>
    %141 = vector.broadcast %140 : vector<1x64xf32> to vector<16x64xf32>
    %142 = arith.addf %138, %141 : vector<16x64xf32>
    %143 = arith.mulf %142, %142 : vector<16x64xf32>
    %144 = arith.mulf %142, %143 : vector<16x64xf32>
    %cst_37 = arith.constant 4.471500e-02 : f32
    %145 = vector.broadcast %cst_37 : f32 to vector<16x64xf32>
    %146 = arith.mulf %145, %144 : vector<16x64xf32>
    %147 = arith.addf %142, %146 : vector<16x64xf32>
    %cst_38 = arith.constant 0.797884583 : f32
    %148 = vector.broadcast %cst_38 : f32 to vector<16x64xf32>
    %149 = arith.mulf %148, %147 : vector<16x64xf32>
    %150 = math.tanh %149 : vector<16x64xf32>
    %cst_39 = arith.constant 1.000000e+00 : f32
    %151 = vector.broadcast %cst_39 : f32 to vector<16x64xf32>
    %152 = arith.addf %151, %150 : vector<16x64xf32>
    %cst_40 = arith.constant 5.000000e-01 : f32
    %153 = vector.broadcast %cst_40 : f32 to vector<16x64xf32>
    %154 = arith.mulf %153, %152 : vector<16x64xf32>
    %155 = arith.mulf %142, %154 : vector<16x64xf32>
    %156 = arith.truncf %155 : vector<16x64xf32> to vector<16x64xbf16>
    %c0_41 = arith.constant 0 : index
    %c0_42 = arith.constant 0 : index
    %c0_43 = arith.constant 0 : index
    %157 = vector.load %arg13[%c0_41, %c0_42, %c0_43] : memref<1x64x32xbf16, #tpu.memory_space<vmem>>, vector<1x64x32xbf16>
    %158 = vector.shape_cast %157 : vector<1x64x32xbf16> to vector<64x32xbf16>
    %cst_44 = arith.constant dense<0.000000e+00> : vector<16x32xf32>
    %159 = tpu.matmul %156, %158, %cst_44 {dimension_numbers = #tpu.dot_dimension_numbers<[1], [0], [0], [1], [0, 0, 1, 1], [], []>} : vector<16x64xbf16>, vector<64x32xbf16>, vector<16x32xf32> -> vector<16x32xf32>
    %c0_45 = arith.constant 0 : index
    %c0_46 = arith.constant 0 : index
    %c0_47 = arith.constant 0 : index
    %160 = vector.load %arg14[%c0_45, %c0_46, %c0_47] : memref<1x1x32xf32, #tpu.memory_space<vmem>>, vector<1x1x32xf32>
    %161 = vector.shape_cast %160 : vector<1x1x32xf32> to vector<1x32xf32>
    %162 = vector.broadcast %161 : vector<1x32xf32> to vector<16x32xf32>
    %163 = arith.addf %159, %162 : vector<16x32xf32>
    %164 = arith.addf %134, %163 : vector<16x32xf32>
    %cst_48 = arith.constant dense<0.000000e+00> : vector<16xf32>
    %165 = vector.multi_reduction <add>, %164, %cst_48 [1] : vector<16x32xf32> to vector<16xf32>
    %166 = vector.shape_cast %165 : vector<16xf32> to vector<16x1xf32>
    %cst_49 = arith.constant 3.200000e+01 : f32
    %167 = vector.broadcast %cst_49 : f32 to vector<16x1xf32>
    %168 = arith.divf %166, %167 : vector<16x1xf32>
    %169 = vector.broadcast %168 : vector<16x1xf32> to vector<16x32xf32>
    %170 = arith.subf %164, %169 : vector<16x32xf32>
    %171 = arith.mulf %170, %170 : vector<16x32xf32>
    %cst_50 = arith.constant dense<0.000000e+00> : vector<16xf32>
    %172 = vector.multi_reduction <add>, %171, %cst_50 [1] : vector<16x32xf32> to vector<16xf32>
    %173 = vector.shape_cast %172 : vector<16xf32> to vector<16x1xf32>
    %cst_51 = arith.constant 3.200000e+01 : f32
    %174 = vector.broadcast %cst_51 : f32 to vector<16x1xf32>
    %175 = arith.divf %173, %174 : vector<16x1xf32>
    %176 = vector.broadcast %168 : vector<16x1xf32> to vector<16x32xf32>
    %177 = arith.subf %164, %176 : vector<16x32xf32>
    %cst_52 = arith.constant 9.99999974E-6 : f32
    %178 = vector.broadcast %cst_52 : f32 to vector<16x1xf32>
    %179 = arith.addf %175, %178 : vector<16x1xf32>
    %180 = math.rsqrt %179 : vector<16x1xf32>
    %181 = vector.broadcast %180 : vector<16x1xf32> to vector<16x32xf32>
    %182 = arith.mulf %177, %181 : vector<16x32xf32>
    %c0_53 = arith.constant 0 : index
    %c0_54 = arith.constant 0 : index
    %c0_55 = arith.constant 0 : index
    %183 = vector.load %arg15[%c0_53, %c0_54, %c0_55] : memref<1x1x32xf32, #tpu.memory_space<vmem>>, vector<1x1x32xf32>
    %184 = vector.shape_cast %183 : vector<1x1x32xf32> to vector<1x32xf32>
    %185 = vector.broadcast %184 : vector<1x32xf32> to vector<16x32xf32>
    %186 = arith.mulf %182, %185 : vector<16x32xf32>
    %c0_56 = arith.constant 0 : index
    %c0_57 = arith.constant 0 : index
    %c0_58 = arith.constant 0 : index
    %187 = vector.load %arg16[%c0_56, %c0_57, %c0_58] : memref<1x1x32xf32, #tpu.memory_space<vmem>>, vector<1x1x32xf32>
    %188 = vector.shape_cast %187 : vector<1x1x32xf32> to vector<1x32xf32>
    %189 = vector.broadcast %188 : vector<1x32xf32> to vector<16x32xf32>
    %190 = arith.addf %186, %189 : vector<16x32xf32>
    %c0_59 = arith.constant 0 : index
    %c0_60 = arith.constant 0 : index
    %191 = vector.load %arg18[%c0_59, %c0_60] : memref<16x32xf32, #tpu.memory_space<vmem>>, vector<16x32xf32>
    tpu.vector_store %arg18[%c0_59, %c0_60], %190 {strides = array<i32>} : memref<16x32xf32, #tpu.memory_space<vmem>>, vector<16x32xf32>,
    %c0_61 = arith.constant 0 : index
    %c0_62 = arith.constant 0 : index
    %192 = vector.load %arg17[%c0_61, %c0_62] : memref<16x32xf32, #tpu.memory_space<vmem>>, vector<16x32xf32>
    tpu.vector_store %arg17[%c0_61, %c0_62], %190 {strides = array<i32>} : memref<16x32xf32, #tpu.memory_space<vmem>>, vector<16x32xf32>,
    return
  }
  func.func @transform_0(%arg0: i32) -> (i32, i32) {
    %c0_i32 = arith.constant 0 : i32
    %c0_i32_0 = arith.constant 0 : i32
    %c0_i32_1 = arith.constant 0 : i32
    return %c0_i32, %c0_i32_0 : i32, i32
  }
  func.func @transform_1(%arg0: i32) -> (i32, i32) {
    %c0_i32 = arith.constant 0 : i32
    %c0_i32_0 = arith.constant 0 : i32
    %c0_i32_1 = arith.constant 0 : i32
    return %c0_i32, %c0_i32_0 : i32, i32
  }
  func.func @transform_2(%arg0: i32) -> (i32, i32) {
    %c0_i32 = arith.constant 0 : i32
    %c0_i32_0 = arith.constant 0 : i32
    %c0_i32_1 = arith.constant 0 : i32
    return %c0_i32, %c0_i32_0 : i32, i32
  }
  func.func @transform_3(%arg0: i32) -> (i32, i32) {
    %c0_i32 = arith.constant 0 : i32
    %c0_i32_0 = arith.constant 0 : i32
    %c0_i32_1 = arith.constant 0 : i32
    return %c0_i32, %c0_i32_0 : i32, i32
  }
  func.func @transform_4(%arg0: i32) -> (i32, i32, i32) {
    %c0_i32 = arith.constant 0 : i32
    %c0_i32_0 = arith.constant 0 : i32
    %c0_i32_1 = arith.constant 0 : i32
    return %arg0, %c0_i32, %c0_i32_0 : i32, i32, i32
  }
  func.func @transform_5(%arg0: i32) -> (i32, i32, i32) {
    %c0_i32 = arith.constant 0 : i32
    %c0_i32_0 = arith.constant 0 : i32
    %c0_i32_1 = arith.constant 0 : i32
    return %arg0, %c0_i32, %c0_i32_0 : i32, i32, i32
  }
  func.func @transform_6(%arg0: i32) -> (i32, i32, i32) {
    %c0_i32 = arith.constant 0 : i32
    %c0_i32_0 = arith.constant 0 : i32
    %c0_i32_1 = arith.constant 0 : i32
    return %arg0, %c0_i32, %c0_i32_0 : i32, i32, i32
  }
  func.func @transform_7(%arg0: i32) -> (i32, i32, i32) {
    %c0_i32 = arith.constant 0 : i32
    %c0_i32_0 = arith.constant 0 : i32
    %c0_i32_1 = arith.constant 0 : i32
    return %arg0, %c0_i32, %c0_i32_0 : i32, i32, i32
  }
  func.func @transform_8(%arg0: i32) -> (i32, i32, i32) {
    %c0_i32 = arith.constant 0 : i32
    %c0_i32_0 = arith.constant 0 : i32
    %c0_i32_1 = arith.constant 0 : i32
    return %arg0, %c0_i32, %c0_i32_0 : i32, i32, i32
  }
  func.func @transform_9(%arg0: i32) -> (i32, i32, i32) {
    %c0_i32 = arith.constant 0 : i32
    %c0_i32_0 = arith.constant 0 : i32
    %c0_i32_1 = arith.constant 0 : i32
    return %arg0, %c0_i32, %c0_i32_0 : i32, i32, i32
  }
  func.func @transform_10(%arg0: i32) -> (i32, i32, i32) {
    %c0_i32 = arith.constant 0 : i32
    %c0_i32_0 = arith.constant 0 : i32
    %c0_i32_1 = arith.constant 0 : i32
    return %arg0, %c0_i32, %c0_i32_0 : i32, i32, i32
  }
  func.func @transform_11(%arg0: i32) -> (i32, i32, i32) {
    %c0_i32 = arith.constant 0 : i32
    %c0_i32_0 = arith.constant 0 : i32
    %c0_i32_1 = arith.constant 0 : i32
    return %arg0, %c0_i32, %c0_i32_0 : i32, i32, i32
  }
  func.func @transform_12(%arg0: i32) -> (i32, i32, i32) {
    %c0_i32 = arith.constant 0 : i32
    %c0_i32_0 = arith.constant 0 : i32
    %c0_i32_1 = arith.constant 0 : i32
    return %arg0, %c0_i32, %c0_i32_0 : i32, i32, i32
  }
  func.func @transform_13(%arg0: i32) -> (i32, i32, i32) {
    %c0_i32 = arith.constant 0 : i32
    %c0_i32_0 = arith.constant 0 : i32
    %c0_i32_1 = arith.constant 0 : i32
    return %arg0, %c0_i32, %c0_i32_0 : i32, i32, i32
  }
  func.func @transform_14(%arg0: i32) -> (i32, i32, i32) {
    %c0_i32 = arith.constant 0 : i32
    %c0_i32_0 = arith.constant 0 : i32
    %c0_i32_1 = arith.constant 0 : i32
    return %arg0, %c0_i32, %c0_i32_0 : i32, i32, i32
  }
  func.func @transform_15(%arg0: i32) -> (i32, i32, i32) {
    %c0_i32 = arith.constant 0 : i32
    %c0_i32_0 = arith.constant 0 : i32
    %c0_i32_1 = arith.constant 0 : i32
    return %arg0, %c0_i32, %c0_i32_0 : i32, i32, i32
  }
  func.func @transform_16(%arg0: i32) -> (i32, i32) {
    %c0_i32 = arith.constant 0 : i32
    %c0_i32_0 = arith.constant 0 : i32
    %c0_i32_1 = arith.constant 0 : i32
    return %c0_i32, %c0_i32_0 : i32, i32
  }
}

</mosaic_0001>

<llo_original>
// kernel: _lambda_.3
$region0: #{_lambda_.3}
  #allocation0 [shape = 'u32[]', space=smem, size = 0x4, offset = 0x4, fixed_abs, tag = 'smem constant byte address 0x4 - core index']
  #allocation1 [shape = 'u32[144,128]{1,0:T(1,128)}', space=vmem, size = 0x12000, scoped, tag = 'internal scratch']
  %s0 = inlined_call_operand.vmem [shape: f32[2,18,32], index: 0, kind: input, shape index: {}]
  %s1 = inlined_call_operand.vmem [shape: bf16[80,32], index: 1, kind: input, shape index: {}]
  %s2 = inlined_call_operand.vmem [shape: f32[1,32], index: 2, kind: input, shape index: {}]
  %s3 = inlined_call_operand.vmem [shape: f32[1,32], index: 3, kind: input, shape index: {}]
  %s4 = inlined_call_operand.vmem [shape: f32[1,32], index: 4, kind: input, shape index: {}]
  %s5 = inlined_call_operand.vmem [shape: f32[2,16,32], index: 5, kind: output, shape index: {}]
  %s6 = sld [smem:[#allocation0]]
  $region30: #{_lambda_.3} parent=0
    _
  %s8 = ssub.s32 1, %s6
  %s9 = scalar_select 0, %s8, %s6
  // Predicated region
  $region2: #{_lambda_.3} parent=0 // pred_check
    _
  $region3: #{_lambda_.3} parent=0 // pred_check_branch
    %11 = sbr.rel (0) target = $region5
  $region4: #{_lambda_.3} parent=0 // pred_region
    _
  $region5: #{_lambda_.3} parent=0 // pred_fallthru
    _
  // Predicated region
  $region6: #{_lambda_.3} parent=0 // pred_check
    _
  $region7: #{_lambda_.3} parent=0 // pred_check_branch
    %13 = sbr.rel (0) target = $region9
  $region8: #{_lambda_.3} parent=0 // pred_region
    _
  $region9: #{_lambda_.3} parent=0 // pred_fallthru
    _
  // Predicated region
  $region10: #{_lambda_.3} parent=0 // pred_check
    _
  $region11: #{_lambda_.3} parent=0 // pred_check_branch
    %15 = sbr.rel (0) target = $region13
  $region12: #{_lambda_.3} parent=0 // pred_region
    _
  $region13: #{_lambda_.3} parent=0 // pred_fallthru
    _
  // Predicated region
  $region14: #{_lambda_.3} parent=0 // pred_check
    _
  $region15: #{_lambda_.3} parent=0 // pred_check_branch
    %17 = sbr.rel (0) target = $region17
  $region16: #{_lambda_.3} parent=0 // pred_region
    _
  $region17: #{_lambda_.3} parent=0 // pred_fallthru
    _
  // Predicated region
  $region18: #{_lambda_.3} parent=0 // pred_check
    _
  $region19: #{_lambda_.3} parent=0 // pred_check_branch
    %19 = sbr.rel (0) target = $region21
  $region20: #{_lambda_.3} parent=0 // pred_region
    _
  $region21: #{_lambda_.3} parent=0 // pred_fallthru
    _
  %v21 = vld [vmem:[%s2] sm:$0x1]
  %v22 = vld [vmem:[%s0] sm:$0xff]
  %v23 = vld [vmem:[%s0 + $0x8] sm:$0xff]
  %v24 = vld [vmem:[%s0 + $0x18] sm:$0xff]
  %v25 = vld [vmem:[%s0 + $0x20] sm:$0xff]
  %v26 = vld [vmem:[%s0 + $0x1] sm:$0xff]
  %v27 = vld [vmem:[%s0 + $0x9] sm:$0xff]
  %v28 = vld [vmem:[%s0 + $0x19] sm:$0xff]
  %v29 = vld [vmem:[%s0 + $0x21] sm:$0xff]
  %v30 = vld [vmem:[%s0 + $0x2] sm:$0xff]
  %v31 = vld [vmem:[%s0 + $0xa] sm:$0xff]
  %v32 = vld [vmem:[%s0 + $0x1a] sm:$0xff]
  %v33 = vld [vmem:[%s0 + $0x22] sm:$0xff]
  %38 = vrot.lane.b32.xlu0 %v26, 32
  %v39 = vpop.permute.xlu0 %38
  %40 = vrot.lane.b32.xlu0 %v27, 32
  %v41 = vpop.permute.xlu0 %40
  %42 = vrot.lane.b32.xlu0 %v28, 32
  %v43 = vpop.permute.xlu0 %42
  %44 = vrot.lane.b32.xlu0 %v29, 32
  %v45 = vpop.permute.xlu0 %44
  %54 = vrot.lane.b32.xlu0 %v30, 64
  %v55 = vpop.permute.xlu0 %54
  %56 = vrot.lane.b32.xlu0 %v31, 64
  %v57 = vpop.permute.xlu0 %56
  %58 = vrot.lane.b32.xlu0 %v32, 64
  %v59 = vpop.permute.xlu0 %58
  %60 = vrot.lane.b32.xlu0 %v33, 64
  %v61 = vpop.permute.xlu0 %60
  %vm66 = vcmask 261120
  %v67 = vsel %vm66, %v22, %v39
  %v68 = vsel %vm66, %v23, %v41
  %v69 = vsel %vm66, %v24, %v43
  %v70 = vsel %vm66, %v25, %v45
  %vm71 = vcmask 392192
  %v72 = vsel %vm71, %v67, %v39
  %v73 = vsel %vm71, %v68, %v41
  %v74 = vsel %vm71, %v69, %v43
  %v75 = vsel %vm71, %v70, %v45
  %vm76 = vcmask 523264
  %v77 = vsel %vm76, %v72, %v55
  %v78 = vsel %vm76, %v73, %v57
  %v79 = vsel %vm76, %v74, %v59
  %v80 = vsel %vm76, %v75, %v61
  %v81 = vpack.c.bf16 %v78, %v77
  %v82 = vpack.c.bf16 %v80, %v79
  %v83 = vld [vmem:[%s1] sm:$0xf]
  %v84 = vld [vmem:[%s1 + $0x4] sm:$0xf]
  %v85 = vld [vmem:[%s1 + $0x8] sm:$0xf]
  %v86 = vld [vmem:[%s1 + $0xc] sm:$0xf]
  %v87 = vld [vmem:[%s1 + $0x10] sm:$0xf]
  %v88 = vld [vmem:[%s1 + $0x14] sm:$0xf]
  %v89 = vld [vmem:[%s1 + $0x18] sm:$0xf]
  %v90 = vld [vmem:[%s1 + $0x1c] sm:$0xf]
  %v91 = vld [vmem:[%s1 + $0x20] sm:$0xf]
  %v92 = vld [vmem:[%s1 + $0x24] sm:$0xf]
  %v94 = vlaneseq
  %v95 = vshrl.u32 %v94, 7
  %v96 = vsub.s32 0, %v95
  %v97 = vrot.slane %v21, %v96
  %v109 = vunpack.c.l.b16 %v83
  %v110 = vunpack.c.l.b16 %v84
  %v111 = vunpack.c.l.b16 %v85
  %v112 = vunpack.c.l.b16 %v86
  %v113 = vunpack.c.l.b16 %v87
  %v114 = vunpack.c.l.b16 %v88
  %v115 = vunpack.c.l.b16 %v89
  %v116 = vunpack.c.l.b16 %v90
  %v117 = vunpack.c.l.b16 %v91
  %v118 = vunpack.c.l.b16 %v92
  %v119 = vpack.c.b16 %v110, %v109
  %v120 = vpack.c.b16 %v112, %v111
  %v121 = vpack.c.b16 %v114, %v113
  %v122 = vpack.c.b16 %v116, %v115
  %v123 = vpack.c.b16 %v118, %v117
  %vm129 = vcmask 654336
  %v131 = vsel %vm129, %v81, 0
  %v134 = vsel %vm129, %v82, 0
  %136 = vmatprep.subr.bf16.mxu0 0
  %137 = vmatpush1.bf16.msra.mxu0 0
  %138 = vmatprep.subr.bf16.mxu0 0
  %139 = vmatpush1.bf16.msra.mxu0 0
  %140 = vmatprep.subr.bf16.mxu0 0
  %141 = vmatpush1.bf16.msra.mxu0 0
  %142 = vmatprep.subr.bf16.mxu0 0
  %143 = vmatpush1.bf16.msra.mxu0 %v123
  %144 = vmatprep.subr.bf16.mxu0 0
  %145 = vmatpush1.bf16.msra.mxu0 %v122
  %146 = vmatprep.subr.bf16.mxu0 0
  %147 = vmatpush1.bf16.msra.mxu0 %v121
  %148 = vmatprep.subr.bf16.mxu0 0
  %149 = vmatpush1.bf16.msra.mxu0 %v120
  %150 = vmatprep.subr.bf16.mxu0 0
  %151 = vmatpush1.bf16.msra.mxu0 %v119
  %152 = vmatprep.subr.bf16.mxu0 0
  %153 = vmatpush2.bf16.msra.mxu0 0
  %154 = vmatprep.subr.bf16.mxu0 0
  %155 = vmatpush2.bf16.msra.mxu0 0
  %156 = vmatprep.subr.bf16.mxu0 0
  %157 = vmatpush2.bf16.msra.mxu0 0
  %158 = vmatprep.subr.bf16.mxu0 0
  %159 = vmatpush2.bf16.msra.mxu0 0
  %160 = vmatprep.subr.bf16.mxu0 0
  %161 = vmatpush2.bf16.msra.mxu0 0
  %162 = vmatprep.subr.bf16.mxu0 0
  %163 = vmatpush2.bf16.msra.mxu0 0
  %164 = vmatprep.subr.bf16.mxu0 0
  %165 = vmatpush2.bf16.msra.mxu0 0
  %166 = vmatprep.subr.bf16.mxu0 0
  %167 = vmatpush2.bf16.msra.mxu0 0
  %168 = vmatprep.mubr.bf16.mxu0 0
  %169 = vmatmul.mubr.bf16.gmra.mxu0 %v131
  %v170 = vpop.f32.mrf.mxu0
  %v171 = vadd.f32 %v97, %v170
  %v172 = vpop.f32.mrf.mxu0
  %v173 = vpop.f32.mrf.mxu0
  %v174 = vadd.f32 %v97, %v173
  %v175 = vpop.f32.mrf.mxu0
  %176 = vmatprep.mubr.bf16.mxu0 0
  %177 = vmatmul.mubr.bf16.gmra.mxu0 %v134
  %v178 = vpop.f32.mrf.mxu0
  %v179 = vadd.f32 %v97, %v178
  %v180 = vpop.f32.mrf.mxu0
  %v181 = vpop.f32.mrf.mxu0
  %v182 = vadd.f32 %v97, %v181
  %v183 = vpop.f32.mrf.mxu0
  %184 = vdwg.mxu0
  %vm185 = vcmp.ge.f32.partialorder %v171, 0.0
  %vm186 = vcmp.ge.f32.partialorder %v174, 0.0
  %vm187 = vcmp.ge.f32.partialorder %v179, 0.0
  %vm188 = vcmp.ge.f32.partialorder %v182, 0.0
  %v189 = vmul.f32 %v171, 0.2
  %v190 = vmul.f32 %v174, 0.2
  %v191 = vmul.f32 %v179, 0.2
  %v192 = vmul.f32 %v182, 0.2
  %v193 = vsel %vm185, %v171, %v189
  %v194 = vsel %vm186, %v174, %v190
  %v195 = vsel %vm187, %v179, %v191
  %v196 = vsel %vm188, %v182, %v192
  %v197 = vsel %vm66, %v193, 0.0
  %v198 = vsel %vm66, %v194, 0.0
  %v199 = vadd.f32 %v197, %v198
  %v200 = vsel %vm66, %v195, 0.0
  %v201 = vadd.f32 %v199, %v200
  %v202 = vsel %vm66, %v196, 0.0
  %v203 = vadd.f32 %v201, %v202
  %v204 = vrot.slane %v203, 4
  %v205 = vadd.f32 %v203, %v204
  %v206 = vrot.slane %v205, 2
  %v207 = vadd.f32 %v205, %v206
  %v208 = vrot.slane %v207, 1
  %v209 = vadd.f32 %v207, %v208
  %v210 = vrcp.pop 32.0
  %v211 = vmul.f32 %v209, %v210
  %v212 = vsub.f32 %v193, %v211
  %v213 = vsub.f32 %v194, %v211
  %v214 = vsub.f32 %v195, %v211
  %v215 = vsub.f32 %v196, %v211
  %v216 = vmul.f32 %v212, %v212
  %v217 = vmul.f32 %v213, %v213
  %v218 = vmul.f32 %v214, %v214
  %v219 = vmul.f32 %v215, %v215
  %v220 = vsel %vm66, %v216, 0.0
  %v221 = vsel %vm66, %v217, 0.0
  %v222 = vadd.f32 %v220, %v221
  %v223 = vsel %vm66, %v218, 0.0
  %v224 = vadd.f32 %v222, %v223
  %v225 = vsel %vm66, %v219, 0.0
  %v226 = vadd.f32 %v224, %v225
  %v227 = vrot.slane %v226, 4
  %v228 = vadd.f32 %v226, %v227
  %v229 = vrot.slane %v228, 2
  %v230 = vadd.f32 %v228, %v229
  %v231 = vrot.slane %v230, 1
  %v232 = vadd.f32 %v230, %v231
  %v233 = vmul.f32 %v232, %v210
  %v234 = vld [vmem:[%s3] sm:$0x1]
  %v235 = vadd.f32 %v233, 1e-05
  %v236 = vrsqrt.pop %v235
  %v237 = vmul.f32 %v234, %v236
  %v238 = vld [vmem:[%s4] sm:$0x1]
  %v239 = vmul.f32 %v211, %v237
  %v240 = vsub.f32 %v238, %v239
  %v242 = vlaneseq
  %v243 = vshrl.u32 %v242, 7
  %v244 = vsub.s32 0, %v243
  %v245 = vrot.slane %v237, %v244
  %v247 = vmul.f32 %v193, %v245
  %v248 = vmul.f32 %v194, %v245
  %v249 = vmul.f32 %v195, %v245
  %v250 = vmul.f32 %v196, %v245
  %v252 = vlaneseq
  %v253 = vshrl.u32 %v252, 7
  %v254 = vsub.s32 0, %v253
  %v255 = vrot.slane %v240, %v254
  %v257 = vadd.f32 %v247, %v255
  %v258 = vadd.f32 %v248, %v255
  %v259 = vadd.f32 %v249, %v255
  %v260 = vadd.f32 %v250, %v255
  %261 = vst.msk [vmem:[%s5] sm:$0xff] %vm66, %v257
  %262 = vst.msk [vmem:[%s5 + $0x8] sm:$0xff] %vm66, %v258
  %263 = vst.msk [vmem:[%s5 + $0x10] sm:$0xff] %vm66, %v259
  %264 = vst.msk [vmem:[%s5 + $0x18] sm:$0xff] %vm66, %v260
  // Predicated region
  $region22: #{_lambda_.3} parent=0 // pred_check
    _
  $region23: #{_lambda_.3} parent=0 // pred_check_branch
    %266 = sbr.rel (0) target = $region25
  $region24: #{_lambda_.3} parent=0 // pred_region
    _
  $region25: #{_lambda_.3} parent=0 // pred_fallthru
    _
  // Predicated region
  $region26: #{_lambda_.3} parent=0 // pred_check
    _
  $region27: #{_lambda_.3} parent=0 // pred_check_branch
    %268 = sbr.rel (0) target = $region29
  $region28: #{_lambda_.3} parent=0 // pred_region
    _
  $region29: #{_lambda_.3} parent=0 // pred_fallthru
    _

// kernel: _lambda_.4
$region0: #{_lambda_.4}
  #allocation0 [shape = 'u32[]', space=smem, size = 0x4, offset = 0x4, fixed_abs, tag = 'smem constant byte address 0x4 - core index']
  #allocation1 [shape = 'u32[144,128]{1,0:T(1,128)}', space=vmem, size = 0x12000, scoped, tag = 'internal scratch']
  %s0 = inlined_call_operand.vmem [shape: f32[2,10,64], index: 0, kind: input, shape index: {}]
  %s1 = inlined_call_operand.vmem [shape: bf16[160,32], index: 1, kind: input, shape index: {}]
  %s2 = inlined_call_operand.vmem [shape: f32[1,32], index: 2, kind: input, shape index: {}]
  %s3 = inlined_call_operand.vmem [shape: f32[1,32], index: 3, kind: input, shape index: {}]
  %s4 = inlined_call_operand.vmem [shape: f32[1,32], index: 4, kind: input, shape index: {}]
  %s5 = inlined_call_operand.vmem [shape: f32[2,8,32], index: 5, kind: output, shape index: {}]
  %s6 = sld [smem:[#allocation0]]
  $region30: #{_lambda_.4} parent=0
    _
  %s8 = ssub.s32 1, %s6
  %s9 = scalar_select 0, %s8, %s6
  // Predicated region
  $region2: #{_lambda_.4} parent=0 // pred_check
    _
  $region3: #{_lambda_.4} parent=0 // pred_check_branch
    %11 = sbr.rel (0) target = $region5
  $region4: #{_lambda_.4} parent=0 // pred_region
    _
  $region5: #{_lambda_.4} parent=0 // pred_fallthru
    _
  // Predicated region
  $region6: #{_lambda_.4} parent=0 // pred_check
    _
  $region7: #{_lambda_.4} parent=0 // pred_check_branch
    %13 = sbr.rel (0) target = $region9
  $region8: #{_lambda_.4} parent=0 // pred_region
    _
  $region9: #{_lambda_.4} parent=0 // pred_fallthru
    _
  // Predicated region
  $region10: #{_lambda_.4} parent=0 // pred_check
    _
  $region11: #{_lambda_.4} parent=0 // pred_check_branch
    %15 = sbr.rel (0) target = $region13
  $region12: #{_lambda_.4} parent=0 // pred_region
    _
  $region13: #{_lambda_.4} parent=0 // pred_fallthru
    _
  // Predicated region
  $region14: #{_lambda_.4} parent=0 // pred_check
    _
  $region15: #{_lambda_.4} parent=0 // pred_check_branch
    %17 = sbr.rel (0) target = $region17
  $region16: #{_lambda_.4} parent=0 // pred_region
    _
  $region17: #{_lambda_.4} parent=0 // pred_fallthru
    _
  // Predicated region
  $region18: #{_lambda_.4} parent=0 // pred_check
    _
  $region19: #{_lambda_.4} parent=0 // pred_check_branch
    %19 = sbr.rel (0) target = $region21
  $region20: #{_lambda_.4} parent=0 // pred_region
    _
  $region21: #{_lambda_.4} parent=0 // pred_fallthru
    _
  %v21 = vld [vmem:[%s2] sm:$0x1]
  %v22 = vld [vmem:[%s0] sm:$0xff]
  %v23 = vld [vmem:[%s0 + $0x10] sm:$0xff]
  %v24 = vld [vmem:[%s0 + $0x1] sm:$0xff]
  %v25 = vld [vmem:[%s0 + $0x11] sm:$0xff]
  %v26 = vld [vmem:[%s0 + $0x2] sm:$0xff]
  %v27 = vld [vmem:[%s0 + $0x12] sm:$0xff]
  %30 = vrot.lane.b32.xlu0 %v24, 64
  %v31 = vpop.permute.xlu0 %30
  %32 = vrot.lane.b32.xlu0 %v25, 64
  %v33 = vpop.permute.xlu0 %32
  %vm36 = vcmask 261120
  %vm37 = vcmask 523264
  %v38 = vsel %vm37, %v22, %v31
  %v39 = vsel %vm37, %v23, %v33
  %vm40 = vcmask 785408
  %v41 = vsel %vm40, %v38, %v31
  %v42 = vsel %vm40, %v39, %v33
  %v43 = vpack.c.bf16 %v42, %v41
  %v44 = vpack.c.bf16 %v27, %v26
  %v45 = vld [vmem:[%s1] sm:$0xf]
  %v46 = vld [vmem:[%s1 + $0x4] sm:$0xf]
  %v47 = vld [vmem:[%s1 + $0x8] sm:$0xf]
  %v48 = vld [vmem:[%s1 + $0xc] sm:$0xf]
  %v49 = vld [vmem:[%s1 + $0x10] sm:$0xf]
  %v50 = vld [vmem:[%s1 + $0x14] sm:$0xf]
  %v51 = vld [vmem:[%s1 + $0x18] sm:$0xf]
  %v52 = vld [vmem:[%s1 + $0x1c] sm:$0xf]
  %v53 = vld [vmem:[%s1 + $0x20] sm:$0xf]
  %v54 = vld [vmem:[%s1 + $0x24] sm:$0xf]
  %v55 = vld [vmem:[%s1 + $0x28] sm:$0xf]
  %v56 = vld [vmem:[%s1 + $0x2c] sm:$0xf]
  %v57 = vld [vmem:[%s1 + $0x30] sm:$0xf]
  %v58 = vld [vmem:[%s1 + $0x34] sm:$0xf]
  %v59 = vld [vmem:[%s1 + $0x38] sm:$0xf]
  %v60 = vld [vmem:[%s1 + $0x3c] sm:$0xf]
  %v61 = vld [vmem:[%s1 + $0x40] sm:$0xf]
  %v62 = vld [vmem:[%s1 + $0x44] sm:$0xf]
  %v63 = vld [vmem:[%s1 + $0x48] sm:$0xf]
  %v64 = vld [vmem:[%s1 + $0x4c] sm:$0xf]
  %v66 = vlaneseq
  %v67 = vshrl.u32 %v66, 7
  %v68 = vsub.s32 0, %v67
  %v69 = vrot.slane %v21, %v68
  %v91 = vunpack.c.l.b16 %v45
  %v92 = vunpack.c.l.b16 %v46
  %v93 = vunpack.c.l.b16 %v47
  %v94 = vunpack.c.l.b16 %v48
  %v95 = vunpack.c.l.b16 %v49
  %v96 = vunpack.c.l.b16 %v50
  %v97 = vunpack.c.l.b16 %v51
  %v98 = vunpack.c.l.b16 %v52
  %v99 = vunpack.c.l.b16 %v53
  %v100 = vunpack.c.l.b16 %v54
  %v101 = vunpack.c.l.b16 %v55
  %v102 = vunpack.c.l.b16 %v56
  %v103 = vunpack.c.l.b16 %v57
  %v104 = vunpack.c.l.b16 %v58
  %v105 = vunpack.c.l.b16 %v59
  %v106 = vunpack.c.l.b16 %v60
  %v107 = vunpack.c.l.b16 %v61
  %v108 = vunpack.c.l.b16 %v62
  %v109 = vunpack.c.l.b16 %v63
  %v110 = vunpack.c.l.b16 %v64
  %v111 = vpack.c.b16 %v92, %v91
  %v112 = vpack.c.b16 %v94, %v93
  %v113 = vpack.c.b16 %v96, %v95
  %v114 = vpack.c.b16 %v98, %v97
  %v115 = vpack.c.b16 %v100, %v99
  %v116 = vpack.c.b16 %v102, %v101
  %v117 = vpack.c.b16 %v104, %v103
  %v118 = vpack.c.b16 %v106, %v105
  %v119 = vpack.c.b16 %v108, %v107
  %v120 = vpack.c.b16 %v110, %v109
  %v132 = vsel %vm36, %v44, 0
  %134 = vmatprep.subr.bf16.mxu0 0
  %135 = vmatpush1.bf16.msra.mxu0 %v118
  %136 = vmatprep.subr.bf16.mxu0 0
  %137 = vmatpush1.bf16.msra.mxu0 %v117
  %138 = vmatprep.subr.bf16.mxu0 0
  %139 = vmatpush1.bf16.msra.mxu0 %v116
  %140 = vmatprep.subr.bf16.mxu0 0
  %141 = vmatpush1.bf16.msra.mxu0 %v115
  %142 = vmatprep.subr.bf16.mxu0 0
  %143 = vmatpush1.bf16.msra.mxu0 %v114
  %144 = vmatprep.subr.bf16.mxu0 0
  %145 = vmatpush1.bf16.msra.mxu0 %v113
  %146 = vmatprep.subr.bf16.mxu0 0
  %147 = vmatpush1.bf16.msra.mxu0 %v112
  %148 = vmatprep.subr.bf16.mxu0 0
  %149 = vmatpush1.bf16.msra.mxu0 %v111
  %150 = vmatprep.subr.bf16.mxu0 0
  %151 = vmatpush2.bf16.msra.mxu0 0
  %152 = vmatprep.subr.bf16.mxu0 0
  %153 = vmatpush2.bf16.msra.mxu0 0
  %154 = vmatprep.subr.bf16.mxu0 0
  %155 = vmatpush2.bf16.msra.mxu0 0
  %156 = vmatprep.subr.bf16.mxu0 0
  %157 = vmatpush2.bf16.msra.mxu0 0
  %158 = vmatprep.subr.bf16.mxu0 0
  %159 = vmatpush2.bf16.msra.mxu0 0
  %160 = vmatprep.subr.bf16.mxu0 0
  %161 = vmatpush2.bf16.msra.mxu0 0
  %162 = vmatprep.subr.bf16.mxu0 0
  %163 = vmatpush2.bf16.msra.mxu0 %v120
  %164 = vmatprep.subr.bf16.mxu0 0
  %165 = vmatpush2.bf16.msra.mxu0 %v119
  %166 = vmatprep.mubr.bf16.mxu0 %v132
  %167 = vmatmul.mubr.bf16.gmra.mxu0 %v43
  %v168 = vpop.f32.mrf.mxu0
  %v169 = vadd.f32 %v69, %v168
  %v170 = vpop.f32.mrf.mxu0
  %v171 = vpop.f32.mrf.mxu0
  %v172 = vadd.f32 %v69, %v171
  %v173 = vpop.f32.mrf.mxu0
  %174 = vdwg.mxu0
  %vm175 = vcmp.ge.f32.partialorder %v169, 0.0
  %vm176 = vcmp.ge.f32.partialorder %v172, 0.0
  %v177 = vmul.f32 %v169, 0.2
  %v178 = vmul.f32 %v172, 0.2
  %v179 = vsel %vm175, %v169, %v177
  %v180 = vsel %vm176, %v172, %v178
  %183 = vrot.lane.b32.xlu0 %v22, 96
  %v184 = vpop.permute.xlu0 %183
  %185 = vrot.lane.b32.xlu0 %v23, 96
  %v186 = vpop.permute.xlu0 %185
  %189 = vrot.lane.b32.xlu0 %v24, 32
  %v190 = vpop.permute.xlu0 %189
  %191 = vrot.lane.b32.xlu0 %v25, 32
  %v192 = vpop.permute.xlu0 %191
  %197 = vrot.lane.b32.xlu0 %v26, 96
  %v198 = vpop.permute.xlu0 %197
  %199 = vrot.lane.b32.xlu0 %v27, 96
  %v200 = vpop.permute.xlu0 %199
  %v203 = vsel %vm36, %v184, %v190
  %v204 = vsel %vm36, %v186, %v192
  %v205 = vsel %vm37, %v203, %v190
  %v206 = vsel %vm37, %v204, %v192
  %v207 = vsel %vm40, %v205, %v198
  %v208 = vsel %vm40, %v206, %v200
  %v209 = vpack.c.bf16 %v208, %v207
  %v210 = vpack.c.bf16 %v200, %v198
  %v212 = vsel %vm36, %v210, 0
  %214 = vmatprep.subr.bf16.mxu0 0
  %215 = vmatpush1.bf16.msra.mxu0 %v118
  %216 = vmatprep.subr.bf16.mxu0 0
  %217 = vmatpush1.bf16.msra.mxu0 %v117
  %218 = vmatprep.subr.bf16.mxu0 0
  %219 = vmatpush1.bf16.msra.mxu0 %v116
  %220 = vmatprep.subr.bf16.mxu0 0
  %221 = vmatpush1.bf16.msra.mxu0 %v115
  %222 = vmatprep.subr.bf16.mxu0 0
  %223 = vmatpush1.bf16.msra.mxu0 %v114
  %224 = vmatprep.subr.bf16.mxu0 0
  %225 = vmatpush1.bf16.msra.mxu0 %v113
  %226 = vmatprep.subr.bf16.mxu0 0
  %227 = vmatpush1.bf16.msra.mxu0 %v112
  %228 = vmatprep.subr.bf16.mxu0 0
  %229 = vmatpush1.bf16.msra.mxu0 %v111
  %230 = vmatprep.subr.bf16.mxu0 0
  %231 = vmatpush2.bf16.msra.mxu0 0
  %232 = vmatprep.subr.bf16.mxu0 0
  %233 = vmatpush2.bf16.msra.mxu0 0
  %234 = vmatprep.subr.bf16.mxu0 0
  %235 = vmatpush2.bf16.msra.mxu0 0
  %236 = vmatprep.subr.bf16.mxu0 0
  %237 = vmatpush2.bf16.msra.mxu0 0
  %238 = vmatprep.subr.bf16.mxu0 0
  %239 = vmatpush2.bf16.msra.mxu0 0
  %240 = vmatprep.subr.bf16.mxu0 0
  %241 = vmatpush2.bf16.msra.mxu0 0
  %242 = vmatprep.subr.bf16.mxu0 0
  %243 = vmatpush2.bf16.msra.mxu0 %v120
  %244 = vmatprep.subr.bf16.mxu0 0
  %245 = vmatpush2.bf16.msra.mxu0 %v119
  %246 = vmatprep.mubr.bf16.mxu0 %v212
  %247 = vmatmul.mubr.bf16.gmra.mxu0 %v209
  %v248 = vpop.f32.mrf.mxu0
  %v249 = vadd.f32 %v69, %v248
  %v250 = vpop.f32.mrf.mxu0
  %v251 = vpop.f32.mrf.mxu0
  %v252 = vadd.f32 %v69, %v251
  %v253 = vpop.f32.mrf.mxu0
  %254 = vdwg.mxu0
  %vm255 = vcmp.ge.f32.partialorder %v249, 0.0
  %vm256 = vcmp.ge.f32.partialorder %v252, 0.0
  %v257 = vmul.f32 %v249, 0.2
  %v258 = vmul.f32 %v252, 0.2
  %v259 = vsel %vm255, %v249, %v257
  %v260 = vsel %vm256, %v252, %v258
  %v261 = vsel %vm36, %v179, 0.0
  %v262 = vsel %vm36, %v180, 0.0
  %v263 = vadd.f32 %v261, %v262
  %v264 = vsel %vm36, %v259, 0.0
  %v265 = vadd.f32 %v263, %v264
  %v266 = vsel %vm36, %v260, 0.0
  %v267 = vadd.f32 %v265, %v266
  %v268 = vrot.slane %v267, 4
  %v269 = vadd.f32 %v267, %v268
  %v270 = vrot.slane %v269, 2
  %v271 = vadd.f32 %v269, %v270
  %v272 = vrot.slane %v271, 1
  %v273 = vadd.f32 %v271, %v272
  %v274 = vrcp.pop 32.0
  %v275 = vmul.f32 %v273, %v274
  %v276 = vsub.f32 %v179, %v275
  %v277 = vsub.f32 %v180, %v275
  %v278 = vsub.f32 %v259, %v275
  %v279 = vsub.f32 %v260, %v275
  %v280 = vmul.f32 %v276, %v276
  %v281 = vmul.f32 %v277, %v277
  %v282 = vmul.f32 %v278, %v278
  %v283 = vmul.f32 %v279, %v279
  %v284 = vsel %vm36, %v280, 0.0
  %v285 = vsel %vm36, %v281, 0.0
  %v286 = vadd.f32 %v284, %v285
  %v287 = vsel %vm36, %v282, 0.0
  %v288 = vadd.f32 %v286, %v287
  %v289 = vsel %vm36, %v283, 0.0
  %v290 = vadd.f32 %v288, %v289
  %v291 = vrot.slane %v290, 4
  %v292 = vadd.f32 %v290, %v291
  %v293 = vrot.slane %v292, 2
  %v294 = vadd.f32 %v292, %v293
  %v295 = vrot.slane %v294, 1
  %v296 = vadd.f32 %v294, %v295
  %v297 = vmul.f32 %v296, %v274
  %v298 = vld [vmem:[%s3] sm:$0x1]
  %v299 = vadd.f32 %v297, 1e-05
  %v300 = vrsqrt.pop %v299
  %v301 = vmul.f32 %v298, %v300
  %v302 = vld [vmem:[%s4] sm:$0x1]
  %v303 = vmul.f32 %v275, %v301
  %v304 = vsub.f32 %v302, %v303
  %v306 = vlaneseq
  %v307 = vshrl.u32 %v306, 7
  %v308 = vsub.s32 0, %v307
  %v309 = vrot.slane %v301, %v308
  %v311 = vmul.f32 %v179, %v309
  %v312 = vmul.f32 %v180, %v309
  %v314 = vlaneseq
  %v315 = vshrl.u32 %v314, 7
  %v316 = vsub.s32 0, %v315
  %v317 = vrot.slane %v304, %v316
  %v319 = vadd.f32 %v311, %v317
  %v320 = vadd.f32 %v312, %v317
  %v321 = vmul.f32 %v259, %v309
  %v322 = vmul.f32 %v260, %v309
  %v323 = vadd.f32 %v321, %v317
  %v324 = vadd.f32 %v322, %v317
  %v325 = vmax.f32 %v319, %v323
  %v326 = vmax.f32 %v320, %v324
  %327 = vst.msk [vmem:[%s5] sm:$0xff] %vm36, %v325
  %328 = vst.msk [vmem:[%s5 + $0x8] sm:$0xff] %vm36, %v326
  // Predicated region
  $region22: #{_lambda_.4} parent=0 // pred_check
    _
  $region23: #{_lambda_.4} parent=0 // pred_check_branch
    %330 = sbr.rel (0) target = $region25
  $region24: #{_lambda_.4} parent=0 // pred_region
    _
  $region25: #{_lambda_.4} parent=0 // pred_fallthru
    _
  // Predicated region
  $region26: #{_lambda_.4} parent=0 // pred_check
    _
  $region27: #{_lambda_.4} parent=0 // pred_check_branch
    %332 = sbr.rel (0) target = $region29
  $region28: #{_lambda_.4} parent=0 // pred_region
    _
  $region29: #{_lambda_.4} parent=0 // pred_fallthru
    _

// kernel: _lambda_.5
$region0: #{_lambda_.5}
  #allocation0 [shape = 'u32[]', space=smem, size = 0x4, offset = 0x4, fixed_abs, tag = 'smem constant byte address 0x4 - core index']
  #allocation1 [shape = 'u32[144,128]{1,0:T(1,128)}', space=vmem, size = 0x12000, scoped, tag = 'internal scratch']
  #allocation2 [shape = 'f32[16,32]{1,0:T(8,128)}', space=vmem, size = 0x2000, scoped, tag = 'scratch operand']
  %s0 = inlined_call_operand.vmem [shape: f32[16,32], index: 0, kind: input, shape index: {}]
  %s1 = inlined_call_operand.vmem [shape: bf16[32,32], index: 1, kind: input, shape index: {}]
  %s2 = inlined_call_operand.vmem [shape: f32[1,32], index: 2, kind: input, shape index: {}]
  %s3 = inlined_call_operand.vmem [shape: f32[16,32], index: 3, kind: input, shape index: {}]
  %s4 = inlined_call_operand.vmem [shape: bf16[2,32,96], index: 4, kind: input, shape index: {}]
  %s5 = inlined_call_operand.vmem [shape: f32[2,1,96], index: 5, kind: input, shape index: {}]
  %s6 = inlined_call_operand.vmem [shape: bf16[2,32,32], index: 6, kind: input, shape index: {}]
  %s7 = inlined_call_operand.vmem [shape: f32[2,1,32], index: 7, kind: input, shape index: {}]
  %s8 = inlined_call_operand.vmem [shape: f32[2,1,32], index: 8, kind: input, shape index: {}]
  %s9 = inlined_call_operand.vmem [shape: f32[2,1,32], index: 9, kind: input, shape index: {}]
  %s10 = inlined_call_operand.vmem [shape: bf16[2,32,64], index: 10, kind: input, shape index: {}]
  %s11 = inlined_call_operand.vmem [shape: f32[2,1,64], index: 11, kind: input, shape index: {}]
  %s12 = inlined_call_operand.vmem [shape: bf16[2,64,32], index: 12, kind: input, shape index: {}]
  %s13 = inlined_call_operand.vmem [shape: f32[2,1,32], index: 13, kind: input, shape index: {}]
  %s14 = inlined_call_operand.vmem [shape: f32[2,1,32], index: 14, kind: input, shape index: {}]
  %s15 = inlined_call_operand.vmem [shape: f32[2,1,32], index: 15, kind: input, shape index: {}]
  %s16 = inlined_call_operand.hbm [shape: f32[16,32], index: 16, kind: output, shape index: {}]
  %s17 = sld [smem:[#allocation0]]
  $region101: #{_lambda_.5} parent=0
    _
  %s19 = ssub.s32 1, %s17
  %s20 = scalar_select 0, %s19, %s17
  $region1: #{_lambda_.5} parent=0
    #allocation3 [shape = 'u8[8192]{0}', space=vmem, size = 0x2000, scoped, tag = 'output window, operand 0, single buffered']
    #allocation4 [shape = 's32[2]{0}', space=sflag, size = 0x8, scoped, tag = 'scoped memory for _lambda_.5']
    %21 = vsyncpa [#allocation4], 0
    loop: start=0, step=1, limit=4
    $region2: #{_lambda_.5} parent=1 // loop_pre_header
      _
    $region3: #{_lambda_.5} parent=1 // loop_header
      %s23 = sphi 0, %s27
      %p24 = scmp.ge.s32.totalorder %s23, 4
      %s31 = sphi 0, %s31
      %s33 = sphi 0, %s31
      %s34 = sphi 0, %s33
      %s48 = sphi 0, %s34
      %s52 = sphi 0, %s52
      %s54 = sphi 0, %s52
      %s55 = sphi 0, %s54
      %s69 = sphi 0, %s55
      %s73 = sphi 0, %s73
      %s75 = sphi 0, %s73
      %s76 = sphi 0, %s75
      %s90 = sphi 0, %s76
      %s94 = sphi 0, %s94
      %s96 = sphi 0, %s94
      %s97 = sphi 0, %s96
      %s111 = sphi 0, %s97
      %s117 = sphi 0, %s119
      %s120 = sphi 0, %s117
      %s121 = sphi 0, %s120
      %s137 = sphi 0, %s121
      %s143 = sphi 0, %s145
      %s146 = sphi 0, %s143
      %s147 = sphi 0, %s146
      %s163 = sphi 0, %s147
      %s169 = sphi 0, %s171
      %s172 = sphi 0, %s169
      %s173 = sphi 0, %s172
      %s189 = sphi 0, %s173
      %s195 = sphi 0, %s197
      %s198 = sphi 0, %s195
      %s199 = sphi 0, %s198
      %s215 = sphi 0, %s199
      %s221 = sphi 0, %s223
      %s224 = sphi 0, %s221
      %s225 = sphi 0, %s224
      %s241 = sphi 0, %s225
      %s247 = sphi 0, %s249
      %s250 = sphi 0, %s247
      %s251 = sphi 0, %s250
      %s267 = sphi 0, %s251
      %s273 = sphi 0, %s275
      %s276 = sphi 0, %s273
      %s277 = sphi 0, %s276
      %s293 = sphi 0, %s277
      %s299 = sphi 0, %s301
      %s302 = sphi 0, %s299
      %s303 = sphi 0, %s302
      %s319 = sphi 0, %s303
      %s325 = sphi 0, %s327
      %s328 = sphi 0, %s325
      %s329 = sphi 0, %s328
      %s345 = sphi 0, %s329
      %s351 = sphi 0, %s353
      %s354 = sphi 0, %s351
      %s355 = sphi 0, %s354
      %s371 = sphi 0, %s355
      %s377 = sphi 0, %s379
      %s380 = sphi 0, %s377
      %s381 = sphi 0, %s380
      %s397 = sphi 0, %s381
      %s403 = sphi 0, %s405
      %s406 = sphi 0, %s403
      %s407 = sphi 0, %s406
      %s423 = sphi 0, %s407
      %s427 = sphi 0, %s427
      %s429 = sphi 0, %s427
      %s430 = sphi 0, %s429
      %s444 = sphi 0, %s430
    $region4: #{_lambda_.5} parent=1 // loop_header_branch
      %26 = sbr.rel (%p24) target = $region8
    $region5: #{_lambda_.5} parent=1 // loop_body
      %s28 = ssub.s32 %s23, 1
      %s29 = ssub.s32 %s23, 2
      %s30 = sadd.s32 %s23, 1
      %s32 = sadd.s32 %s31, 1
      %p35 = scmp.eq.s32.totalorder %s23, 1
      %p36 = scmp.ne.s32.totalorder %s31, %s33
      %p37 = scmp.eq.s32.totalorder %s23, 0
      %p38 = por %p36, %p37
      %p39 = scmp.ne.s32.totalorder %s31, %s33
      %p40 = scmp.eq.s32.totalorder %s28, 1
      %p41 = por %p39, %p40
      %p42 = scmp.ne.s32.totalorder %s33, %s34
      %p43 = scmp.eq.s32.totalorder %s28, 0
      %p44 = por %p42, %p43
      %p45 = scmp.ne.s32.totalorder %s33, %s34
      %p46 = scmp.eq.s32.totalorder %s29, 1
      %p47 = por %p45, %p46
      %p49 = scmp.ne.s32.totalorder %s34, %s48
      %p50 = scmp.eq.s32.totalorder %s29, 0
      %p51 = por %p49, %p50
      %s53 = sadd.s32 %s52, 1
      %p56 = scmp.eq.s32.totalorder %s23, 1
      %p57 = scmp.ne.s32.totalorder %s52, %s54
      %p58 = scmp.eq.s32.totalorder %s23, 0
      %p59 = por %p57, %p58
      %p60 = scmp.ne.s32.totalorder %s52, %s54
      %p61 = scmp.eq.s32.totalorder %s28, 1
      %p62 = por %p60, %p61
      %p63 = scmp.ne.s32.totalorder %s54, %s55
      %p64 = scmp.eq.s32.totalorder %s28, 0
      %p65 = por %p63, %p64
      %p66 = scmp.ne.s32.totalorder %s54, %s55
      %p67 = scmp.eq.s32.totalorder %s29, 1
      %p68 = por %p66, %p67
      %p70 = scmp.ne.s32.totalorder %s55, %s69
      %p71 = scmp.eq.s32.totalorder %s29, 0
      %p72 = por %p70, %p71
      %s74 = sadd.s32 %s73, 1
      %p77 = scmp.eq.s32.totalorder %s23, 1
      %p78 = scmp.ne.s32.totalorder %s73, %s75
      %p79 = scmp.eq.s32.totalorder %s23, 0
      %p80 = por %p78, %p79
      %p81 = scmp.ne.s32.totalorder %s73, %s75
      %p82 = scmp.eq.s32.totalorder %s28, 1
      %p83 = por %p81, %p82
      %p84 = scmp.ne.s32.totalorder %s75, %s76
      %p85 = scmp.eq.s32.totalorder %s28, 0
      %p86 = por %p84, %p85
      %p87 = scmp.ne.s32.totalorder %s75, %s76
      %p88 = scmp.eq.s32.totalorder %s29, 1
      %p89 = por %p87, %p88
      %p91 = scmp.ne.s32.totalorder %s76, %s90
      %p92 = scmp.eq.s32.totalorder %s29, 0
      %p93 = por %p91, %p92
      %s95 = sadd.s32 %s94, 1
      %p98 = scmp.eq.s32.totalorder %s23, 1
      %p99 = scmp.ne.s32.totalorder %s94, %s96
      %p100 = scmp.eq.s32.totalorder %s23, 0
      %p101 = por %p99, %p100
      %p102 = scmp.ne.s32.totalorder %s94, %s96
      %p103 = scmp.eq.s32.totalorder %s28, 1
      %p104 = por %p102, %p103
      %p105 = scmp.ne.s32.totalorder %s96, %s97
      %p106 = scmp.eq.s32.totalorder %s28, 0
      %p107 = por %p105, %p106
      %p108 = scmp.ne.s32.totalorder %s96, %s97
      %p109 = scmp.eq.s32.totalorder %s29, 1
      %p110 = por %p108, %p109
      %p112 = scmp.ne.s32.totalorder %s97, %s111
      %p113 = scmp.eq.s32.totalorder %s29, 0
      %p114 = por %p112, %p113
      %s115 = ssub.s32 %s23, %s30
      %p116 = scmp.eq.s32.totalorder %s115, 0
      %s118 = sadd.s32 %s117, 1
      %s119 = scalar_select %p116, %s117, %s118
      %p122 = pneg %p116
      %p123 = scmp.eq.s32.totalorder %s23, 1
      %p124 = por %p122, %p123
      %p125 = scmp.ne.s32.totalorder %s117, %s120
      %p126 = scmp.eq.s32.totalorder %s23, 0
      %p127 = por %p125, %p126
      %p128 = scmp.ne.s32.totalorder %s117, %s120
      %p129 = scmp.eq.s32.totalorder %s28, 1
      %p130 = por %p128, %p129
      %p131 = scmp.ne.s32.totalorder %s120, %s121
      %p132 = scmp.eq.s32.totalorder %s28, 0
      %p133 = por %p131, %p132
      %p134 = scmp.ne.s32.totalorder %s120, %s121
      %p135 = scmp.eq.s32.totalorder %s29, 1
      %p136 = por %p134, %p135
      %p138 = scmp.ne.s32.totalorder %s121, %s137
      %p139 = scmp.eq.s32.totalorder %s29, 0
      %p140 = por %p138, %p139
      %s141 = ssub.s32 %s23, %s30
      %p142 = scmp.eq.s32.totalorder %s141, 0
      %s144 = sadd.s32 %s143, 1
      %s145 = scalar_select %p142, %s143, %s144
      %p148 = pneg %p142
      %p149 = scmp.eq.s32.totalorder %s23, 1
      %p150 = por %p148, %p149
      %p151 = scmp.ne.s32.totalorder %s143, %s146
      %p152 = scmp.eq.s32.totalorder %s23, 0
      %p153 = por %p151, %p152
      %p154 = scmp.ne.s32.totalorder %s143, %s146
      %p155 = scmp.eq.s32.totalorder %s28, 1
      %p156 = por %p154, %p155
      %p157 = scmp.ne.s32.totalorder %s146, %s147
      %p158 = scmp.eq.s32.totalorder %s28, 0
      %p159 = por %p157, %p158
      %p160 = scmp.ne.s32.totalorder %s146, %s147
      %p161 = scmp.eq.s32.totalorder %s29, 1
      %p162 = por %p160, %p161
      %p164 = scmp.ne.s32.totalorder %s147, %s163
      %p165 = scmp.eq.s32.totalorder %s29, 0
      %p166 = por %p164, %p165
      %s167 = ssub.s32 %s23, %s30
      %p168 = scmp.eq.s32.totalorder %s167, 0
      %s170 = sadd.s32 %s169, 1
      %s171 = scalar_select %p168, %s169, %s170
      %p174 = pneg %p168
      %p175 = scmp.eq.s32.totalorder %s23, 1
      %p176 = por %p174, %p175
      %p177 = scmp.ne.s32.totalorder %s169, %s172
      %p178 = scmp.eq.s32.totalorder %s23, 0
      %p179 = por %p177, %p178
      %p180 = scmp.ne.s32.totalorder %s169, %s172
      %p181 = scmp.eq.s32.totalorder %s28, 1
      %p182 = por %p180, %p181
      %p183 = scmp.ne.s32.totalorder %s172, %s173
      %p184 = scmp.eq.s32.totalorder %s28, 0
      %p185 = por %p183, %p184
      %p186 = scmp.ne.s32.totalorder %s172, %s173
      %p187 = scmp.eq.s32.totalorder %s29, 1
      %p188 = por %p186, %p187
      %p190 = scmp.ne.s32.totalorder %s173, %s189
      %p191 = scmp.eq.s32.totalorder %s29, 0
      %p192 = por %p190, %p191
      %s193 = ssub.s32 %s23, %s30
      %p194 = scmp.eq.s32.totalorder %s193, 0
      %s196 = sadd.s32 %s195, 1
      %s197 = scalar_select %p194, %s195, %s196
      %p200 = pneg %p194
      %p201 = scmp.eq.s32.totalorder %s23, 1
      %p202 = por %p200, %p201
      %p203 = scmp.ne.s32.totalorder %s195, %s198
      %p204 = scmp.eq.s32.totalorder %s23, 0
      %p205 = por %p203, %p204
      %p206 = scmp.ne.s32.totalorder %s195, %s198
      %p207 = scmp.eq.s32.totalorder %s28, 1
      %p208 = por %p206, %p207
      %p209 = scmp.ne.s32.totalorder %s198, %s199
      %p210 = scmp.eq.s32.totalorder %s28, 0
      %p211 = por %p209, %p210
      %p212 = scmp.ne.s32.totalorder %s198, %s199
      %p213 = scmp.eq.s32.totalorder %s29, 1
      %p214 = por %p212, %p213
      %p216 = scmp.ne.s32.totalorder %s199, %s215
      %p217 = scmp.eq.s32.totalorder %s29, 0
      %p218 = por %p216, %p217
      %s219 = ssub.s32 %s23, %s30
      %p220 = scmp.eq.s32.totalorder %s219, 0
      %s222 = sadd.s32 %s221, 1
      %s223 = scalar_select %p220, %s221, %s222
      %p226 = pneg %p220
      %p227 = scmp.eq.s32.totalorder %s23, 1
      %p228 = por %p226, %p227
      %p229 = scmp.ne.s32.totalorder %s221, %s224
      %p230 = scmp.eq.s32.totalorder %s23, 0
      %p231 = por %p229, %p230
      %p232 = scmp.ne.s32.totalorder %s221, %s224
      %p233 = scmp.eq.s32.totalorder %s28, 1
      %p234 = por %p232, %p233
      %p235 = scmp.ne.s32.totalorder %s224, %s225
      %p236 = scmp.eq.s32.totalorder %s28, 0
      %p237 = por %p235, %p236
      %p238 = scmp.ne.s32.totalorder %s224, %s225
      %p239 = scmp.eq.s32.totalorder %s29, 1
      %p240 = por %p238, %p239
      %p242 = scmp.ne.s32.totalorder %s225, %s241
      %p243 = scmp.eq.s32.totalorder %s29, 0
      %p244 = por %p242, %p243
      %s245 = ssub.s32 %s23, %s30
      %p246 = scmp.eq.s32.totalorder %s245, 0
      %s248 = sadd.s32 %s247, 1
      %s249 = scalar_select %p246, %s247, %s248
      %p252 = pneg %p246
      %p253 = scmp.eq.s32.totalorder %s23, 1
      %p254 = por %p252, %p253
      %p255 = scmp.ne.s32.totalorder %s247, %s250
      %p256 = scmp.eq.s32.totalorder %s23, 0
      %p257 = por %p255, %p256
      %p258 = scmp.ne.s32.totalorder %s247, %s250
      %p259 = scmp.eq.s32.totalorder %s28, 1
      %p260 = por %p258, %p259
      %p261 = scmp.ne.s32.totalorder %s250, %s251
      %p262 = scmp.eq.s32.totalorder %s28, 0
      %p263 = por %p261, %p262
      %p264 = scmp.ne.s32.totalorder %s250, %s251
      %p265 = scmp.eq.s32.totalorder %s29, 1
      %p266 = por %p264, %p265
      %p268 = scmp.ne.s32.totalorder %s251, %s267
      %p269 = scmp.eq.s32.totalorder %s29, 0
      %p270 = por %p268, %p269
      %s271 = ssub.s32 %s23, %s30
      %p272 = scmp.eq.s32.totalorder %s271, 0
      %s274 = sadd.s32 %s273, 1
      %s275 = scalar_select %p272, %s273, %s274
      %p278 = pneg %p272
      %p279 = scmp.eq.s32.totalorder %s23, 1
      %p280 = por %p278, %p279
      %p281 = scmp.ne.s32.totalorder %s273, %s276
      %p282 = scmp.eq.s32.totalorder %s23, 0
      %p283 = por %p281, %p282
      %p284 = scmp.ne.s32.totalorder %s273, %s276
      %p285 = scmp.eq.s32.totalorder %s28, 1
      %p286 = por %p284, %p285
      %p287 = scmp.ne.s32.totalorder %s276, %s277
      %p288 = scmp.eq.s32.totalorder %s28, 0
      %p289 = por %p287, %p288
      %p290 = scmp.ne.s32.totalorder %s276, %s277
      %p291 = scmp.eq.s32.totalorder %s29, 1
      %p292 = por %p290, %p291
      %p294 = scmp.ne.s32.totalorder %s277, %s293
      %p295 = scmp.eq.s32.totalorder %s29, 0
      %p296 = por %p294, %p295
      %s297 = ssub.s32 %s23, %s30
      %p298 = scmp.eq.s32.totalorder %s297, 0
      %s300 = sadd.s32 %s299, 1
      %s301 = scalar_select %p298, %s299, %s300
      %p304 = pneg %p298
      %p305 = scmp.eq.s32.totalorder %s23, 1
      %p306 = por %p304, %p305
      %p307 = scmp.ne.s32.totalorder %s299, %s302
      %p308 = scmp.eq.s32.totalorder %s23, 0
      %p309 = por %p307, %p308
      %p310 = scmp.ne.s32.totalorder %s299, %s302
      %p311 = scmp.eq.s32.totalorder %s28, 1
      %p312 = por %p310, %p311
      %p313 = scmp.ne.s32.totalorder %s302, %s303
      %p314 = scmp.eq.s32.totalorder %s28, 0
      %p315 = por %p313, %p314
      %p316 = scmp.ne.s32.totalorder %s302, %s303
      %p317 = scmp.eq.s32.totalorder %s29, 1
      %p318 = por %p316, %p317
      %p320 = scmp.ne.s32.totalorder %s303, %s319
      %p321 = scmp.eq.s32.totalorder %s29, 0
      %p322 = por %p320, %p321
      %s323 = ssub.s32 %s23, %s30
      %p324 = scmp.eq.s32.totalorder %s323, 0
      %s326 = sadd.s32 %s325, 1
      %s327 = scalar_select %p324, %s325, %s326
      %p330 = pneg %p324
      %p331 = scmp.eq.s32.totalorder %s23, 1
      %p332 = por %p330, %p331
      %p333 = scmp.ne.s32.totalorder %s325, %s328
      %p334 = scmp.eq.s32.totalorder %s23, 0
      %p335 = por %p333, %p334
      %p336 = scmp.ne.s32.totalorder %s325, %s328
      %p337 = scmp.eq.s32.totalorder %s28, 1
      %p338 = por %p336, %p337
      %p339 = scmp.ne.s32.totalorder %s328, %s329
      %p340 = scmp.eq.s32.totalorder %s28, 0
      %p341 = por %p339, %p340
      %p342 = scmp.ne.s32.totalorder %s328, %s329
      %p343 = scmp.eq.s32.totalorder %s29, 1
      %p344 = por %p342, %p343
      %p346 = scmp.ne.s32.totalorder %s329, %s345
      %p347 = scmp.eq.s32.totalorder %s29, 0
      %p348 = por %p346, %p347
      %s349 = ssub.s32 %s23, %s30
      %p350 = scmp.eq.s32.totalorder %s349, 0
      %s352 = sadd.s32 %s351, 1
      %s353 = scalar_select %p350, %s351, %s352
      %p356 = pneg %p350
      %p357 = scmp.eq.s32.totalorder %s23, 1
      %p358 = por %p356, %p357
      %p359 = scmp.ne.s32.totalorder %s351, %s354
      %p360 = scmp.eq.s32.totalorder %s23, 0
      %p361 = por %p359, %p360
      %p362 = scmp.ne.s32.totalorder %s351, %s354
      %p363 = scmp.eq.s32.totalorder %s28, 1
      %p364 = por %p362, %p363
      %p365 = scmp.ne.s32.totalorder %s354, %s355
      %p366 = scmp.eq.s32.totalorder %s28, 0
      %p367 = por %p365, %p366
      %p368 = scmp.ne.s32.totalorder %s354, %s355
      %p369 = scmp.eq.s32.totalorder %s29, 1
      %p370 = por %p368, %p369
      %p372 = scmp.ne.s32.totalorder %s355, %s371
      %p373 = scmp.eq.s32.totalorder %s29, 0
      %p374 = por %p372, %p373
      %s375 = ssub.s32 %s23, %s30
      %p376 = scmp.eq.s32.totalorder %s375, 0
      %s378 = sadd.s32 %s377, 1
      %s379 = scalar_select %p376, %s377, %s378
      %p382 = pneg %p376
      %p383 = scmp.eq.s32.totalorder %s23, 1
      %p384 = por %p382, %p383
      %p385 = scmp.ne.s32.totalorder %s377, %s380
      %p386 = scmp.eq.s32.totalorder %s23, 0
      %p387 = por %p385, %p386
      %p388 = scmp.ne.s32.totalorder %s377, %s380
      %p389 = scmp.eq.s32.totalorder %s28, 1
      %p390 = por %p388, %p389
      %p391 = scmp.ne.s32.totalorder %s380, %s381
      %p392 = scmp.eq.s32.totalorder %s28, 0
      %p393 = por %p391, %p392
      %p394 = scmp.ne.s32.totalorder %s380, %s381
      %p395 = scmp.eq.s32.totalorder %s29, 1
      %p396 = por %p394, %p395
      %p398 = scmp.ne.s32.totalorder %s381, %s397
      %p399 = scmp.eq.s32.totalorder %s29, 0
      %p400 = por %p398, %p399
      %s401 = ssub.s32 %s23, %s30
      %p402 = scmp.eq.s32.totalorder %s401, 0
      %s404 = sadd.s32 %s403, 1
      %s405 = scalar_select %p402, %s403, %s404
      %p408 = pneg %p402
      %p409 = scmp.eq.s32.totalorder %s23, 1
      %p410 = por %p408, %p409
      %p411 = scmp.ne.s32.totalorder %s403, %s406
      %p412 = scmp.eq.s32.totalorder %s23, 0
      %p413 = por %p411, %p412
      %p414 = scmp.ne.s32.totalorder %s403, %s406
      %p415 = scmp.eq.s32.totalorder %s28, 1
      %p416 = por %p414, %p415
      %p417 = scmp.ne.s32.totalorder %s406, %s407
      %p418 = scmp.eq.s32.totalorder %s28, 0
      %p419 = por %p417, %p418
      %p420 = scmp.ne.s32.totalorder %s406, %s407
      %p421 = scmp.eq.s32.totalorder %s29, 1
      %p422 = por %p420, %p421
      %p424 = scmp.ne.s32.totalorder %s407, %s423
      %p425 = scmp.eq.s32.totalorder %s29, 0
      %p426 = por %p424, %p425
      %s428 = sadd.s32 %s427, 1
      %p431 = scmp.eq.s32.totalorder %s23, 1
      %p432 = scmp.ne.s32.totalorder %s427, %s429
      %p433 = scmp.eq.s32.totalorder %s23, 0
      %p434 = por %p432, %p433
      %p435 = scmp.ne.s32.totalorder %s427, %s429
      %p436 = scmp.eq.s32.totalorder %s28, 1
      %p437 = por %p435, %p436
      %p438 = scmp.ne.s32.totalorder %s429, %s430
      %p439 = scmp.eq.s32.totalorder %s28, 0
      %p440 = por %p438, %p439
      %p441 = scmp.ne.s32.totalorder %s429, %s430
      %p442 = scmp.eq.s32.totalorder %s29, 1
      %p443 = por %p441, %p442
      %p445 = scmp.ne.s32.totalorder %s430, %s444
      %p446 = scmp.eq.s32.totalorder %s29, 0
      %p447 = por %p445, %p446
      %p448 = scmp.le.s32.totalorder 1, %s23
      %p449 = scmp.lt.s32.totalorder %s23, 3
      %p450 = pnand %p448, %p449
      %p451 = pneg %p450
      // Predicated region
      $region9: #{_lambda_.5} parent=5 // pred_check
        _
      $region10: #{_lambda_.5} parent=5 // pred_check_branch
        %453 = sbr.rel (%p450) target = $region12
      $region11: #{_lambda_.5} parent=5 // pred_region
        %s454 = ssub.s32 %s23, 1
        // Predicated region
        $region13: #{_lambda_.5} parent=11 // pred_check
          %p455 = pneg %p44
        $region14: #{_lambda_.5} parent=11 // pred_check_branch
          %457 = sbr.rel (%p455) target = $region16
        $region15: #{_lambda_.5} parent=11 // pred_region
          _
        $region16: #{_lambda_.5} parent=11 // pred_fallthru
          _
        // Predicated region
        $region17: #{_lambda_.5} parent=11 // pred_check
          %p458 = pneg %p65
        $region18: #{_lambda_.5} parent=11 // pred_check_branch
          %460 = sbr.rel (%p458) target = $region20
        $region19: #{_lambda_.5} parent=11 // pred_region
          _
        $region20: #{_lambda_.5} parent=11 // pred_fallthru
          _
        // Predicated region
        $region21: #{_lambda_.5} parent=11 // pred_check
          %p461 = pneg %p86
        $region22: #{_lambda_.5} parent=11 // pred_check_branch
          %463 = sbr.rel (%p461) target = $region24
        $region23: #{_lambda_.5} parent=11 // pred_region
          _
        $region24: #{_lambda_.5} parent=11 // pred_fallthru
          _
        // Predicated region
        $region25: #{_lambda_.5} parent=11 // pred_check
          %p464 = pneg %p107
        $region26: #{_lambda_.5} parent=11 // pred_check_branch
          %466 = sbr.rel (%p464) target = $region28
        $region27: #{_lambda_.5} parent=11 // pred_region
          _
        $region28: #{_lambda_.5} parent=11 // pred_fallthru
          _
      $region12: #{_lambda_.5} parent=5 // pred_fallthru
        _
      %p467 = scmp.lt.s32.totalorder %s23, 2
      // Predicated region
      $region29: #{_lambda_.5} parent=5 // pred_check
        %p468 = pneg %p467
      $region30: #{_lambda_.5} parent=5 // pred_check_branch
        %470 = sbr.rel (%p468) target = $region32
      $region31: #{_lambda_.5} parent=5 // pred_region
        // Predicated region
        $region33: #{_lambda_.5} parent=31 // pred_check
          %p471 = pneg %p127
        $region34: #{_lambda_.5} parent=31 // pred_check_branch
          %473 = sbr.rel (%p471) target = $region36
        $region35: #{_lambda_.5} parent=31 // pred_region
          %p474 = scmp.lt.s32.totalorder %s23, 1
          %s475 = scalar_select %p474, %s23, 1
          %s476 = smul.addr %s475, 4
          %s477 = smul.addr %s476, 4
          %s478 = scalar_lea.vmem %s4, %s477
        $region36: #{_lambda_.5} parent=31 // pred_fallthru
          _
        // Predicated region
        $region37: #{_lambda_.5} parent=31 // pred_check
          %p479 = pneg %p153
        $region38: #{_lambda_.5} parent=31 // pred_check_branch
          %481 = sbr.rel (%p479) target = $region40
        $region39: #{_lambda_.5} parent=31 // pred_region
          %p482 = scmp.lt.s32.totalorder %s23, 1
          %s483 = scalar_select %p482, %s23, 1
          %s484 = scalar_lea.vmem %s5, %s483
        $region40: #{_lambda_.5} parent=31 // pred_fallthru
          _
        // Predicated region
        $region41: #{_lambda_.5} parent=31 // pred_check
          %p485 = pneg %p179
        $region42: #{_lambda_.5} parent=31 // pred_check_branch
          %487 = sbr.rel (%p485) target = $region44
        $region43: #{_lambda_.5} parent=31 // pred_region
          %p488 = scmp.lt.s32.totalorder %s23, 1
          %s489 = scalar_select %p488, %s23, 1
          %s490 = smul.addr %s489, 4
          %s491 = smul.addr %s490, 4
          %s492 = scalar_lea.vmem %s6, %s491
        $region44: #{_lambda_.5} parent=31 // pred_fallthru
          _
        // Predicated region
        $region45: #{_lambda_.5} parent=31 // pred_check
          %p493 = pneg %p205
        $region46: #{_lambda_.5} parent=31 // pred_check_branch
          %495 = sbr.rel (%p493) target = $region48
        $region47: #{_lambda_.5} parent=31 // pred_region
          %p496 = scmp.lt.s32.totalorder %s23, 1
          %s497 = scalar_select %p496, %s23, 1
          %s498 = scalar_lea.vmem %s7, %s497
        $region48: #{_lambda_.5} parent=31 // pred_fallthru
          _
        // Predicated region
        $region49: #{_lambda_.5} parent=31 // pred_check
          %p499 = pneg %p231
        $region50: #{_lambda_.5} parent=31 // pred_check_branch
          %501 = sbr.rel (%p499) target = $region52
        $region51: #{_lambda_.5} parent=31 // pred_region
          %p502 = scmp.lt.s32.totalorder %s23, 1
          %s503 = scalar_select %p502, %s23, 1
          %s504 = scalar_lea.vmem %s8, %s503
        $region52: #{_lambda_.5} parent=31 // pred_fallthru
          _
        // Predicated region
        $region53: #{_lambda_.5} parent=31 // pred_check
          %p505 = pneg %p257
        $region54: #{_lambda_.5} parent=31 // pred_check_branch
          %507 = sbr.rel (%p505) target = $region56
        $region55: #{_lambda_.5} parent=31 // pred_region
          %p508 = scmp.lt.s32.totalorder %s23, 1
          %s509 = scalar_select %p508, %s23, 1
          %s510 = scalar_lea.vmem %s9, %s509
        $region56: #{_lambda_.5} parent=31 // pred_fallthru
          _
        // Predicated region
        $region57: #{_lambda_.5} parent=31 // pred_check
          %p511 = pneg %p283
        $region58: #{_lambda_.5} parent=31 // pred_check_branch
          %513 = sbr.rel (%p511) target = $region60
        $region59: #{_lambda_.5} parent=31 // pred_region
          %p514 = scmp.lt.s32.totalorder %s23, 1
          %s515 = scalar_select %p514, %s23, 1
          %s516 = smul.addr %s515, 4
          %s517 = smul.addr %s516, 4
          %s518 = scalar_lea.vmem %s10, %s517
        $region60: #{_lambda_.5} parent=31 // pred_fallthru
          _
        // Predicated region
        $region61: #{_lambda_.5} parent=31 // pred_check
          %p519 = pneg %p309
        $region62: #{_lambda_.5} parent=31 // pred_check_branch
          %521 = sbr.rel (%p519) target = $region64
        $region63: #{_lambda_.5} parent=31 // pred_region
          %p522 = scmp.lt.s32.totalorder %s23, 1
          %s523 = scalar_select %p522, %s23, 1
          %s524 = scalar_lea.vmem %s11, %s523
        $region64: #{_lambda_.5} parent=31 // pred_fallthru
          _
        // Predicated region
        $region65: #{_lambda_.5} parent=31 // pred_check
          %p525 = pneg %p335
        $region66: #{_lambda_.5} parent=31 // pred_check_branch
          %527 = sbr.rel (%p525) target = $region68
        $region67: #{_lambda_.5} parent=31 // pred_region
          %p528 = scmp.lt.s32.totalorder %s23, 1
          %s529 = scalar_select %p528, %s23, 1
          %s530 = smul.addr %s529, 8
          %s531 = smul.addr %s530, 4
          %s532 = scalar_lea.vmem %s12, %s531
        $region68: #{_lambda_.5} parent=31 // pred_fallthru
          _
        // Predicated region
        $region69: #{_lambda_.5} parent=31 // pred_check
          %p533 = pneg %p361
        $region70: #{_lambda_.5} parent=31 // pred_check_branch
          %535 = sbr.rel (%p533) target = $region72
        $region71: #{_lambda_.5} parent=31 // pred_region
          %p536 = scmp.lt.s32.totalorder %s23, 1
          %s537 = scalar_select %p536, %s23, 1
          %s538 = scalar_lea.vmem %s13, %s537
        $region72: #{_lambda_.5} parent=31 // pred_fallthru
          _
        // Predicated region
        $region73: #{_lambda_.5} parent=31 // pred_check
          %p539 = pneg %p387
        $region74: #{_lambda_.5} parent=31 // pred_check_branch
          %541 = sbr.rel (%p539) target = $region76
        $region75: #{_lambda_.5} parent=31 // pred_region
          %p542 = scmp.lt.s32.totalorder %s23, 1
          %s543 = scalar_select %p542, %s23, 1
          %s544 = scalar_lea.vmem %s14, %s543
        $region76: #{_lambda_.5} parent=31 // pred_fallthru
          _
        // Predicated region
        $region77: #{_lambda_.5} parent=31 // pred_check
          %p545 = pneg %p413
        $region78: #{_lambda_.5} parent=31 // pred_check_branch
          %547 = sbr.rel (%p545) target = $region80
        $region79: #{_lambda_.5} parent=31 // pred_region
          %p548 = scmp.lt.s32.totalorder %s23, 1
          %s549 = scalar_select %p548, %s23, 1
          %s550 = scalar_lea.vmem %s15, %s549
        $region80: #{_lambda_.5} parent=31 // pred_fallthru
          _
      $region32: #{_lambda_.5} parent=5 // pred_fallthru
        _
      %p551 = scmp.le.s32.totalorder 1, %s23
      %p552 = scmp.lt.s32.totalorder %s23, 3
      %p553 = pnand %p551, %p552
      %p554 = pneg %p553
      // Predicated region
      $region81: #{_lambda_.5} parent=5 // pred_check
        _
      $region82: #{_lambda_.5} parent=5 // pred_check_branch
        %556 = sbr.rel (%p553) target = $region84
      $region83: #{_lambda_.5} parent=5 // pred_region
        %s557 = ssub.s32 %s23, 1
        %p558 = pneg %p44
        %p559 = pneg %p41
        %p560 = pneg %p65
        %p561 = pneg %p62
        %p562 = pneg %p86
        %p563 = pneg %p83
        %p564 = pneg %p107
        %p565 = pneg %p104
        %p566 = scmp.lt.s32.totalorder %s28, 1
        %s567 = scalar_select %p566, %s28, 1
        %s568 = smul.addr %s567, 4
        %s569 = smul.addr %s568, 4
        %s570 = scalar_lea.vmem %s4, %s569
        %p571 = pneg %p133
        %p572 = pneg %p130
        %p573 = scmp.lt.s32.totalorder %s28, 1
        %s574 = scalar_select %p573, %s28, 1
        %s575 = scalar_lea.vmem %s5, %s574
        %p576 = pneg %p159
        %p577 = pneg %p156
        %p578 = scmp.lt.s32.totalorder %s28, 1
        %s579 = scalar_select %p578, %s28, 1
        %s580 = smul.addr %s579, 4
        %s581 = smul.addr %s580, 4
        %s582 = scalar_lea.vmem %s6, %s581
        %p583 = pneg %p185
        %p584 = pneg %p182
        %p585 = scmp.lt.s32.totalorder %s28, 1
        %s586 = scalar_select %p585, %s28, 1
        %s587 = scalar_lea.vmem %s7, %s586
        %p588 = pneg %p211
        %p589 = pneg %p208
        %p590 = scmp.lt.s32.totalorder %s28, 1
        %s591 = scalar_select %p590, %s28, 1
        %s592 = scalar_lea.vmem %s8, %s591
        %p593 = pneg %p237
        %p594 = pneg %p234
        %p595 = scmp.lt.s32.totalorder %s28, 1
        %s596 = scalar_select %p595, %s28, 1
        %s597 = scalar_lea.vmem %s9, %s596
        %p598 = pneg %p263
        %p599 = pneg %p260
        %p600 = scmp.lt.s32.totalorder %s28, 1
        %s601 = scalar_select %p600, %s28, 1
        %s602 = smul.addr %s601, 4
        %s603 = smul.addr %s602, 4
        %s604 = scalar_lea.vmem %s10, %s603
        %p605 = pneg %p289
        %p606 = pneg %p286
        %p607 = scmp.lt.s32.totalorder %s28, 1
        %s608 = scalar_select %p607, %s28, 1
        %s609 = scalar_lea.vmem %s11, %s608
        %p610 = pneg %p315
        %p611 = pneg %p312
        %p612 = scmp.lt.s32.totalorder %s28, 1
        %s613 = scalar_select %p612, %s28, 1
        %s614 = smul.addr %s613, 8
        %s615 = smul.addr %s614, 4
        %s616 = scalar_lea.vmem %s12, %s615
        %p617 = pneg %p341
        %p618 = pneg %p338
        %p619 = scmp.lt.s32.totalorder %s28, 1
        %s620 = scalar_select %p619, %s28, 1
        %s621 = scalar_lea.vmem %s13, %s620
        %p622 = pneg %p367
        %p623 = pneg %p364
        %p624 = scmp.lt.s32.totalorder %s28, 1
        %s625 = scalar_select %p624, %s28, 1
        %s626 = scalar_lea.vmem %s14, %s625
        %p627 = pneg %p393
        %p628 = pneg %p390
        %p629 = scmp.lt.s32.totalorder %s28, 1
        %s630 = scalar_select %p629, %s28, 1
        %s631 = scalar_lea.vmem %s15, %s630
        %p632 = pneg %p419
        %p633 = pneg %p416
        %p634 = pneg %p440
        %p635 = pneg %p437
        %p636 = scmp.lt.s32.totalorder %s28, 1
        %s637 = scalar_select %p636, %s28, 1
        %s638 = smul.addr %s637, 4
        %s639 = smul.addr %s638, 4
        %s640 = scalar_lea.vmem %s4, %s639
        %p641 = scmp.lt.s32.totalorder %s28, 1
        %s642 = scalar_select %p641, %s28, 1
        %s643 = scalar_lea.vmem %s5, %s642
        %p644 = scmp.lt.s32.totalorder %s28, 1
        %s645 = scalar_select %p644, %s28, 1
        %s646 = smul.addr %s645, 4
        %s647 = smul.addr %s646, 4
        %s648 = scalar_lea.vmem %s6, %s647
        %p649 = scmp.lt.s32.totalorder %s28, 1
        %s650 = scalar_select %p649, %s28, 1
        %s651 = scalar_lea.vmem %s7, %s650
        %p652 = scmp.lt.s32.totalorder %s28, 1
        %s653 = scalar_select %p652, %s28, 1
        %s654 = scalar_lea.vmem %s8, %s653
        %p655 = scmp.lt.s32.totalorder %s28, 1
        %s656 = scalar_select %p655, %s28, 1
        %s657 = scalar_lea.vmem %s9, %s656
        %p658 = scmp.lt.s32.totalorder %s28, 1
        %s659 = scalar_select %p658, %s28, 1
        %s660 = smul.addr %s659, 4
        %s661 = smul.addr %s660, 4
        %s662 = scalar_lea.vmem %s10, %s661
        %p663 = scmp.lt.s32.totalorder %s28, 1
        %s664 = scalar_select %p663, %s28, 1
        %s665 = scalar_lea.vmem %s11, %s664
        %p666 = scmp.lt.s32.totalorder %s28, 1
        %s667 = scalar_select %p666, %s28, 1
        %s668 = smul.addr %s667, 8
        %s669 = smul.addr %s668, 4
        %s670 = scalar_lea.vmem %s12, %s669
        %p671 = scmp.lt.s32.totalorder %s28, 1
        %s672 = scalar_select %p671, %s28, 1
        %s673 = scalar_lea.vmem %s13, %s672
        %p674 = scmp.lt.s32.totalorder %s28, 1
        %s675 = scalar_select %p674, %s28, 1
        %s676 = scalar_lea.vmem %s14, %s675
        %p677 = scmp.lt.s32.totalorder %s28, 1
        %s678 = scalar_select %p677, %s28, 1
        %s679 = scalar_lea.vmem %s15, %s678
        %p681 = scmp.eq.s32.totalorder %s28, 0
        // Predicated region
        $region85: #{_lambda_.5} parent=83 // pred_check
          %p682 = pneg %p681
        $region86: #{_lambda_.5} parent=83 // pred_check_branch
          %684 = sbr.rel (%p682) target = $region88
        $region87: #{_lambda_.5} parent=83 // pred_region
          %v685 = vld [vmem:[%s0] sm:$0xff]
          %v686 = vld [vmem:[%s0 + $0x8] sm:$0xff]
          %v687 = vpack.c.bf16 %v686, %v685
          %v688 = vld [vmem:[%s1] sm:$0xf]
          %v689 = vld [vmem:[%s1 + $0x4] sm:$0xf]
          %v690 = vld [vmem:[%s1 + $0x8] sm:$0xf]
          %v691 = vld [vmem:[%s1 + $0xc] sm:$0xf]
          %v692 = vld [vmem:[%s2] sm:$0x1]
          %v694 = vlaneseq
          %v695 = vshrl.u32 %v694, 7
          %v696 = vsub.s32 0, %v695
          %v697 = vrot.slane %v692, %v696
          %v703 = vunpack.c.l.b16 %v688
          %v704 = vunpack.c.l.b16 %v689
          %v705 = vunpack.c.l.b16 %v690
          %v706 = vunpack.c.l.b16 %v691
          %v707 = vpack.c.b16 %v704, %v703
          %v708 = vpack.c.b16 %v706, %v705
          %vm711 = vcmask 261120
          %v713 = vsel %vm711, %v687, 0
          %715 = vmatprep.subr.bf16.mxu0 0
          %716 = vmatpush1.bf16.msra.mxu0 0
          %717 = vmatprep.subr.bf16.mxu0 0
          %718 = vmatpush1.bf16.msra.mxu0 0
          %719 = vmatprep.subr.bf16.mxu0 0
          %720 = vmatpush1.bf16.msra.mxu0 0
          %721 = vmatprep.subr.bf16.mxu0 0
          %722 = vmatpush1.bf16.msra.mxu0 0
          %723 = vmatprep.subr.bf16.mxu0 0
          %724 = vmatpush1.bf16.msra.mxu0 0
          %725 = vmatprep.subr.bf16.mxu0 0
          %726 = vmatpush1.bf16.msra.mxu0 0
          %727 = vmatprep.subr.bf16.mxu0 0
          %728 = vmatpush1.bf16.msra.mxu0 %v708
          %729 = vmatprep.subr.bf16.mxu0 0
          %730 = vmatpush1.bf16.msra.mxu0 %v707
          %731 = vmatprep.subr.bf16.mxu0 0
          %732 = vmatpush2.bf16.msra.mxu0 0
          %733 = vmatprep.subr.bf16.mxu0 0
          %734 = vmatpush2.bf16.msra.mxu0 0
          %735 = vmatprep.subr.bf16.mxu0 0
          %736 = vmatpush2.bf16.msra.mxu0 0
          %737 = vmatprep.subr.bf16.mxu0 0
          %738 = vmatpush2.bf16.msra.mxu0 0
          %739 = vmatprep.subr.bf16.mxu0 0
          %740 = vmatpush2.bf16.msra.mxu0 0
          %741 = vmatprep.subr.bf16.mxu0 0
          %742 = vmatpush2.bf16.msra.mxu0 0
          %743 = vmatprep.subr.bf16.mxu0 0
          %744 = vmatpush2.bf16.msra.mxu0 0
          %745 = vmatprep.subr.bf16.mxu0 0
          %746 = vmatpush2.bf16.msra.mxu0 0
          %747 = vmatprep.mubr.bf16.mxu0 0
          %748 = vmatmul.mubr.bf16.gmra.mxu0 %v713
          %v749 = vpop.f32.mrf.mxu0
          %v750 = vadd.f32 %v697, %v749
          %v751 = vpop.f32.mrf.mxu0
          %v752 = vpop.f32.mrf.mxu0
          %v753 = vadd.f32 %v697, %v752
          %v754 = vpop.f32.mrf.mxu0
          %755 = vdwg.mxu0
          %v756 = vld [vmem:[%s3] sm:$0xff]
          %v757 = vld [vmem:[%s3 + $0x8] sm:$0xff]
          %v758 = vadd.f32 %v750, %v756
          %v759 = vadd.f32 %v753, %v757
          %760 = vst.msk [vmem:[#allocation2] sm:$0xff] %vm711, %v758
          %761 = vst.msk [vmem:[#allocation2 + $0x8] sm:$0xff] %vm711, %v759
        $region88: #{_lambda_.5} parent=83 // pred_fallthru
          _
        %v762 = vld [vmem:[#allocation2] sm:$0xff]
        %v763 = vld [vmem:[#allocation2 + $0x8] sm:$0xff]
        %v764 = vpack.c.bf16 %v763, %v762
        %v765 = vld [vmem:[%s640] sm:$0xf]
        %v766 = vld [vmem:[%s640 + $0x4] sm:$0xf]
        %v767 = vld [vmem:[%s640 + $0x8] sm:$0xf]
        %v768 = vld [vmem:[%s640 + $0xc] sm:$0xf]
        %v769 = vld [vmem:[%s643] sm:$0x1]
        %v771 = vlaneseq
        %v772 = vshrl.u32 %v771, 7
        %v773 = vsub.s32 0, %v772
        %v774 = vrot.slane %v769, %v773
        %v780 = vunpack.c.l.b16 %v765
        %v781 = vunpack.c.l.b16 %v766
        %v782 = vunpack.c.l.b16 %v767
        %v783 = vunpack.c.l.b16 %v768
        %v784 = vpack.c.b16 %v781, %v780
        %v785 = vpack.c.b16 %v783, %v782
        %vm788 = vcmask 261120
        %v790 = vsel %vm788, %v764, 0
        %792 = vmatprep.subr.bf16.mxu0 0
        %793 = vmatpush1.bf16.msra.mxu0 0
        %794 = vmatprep.subr.bf16.mxu0 0
        %795 = vmatpush1.bf16.msra.mxu0 0
        %796 = vmatprep.subr.bf16.mxu0 0
        %797 = vmatpush1.bf16.msra.mxu0 0
        %798 = vmatprep.subr.bf16.mxu0 0
        %799 = vmatpush1.bf16.msra.mxu0 0
        %800 = vmatprep.subr.bf16.mxu0 0
        %801 = vmatpush1.bf16.msra.mxu0 0
        %802 = vmatprep.subr.bf16.mxu0 0
        %803 = vmatpush1.bf16.msra.mxu0 0
        %804 = vmatprep.subr.bf16.mxu0 0
        %805 = vmatpush1.bf16.msra.mxu0 %v785
        %806 = vmatprep.subr.bf16.mxu0 0
        %807 = vmatpush1.bf16.msra.mxu0 %v784
        %808 = vmatprep.subr.bf16.mxu0 0
        %809 = vmatpush2.bf16.msra.mxu0 0
        %810 = vmatprep.subr.bf16.mxu0 0
        %811 = vmatpush2.bf16.msra.mxu0 0
        %812 = vmatprep.subr.bf16.mxu0 0
        %813 = vmatpush2.bf16.msra.mxu0 0
        %814 = vmatprep.subr.bf16.mxu0 0
        %815 = vmatpush2.bf16.msra.mxu0 0
        %816 = vmatprep.subr.bf16.mxu0 0
        %817 = vmatpush2.bf16.msra.mxu0 0
        %818 = vmatprep.subr.bf16.mxu0 0
        %819 = vmatpush2.bf16.msra.mxu0 0
        %820 = vmatprep.subr.bf16.mxu0 0
        %821 = vmatpush2.bf16.msra.mxu0 0
        %822 = vmatprep.subr.bf16.mxu0 0
        %823 = vmatpush2.bf16.msra.mxu0 0
        %824 = vmatprep.mubr.bf16.mxu0 0
        %825 = vmatmul.mubr.bf16.gmra.mxu0 %v790
        %v826 = vpop.f32.mrf.mxu0
        %v827 = vadd.f32 %v774, %v826
        %v828 = vpop.f32.mrf.mxu0
        %v829 = vpop.f32.mrf.mxu0
        %v830 = vadd.f32 %v774, %v829
        %v831 = vpop.f32.mrf.mxu0
        %832 = vdwg.mxu0
        %834 = vrot.lane.b32.xlu0 %v827, 120
        %v835 = vpop.permute.xlu0 %834
        %837 = vrot.lane.b32.xlu0 %v827, 112
        %v838 = vpop.permute.xlu0 %837
        %840 = vrot.lane.b32.xlu0 %v827, 104
        %v841 = vpop.permute.xlu0 %840
        %844 = vrot.lane.b32.xlu0 %v830, 120
        %v845 = vpop.permute.xlu0 %844
        %847 = vrot.lane.b32.xlu0 %v830, 112
        %v848 = vpop.permute.xlu0 %847
        %850 = vrot.lane.b32.xlu0 %v830, 104
        %v851 = vpop.permute.xlu0 %850
        %v853 = vpack.c.bf16 %v827, %v827
        %v854 = vpack.c.bf16 %v835, %v835
        %v855 = vpack.c.bf16 %v838, %v838
        %v856 = vpack.c.bf16 %v841, %v841
        %v857 = vpack.c.bf16 %v830, %v830
        %v858 = vpack.c.bf16 %v845, %v845
        %v859 = vpack.c.bf16 %v848, %v848
        %v860 = vpack.c.bf16 %v851, %v851
        %862 = vrot.lane.b32.xlu0 %v853, 96
        %v863 = vpop.permute.xlu0 %862
        %vm864 = vcmask 64512
        %v866 = vsel %vm864, %v853, 0
        %v869 = vsel %vm864, %v863, 0
        %871 = vmatprep.subr.bf16.mxu0 0
        %872 = vmatpush1.bf16.xpose.msra.mxu0 0
        %873 = vmatprep.subr.bf16.mxu0 0
        %874 = vmatpush1.bf16.xpose.msra.mxu0 0
        %875 = vmatprep.subr.bf16.mxu0 0
        %876 = vmatpush1.bf16.xpose.msra.mxu0 0
        %877 = vmatprep.subr.bf16.mxu0 0
        %878 = vmatpush1.bf16.xpose.msra.mxu0 0
        %879 = vmatprep.subr.bf16.mxu0 0
        %880 = vmatpush1.bf16.xpose.msra.mxu0 0
        %881 = vmatprep.subr.bf16.mxu0 0
        %882 = vmatpush1.bf16.xpose.msra.mxu0 0
        %883 = vmatprep.subr.bf16.mxu0 0
        %884 = vmatpush1.bf16.xpose.msra.mxu0 0
        %885 = vmatprep.subr.bf16.mxu0 0
        %886 = vmatpush1.bf16.xpose.msra.mxu0 %v869
        %887 = vmatprep.subr.bf16.mxu0 0
        %888 = vmatpush2.bf16.xpose.msra.mxu0 0
        %889 = vmatprep.subr.bf16.mxu0 0
        %890 = vmatpush2.bf16.xpose.msra.mxu0 0
        %891 = vmatprep.subr.bf16.mxu0 0
        %892 = vmatpush2.bf16.xpose.msra.mxu0 0
        %893 = vmatprep.subr.bf16.mxu0 0
        %894 = vmatpush2.bf16.xpose.msra.mxu0 0
        %895 = vmatprep.subr.bf16.mxu0 0
        %896 = vmatpush2.bf16.xpose.msra.mxu0 0
        %897 = vmatprep.subr.bf16.mxu0 0
        %898 = vmatpush2.bf16.xpose.msra.mxu0 0
        %899 = vmatprep.subr.bf16.mxu0 0
        %900 = vmatpush2.bf16.xpose.msra.mxu0 0
        %901 = vmatprep.subr.bf16.mxu0 0
        %902 = vmatpush2.bf16.xpose.msra.mxu0 0
        %903 = vmatprep.mubr.bf16.mxu0 0
        %904 = vmatmul.mubr.bf16.gmra.mxu0 %v866
        %v905 = vpop.f32.mrf.mxu0
        %v906 = vadd.f32 0.0, %v905
        %v907 = vpop.f32.mrf.mxu0
        %v908 = vpop.f32.mrf.mxu0
        %v909 = vpop.f32.mrf.mxu0
        %910 = vdwg.mxu0
        %912 = vrot.lane.b32.xlu0 %v854, 96
        %v913 = vpop.permute.xlu0 %912
        %v915 = vsel %vm864, %v854, 0
        %v918 = vsel %vm864, %v913, 0
        %920 = vmatprep.subr.bf16.mxu0 0
        %921 = vmatpush1.bf16.xpose.msra.mxu0 0
        %922 = vmatprep.subr.bf16.mxu0 0
        %923 = vmatpush1.bf16.xpose.msra.mxu0 0
        %924 = vmatprep.subr.bf16.mxu0 0
        %925 = vmatpush1.bf16.xpose.msra.mxu0 0
        %926 = vmatprep.subr.bf16.mxu0 0
        %927 = vmatpush1.bf16.xpose.msra.mxu0 0
        %928 = vmatprep.subr.bf16.mxu0 0
        %929 = vmatpush1.bf16.xpose.msra.mxu0 0
        %930 = vmatprep.subr.bf16.mxu0 0
        %931 = vmatpush1.bf16.xpose.msra.mxu0 0
        %932 = vmatprep.subr.bf16.mxu0 0
        %933 = vmatpush1.bf16.xpose.msra.mxu0 0
        %934 = vmatprep.subr.bf16.mxu0 0
        %935 = vmatpush1.bf16.xpose.msra.mxu0 %v918
        %936 = vmatprep.subr.bf16.mxu0 0
        %937 = vmatpush2.bf16.xpose.msra.mxu0 0
        %938 = vmatprep.subr.bf16.mxu0 0
        %939 = vmatpush2.bf16.xpose.msra.mxu0 0
        %940 = vmatprep.subr.bf16.mxu0 0
        %941 = vmatpush2.bf16.xpose.msra.mxu0 0
        %942 = vmatprep.subr.bf16.mxu0 0
        %943 = vmatpush2.bf16.xpose.msra.mxu0 0
        %944 = vmatprep.subr.bf16.mxu0 0
        %945 = vmatpush2.bf16.xpose.msra.mxu0 0
        %946 = vmatprep.subr.bf16.mxu0 0
        %947 = vmatpush2.bf16.xpose.msra.mxu0 0
        %948 = vmatprep.subr.bf16.mxu0 0
        %949 = vmatpush2.bf16.xpose.msra.mxu0 0
        %950 = vmatprep.subr.bf16.mxu0 0
        %951 = vmatpush2.bf16.xpose.msra.mxu0 0
        %952 = vmatprep.mubr.bf16.mxu0 0
        %953 = vmatmul.mubr.bf16.gmra.mxu0 %v915
        %v954 = vpop.f32.mrf.mxu0
        %v955 = vadd.f32 0.0, %v954
        %v956 = vpop.f32.mrf.mxu0
        %v957 = vpop.f32.mrf.mxu0
        %v958 = vpop.f32.mrf.mxu0
        %959 = vdwg.mxu0
        %961 = vrot.lane.b32.xlu0 %v855, 96
        %v962 = vpop.permute.xlu0 %961
        %v964 = vsel %vm864, %v855, 0
        %v967 = vsel %vm864, %v962, 0
        %969 = vmatprep.subr.bf16.mxu0 0
        %970 = vmatpush1.bf16.xpose.msra.mxu0 0
        %971 = vmatprep.subr.bf16.mxu0 0
        %972 = vmatpush1.bf16.xpose.msra.mxu0 0
        %973 = vmatprep.subr.bf16.mxu0 0
        %974 = vmatpush1.bf16.xpose.msra.mxu0 0
        %975 = vmatprep.subr.bf16.mxu0 0
        %976 = vmatpush1.bf16.xpose.msra.mxu0 0
        %977 = vmatprep.subr.bf16.mxu0 0
        %978 = vmatpush1.bf16.xpose.msra.mxu0 0
        %979 = vmatprep.subr.bf16.mxu0 0
        %980 = vmatpush1.bf16.xpose.msra.mxu0 0
        %981 = vmatprep.subr.bf16.mxu0 0
        %982 = vmatpush1.bf16.xpose.msra.mxu0 0
        %983 = vmatprep.subr.bf16.mxu0 0
        %984 = vmatpush1.bf16.xpose.msra.mxu0 %v967
        %985 = vmatprep.subr.bf16.mxu0 0
        %986 = vmatpush2.bf16.xpose.msra.mxu0 0
        %987 = vmatprep.subr.bf16.mxu0 0
        %988 = vmatpush2.bf16.xpose.msra.mxu0 0
        %989 = vmatprep.subr.bf16.mxu0 0
        %990 = vmatpush2.bf16.xpose.msra.mxu0 0
        %991 = vmatprep.subr.bf16.mxu0 0
        %992 = vmatpush2.bf16.xpose.msra.mxu0 0
        %993 = vmatprep.subr.bf16.mxu0 0
        %994 = vmatpush2.bf16.xpose.msra.mxu0 0
        %995 = vmatprep.subr.bf16.mxu0 0
        %996 = vmatpush2.bf16.xpose.msra.mxu0 0
        %997 = vmatprep.subr.bf16.mxu0 0
        %998 = vmatpush2.bf16.xpose.msra.mxu0 0
        %999 = vmatprep.subr.bf16.mxu0 0
        %1000 = vmatpush2.bf16.xpose.msra.mxu0 0
        %1001 = vmatprep.mubr.bf16.mxu0 0
        %1002 = vmatmul.mubr.bf16.gmra.mxu0 %v964
        %v1003 = vpop.f32.mrf.mxu0
        %v1004 = vadd.f32 0.0, %v1003
        %v1005 = vpop.f32.mrf.mxu0
        %v1006 = vpop.f32.mrf.mxu0
        %v1007 = vpop.f32.mrf.mxu0
        %1008 = vdwg.mxu0
        %1010 = vrot.lane.b32.xlu0 %v856, 96
        %v1011 = vpop.permute.xlu0 %1010
        %v1013 = vsel %vm864, %v856, 0
        %v1016 = vsel %vm864, %v1011, 0
        %1018 = vmatprep.subr.bf16.mxu0 0
        %1019 = vmatpush1.bf16.xpose.msra.mxu0 0
        %1020 = vmatprep.subr.bf16.mxu0 0
        %1021 = vmatpush1.bf16.xpose.msra.mxu0 0
        %1022 = vmatprep.subr.bf16.mxu0 0
        %1023 = vmatpush1.bf16.xpose.msra.mxu0 0
        %1024 = vmatprep.subr.bf16.mxu0 0
        %1025 = vmatpush1.bf16.xpose.msra.mxu0 0
        %1026 = vmatprep.subr.bf16.mxu0 0
        %1027 = vmatpush1.bf16.xpose.msra.mxu0 0
        %1028 = vmatprep.subr.bf16.mxu0 0
        %1029 = vmatpush1.bf16.xpose.msra.mxu0 0
        %1030 = vmatprep.subr.bf16.mxu0 0
        %1031 = vmatpush1.bf16.xpose.msra.mxu0 0
        %1032 = vmatprep.subr.bf16.mxu0 0
        %1033 = vmatpush1.bf16.xpose.msra.mxu0 %v1016
        %1034 = vmatprep.subr.bf16.mxu0 0
        %1035 = vmatpush2.bf16.xpose.msra.mxu0 0
        %1036 = vmatprep.subr.bf16.mxu0 0
        %1037 = vmatpush2.bf16.xpose.msra.mxu0 0
        %1038 = vmatprep.subr.bf16.mxu0 0
        %1039 = vmatpush2.bf16.xpose.msra.mxu0 0
        %1040 = vmatprep.subr.bf16.mxu0 0
        %1041 = vmatpush2.bf16.xpose.msra.mxu0 0
        %1042 = vmatprep.subr.bf16.mxu0 0
        %1043 = vmatpush2.bf16.xpose.msra.mxu0 0
        %1044 = vmatprep.subr.bf16.mxu0 0
        %1045 = vmatpush2.bf16.xpose.msra.mxu0 0
        %1046 = vmatprep.subr.bf16.mxu0 0
        %1047 = vmatpush2.bf16.xpose.msra.mxu0 0
        %1048 = vmatprep.subr.bf16.mxu0 0
        %1049 = vmatpush2.bf16.xpose.msra.mxu0 0
        %1050 = vmatprep.mubr.bf16.mxu0 0
        %1051 = vmatmul.mubr.bf16.gmra.mxu0 %v1013
        %v1052 = vpop.f32.mrf.mxu0
        %v1053 = vadd.f32 0.0, %v1052
        %v1054 = vpop.f32.mrf.mxu0
        %v1055 = vpop.f32.mrf.mxu0
        %v1056 = vpop.f32.mrf.mxu0
        %1057 = vdwg.mxu0
        %1059 = vrot.lane.b32.xlu0 %v857, 96
        %v1060 = vpop.permute.xlu0 %1059
        %v1062 = vsel %vm864, %v857, 0
        %v1065 = vsel %vm864, %v1060, 0
        %1067 = vmatprep.subr.bf16.mxu0 0
        %1068 = vmatpush1.bf16.xpose.msra.mxu0 0
        %1069 = vmatprep.subr.bf16.mxu0 0
        %1070 = vmatpush1.bf16.xpose.msra.mxu0 0
        %1071 = vmatprep.subr.bf16.mxu0 0
        %1072 = vmatpush1.bf16.xpose.msra.mxu0 0
        %1073 = vmatprep.subr.bf16.mxu0 0
        %1074 = vmatpush1.bf16.xpose.msra.mxu0 0
        %1075 = vmatprep.subr.bf16.mxu0 0
        %1076 = vmatpush1.bf16.xpose.msra.mxu0 0
        %1077 = vmatprep.subr.bf16.mxu0 0
        %1078 = vmatpush1.bf16.xpose.msra.mxu0 0
        %1079 = vmatprep.subr.bf16.mxu0 0
        %1080 = vmatpush1.bf16.xpose.msra.mxu0 0
        %1081 = vmatprep.subr.bf16.mxu0 0
        %1082 = vmatpush1.bf16.xpose.msra.mxu0 %v1065
        %1083 = vmatprep.subr.bf16.mxu0 0
        %1084 = vmatpush2.bf16.xpose.msra.mxu0 0
        %1085 = vmatprep.subr.bf16.mxu0 0
        %1086 = vmatpush2.bf16.xpose.msra.mxu0 0
        %1087 = vmatprep.subr.bf16.mxu0 0
        %1088 = vmatpush2.bf16.xpose.msra.mxu0 0
        %1089 = vmatprep.subr.bf16.mxu0 0
        %1090 = vmatpush2.bf16.xpose.msra.mxu0 0
        %1091 = vmatprep.subr.bf16.mxu0 0
        %1092 = vmatpush2.bf16.xpose.msra.mxu0 0
        %1093 = vmatprep.subr.bf16.mxu0 0
        %1094 = vmatpush2.bf16.xpose.msra.mxu0 0
        %1095 = vmatprep.subr.bf16.mxu0 0
        %1096 = vmatpush2.bf16.xpose.msra.mxu0 0
        %1097 = vmatprep.subr.bf16.mxu0 0
        %1098 = vmatpush2.bf16.xpose.msra.mxu0 0
        %1099 = vmatprep.mubr.bf16.mxu0 0
        %1100 = vmatmul.mubr.bf16.gmra.mxu0 %v1062
        %v1101 = vpop.f32.mrf.mxu0
        %v1102 = vadd.f32 0.0, %v1101
        %v1103 = vpop.f32.mrf.mxu0
        %v1104 = vpop.f32.mrf.mxu0
        %v1105 = vpop.f32.mrf.mxu0
        %1106 = vdwg.mxu0
        %1108 = vrot.lane.b32.xlu0 %v858, 96
        %v1109 = vpop.permute.xlu0 %1108
        %v1111 = vsel %vm864, %v858, 0
        %v1114 = vsel %vm864, %v1109, 0
        %1116 = vmatprep.subr.bf16.mxu0 0
        %1117 = vmatpush1.bf16.xpose.msra.mxu0 0
        %1118 = vmatprep.subr.bf16.mxu0 0
        %1119 = vmatpush1.bf16.xpose.msra.mxu0 0
        %1120 = vmatprep.subr.bf16.mxu0 0
        %1121 = vmatpush1.bf16.xpose.msra.mxu0 0
        %1122 = vmatprep.subr.bf16.mxu0 0
        %1123 = vmatpush1.bf16.xpose.msra.mxu0 0
        %1124 = vmatprep.subr.bf16.mxu0 0
        %1125 = vmatpush1.bf16.xpose.msra.mxu0 0
        %1126 = vmatprep.subr.bf16.mxu0 0
        %1127 = vmatpush1.bf16.xpose.msra.mxu0 0
        %1128 = vmatprep.subr.bf16.mxu0 0
        %1129 = vmatpush1.bf16.xpose.msra.mxu0 0
        %1130 = vmatprep.subr.bf16.mxu0 0
        %1131 = vmatpush1.bf16.xpose.msra.mxu0 %v1114
        %1132 = vmatprep.subr.bf16.mxu0 0
        %1133 = vmatpush2.bf16.xpose.msra.mxu0 0
        %1134 = vmatprep.subr.bf16.mxu0 0
        %1135 = vmatpush2.bf16.xpose.msra.mxu0 0
        %1136 = vmatprep.subr.bf16.mxu0 0
        %1137 = vmatpush2.bf16.xpose.msra.mxu0 0
        %1138 = vmatprep.subr.bf16.mxu0 0
        %1139 = vmatpush2.bf16.xpose.msra.mxu0 0
        %1140 = vmatprep.subr.bf16.mxu0 0
        %1141 = vmatpush2.bf16.xpose.msra.mxu0 0
        %1142 = vmatprep.subr.bf16.mxu0 0
        %1143 = vmatpush2.bf16.xpose.msra.mxu0 0
        %1144 = vmatprep.subr.bf16.mxu0 0
        %1145 = vmatpush2.bf16.xpose.msra.mxu0 0
        %1146 = vmatprep.subr.bf16.mxu0 0
        %1147 = vmatpush2.bf16.xpose.msra.mxu0 0
        %1148 = vmatprep.mubr.bf16.mxu0 0
        %1149 = vmatmul.mubr.bf16.gmra.mxu0 %v1111
        %v1150 = vpop.f32.mrf.mxu0
        %v1151 = vadd.f32 0.0, %v1150
        %v1152 = vpop.f32.mrf.mxu0
        %v1153 = vpop.f32.mrf.mxu0
        %v1154 = vpop.f32.mrf.mxu0
        %1155 = vdwg.mxu0
        %1157 = vrot.lane.b32.xlu0 %v859, 96
        %v1158 = vpop.permute.xlu0 %1157
        %v1160 = vsel %vm864, %v859, 0
        %v1163 = vsel %vm864, %v1158, 0
        %1165 = vmatprep.subr.bf16.mxu0 0
        %1166 = vmatpush1.bf16.xpose.msra.mxu0 0
        %1167 = vmatprep.subr.bf16.mxu0 0
        %1168 = vmatpush1.bf16.xpose.msra.mxu0 0
        %1169 = vmatprep.subr.bf16.mxu0 0
        %1170 = vmatpush1.bf16.xpose.msra.mxu0 0
        %1171 = vmatprep.subr.bf16.mxu0 0
        %1172 = vmatpush1.bf16.xpose.msra.mxu0 0
        %1173 = vmatprep.subr.bf16.mxu0 0
        %1174 = vmatpush1.bf16.xpose.msra.mxu0 0
        %1175 = vmatprep.subr.bf16.mxu0 0
        %1176 = vmatpush1.bf16.xpose.msra.mxu0 0
        %1177 = vmatprep.subr.bf16.mxu0 0
        %1178 = vmatpush1.bf16.xpose.msra.mxu0 0
        %1179 = vmatprep.subr.bf16.mxu0 0
        %1180 = vmatpush1.bf16.xpose.msra.mxu0 %v1163
        %1181 = vmatprep.subr.bf16.mxu0 0
        %1182 = vmatpush2.bf16.xpose.msra.mxu0 0
        %1183 = vmatprep.subr.bf16.mxu0 0
        %1184 = vmatpush2.bf16.xpose.msra.mxu0 0
        %1185 = vmatprep.subr.bf16.mxu0 0
        %1186 = vmatpush2.bf16.xpose.msra.mxu0 0
        %1187 = vmatprep.subr.bf16.mxu0 0
        %1188 = vmatpush2.bf16.xpose.msra.mxu0 0
        %1189 = vmatprep.subr.bf16.mxu0 0
        %1190 = vmatpush2.bf16.xpose.msra.mxu0 0
        %1191 = vmatprep.subr.bf16.mxu0 0
        %1192 = vmatpush2.bf16.xpose.msra.mxu0 0
        %1193 = vmatprep.subr.bf16.mxu0 0
        %1194 = vmatpush2.bf16.xpose.msra.mxu0 0
        %1195 = vmatprep.subr.bf16.mxu0 0
        %1196 = vmatpush2.bf16.xpose.msra.mxu0 0
        %1197 = vmatprep.mubr.bf16.mxu0 0
        %1198 = vmatmul.mubr.bf16.gmra.mxu0 %v1160
        %v1199 = vpop.f32.mrf.mxu0
        %v1200 = vadd.f32 0.0, %v1199
        %v1201 = vpop.f32.mrf.mxu0
        %v1202 = vpop.f32.mrf.mxu0
        %v1203 = vpop.f32.mrf.mxu0
        %1204 = vdwg.mxu0
        %1206 = vrot.lane.b32.xlu0 %v860, 96
        %v1207 = vpop.permute.xlu0 %1206
        %v1209 = vsel %vm864, %v860, 0
        %v1212 = vsel %vm864, %v1207, 0
        %1214 = vmatprep.subr.bf16.mxu0 0
        %1215 = vmatpush1.bf16.xpose.msra.mxu0 0
        %1216 = vmatprep.subr.bf16.mxu0 0
        %1217 = vmatpush1.bf16.xpose.msra.mxu0 0
        %1218 = vmatprep.subr.bf16.mxu0 0
        %1219 = vmatpush1.bf16.xpose.msra.mxu0 0
        %1220 = vmatprep.subr.bf16.mxu0 0
        %1221 = vmatpush1.bf16.xpose.msra.mxu0 0
        %1222 = vmatprep.subr.bf16.mxu0 0
        %1223 = vmatpush1.bf16.xpose.msra.mxu0 0
        %1224 = vmatprep.subr.bf16.mxu0 0
        %1225 = vmatpush1.bf16.xpose.msra.mxu0 0
        %1226 = vmatprep.subr.bf16.mxu0 0
        %1227 = vmatpush1.bf16.xpose.msra.mxu0 0
        %1228 = vmatprep.subr.bf16.mxu0 0
        %1229 = vmatpush1.bf16.xpose.msra.mxu0 %v1212
        %1230 = vmatprep.subr.bf16.mxu0 0
        %1231 = vmatpush2.bf16.xpose.msra.mxu0 0
        %1232 = vmatprep.subr.bf16.mxu0 0
        %1233 = vmatpush2.bf16.xpose.msra.mxu0 0
        %1234 = vmatprep.subr.bf16.mxu0 0
        %1235 = vmatpush2.bf16.xpose.msra.mxu0 0
        %1236 = vmatprep.subr.bf16.mxu0 0
        %1237 = vmatpush2.bf16.xpose.msra.mxu0 0
        %1238 = vmatprep.subr.bf16.mxu0 0
        %1239 = vmatpush2.bf16.xpose.msra.mxu0 0
        %1240 = vmatprep.subr.bf16.mxu0 0
        %1241 = vmatpush2.bf16.xpose.msra.mxu0 0
        %1242 = vmatprep.subr.bf16.mxu0 0
        %1243 = vmatpush2.bf16.xpose.msra.mxu0 0
        %1244 = vmatprep.subr.bf16.mxu0 0
        %1245 = vmatpush2.bf16.xpose.msra.mxu0 0
        %1246 = vmatprep.mubr.bf16.mxu0 0
        %1247 = vmatmul.mubr.bf16.gmra.mxu0 %v1209
        %v1248 = vpop.f32.mrf.mxu0
        %v1249 = vadd.f32 0.0, %v1248
        %v1250 = vpop.f32.mrf.mxu0
        %v1251 = vpop.f32.mrf.mxu0
        %v1252 = vpop.f32.mrf.mxu0
        %1253 = vdwg.mxu0
        %v1254 = vsel %vm864, %v906, -inf
        %1255 = vmax.xlane.f32.xlu0 %v1254
        %v1256 = vpop.xlane.xlu0 %1255
        %v1257 = vsel %vm864, %v955, -inf
        %1258 = vmax.xlane.f32.xlu0 %v1257
        %v1259 = vpop.xlane.xlu0 %1258
        %v1260 = vsel %vm864, %v1004, -inf
        %1261 = vmax.xlane.f32.xlu0 %v1260
        %v1262 = vpop.xlane.xlu0 %1261
        %v1263 = vsel %vm864, %v1053, -inf
        %1264 = vmax.xlane.f32.xlu0 %v1263
        %v1265 = vpop.xlane.xlu0 %1264
        %v1266 = vsel %vm864, %v1102, -inf
        %1267 = vmax.xlane.f32.xlu0 %v1266
        %v1268 = vpop.xlane.xlu0 %1267
        %v1269 = vsel %vm864, %v1151, -inf
        %1270 = vmax.xlane.f32.xlu0 %v1269
        %v1271 = vpop.xlane.xlu0 %1270
        %v1272 = vsel %vm864, %v1200, -inf
        %1273 = vmax.xlane.f32.xlu0 %v1272
        %v1274 = vpop.xlane.xlu0 %1273
        %v1275 = vsel %vm864, %v1249, -inf
        %1276 = vmax.xlane.f32.xlu0 %v1275
        %v1277 = vpop.xlane.xlu0 %1276
        %v1278 = vsub.f32 %v906, %v1256
        %v1279 = vsub.f32 %v955, %v1259
        %v1280 = vsub.f32 %v1004, %v1262
        %v1281 = vsub.f32 %v1053, %v1265
        %v1282 = vsub.f32 %v1102, %v1268
        %v1283 = vsub.f32 %v1151, %v1271
        %v1284 = vsub.f32 %v1200, %v1274
        %v1285 = vsub.f32 %v1249, %v1277
        %v1286 = vmul.f32 %v1278, 1.442695
        %v1287 = vpow.pop %v1286
        %v1288 = vmul.f32 %v1279, 1.442695
        %v1289 = vpow.pop %v1288
        %v1290 = vmul.f32 %v1280, 1.442695
        %v1291 = vpow.pop %v1290
        %v1292 = vmul.f32 %v1281, 1.442695
        %v1293 = vpow.pop %v1292
        %v1294 = vmul.f32 %v1282, 1.442695
        %v1295 = vpow.pop %v1294
        %v1296 = vmul.f32 %v1283, 1.442695
        %v1297 = vpow.pop %v1296
        %v1298 = vmul.f32 %v1284, 1.442695
        %v1299 = vpow.pop %v1298
        %v1300 = vmul.f32 %v1285, 1.442695
        %v1301 = vpow.pop %v1300
        %v1302 = vsel %vm864, %v1287, 0.0
        %1303 = vadd.xlane.f32.xlu0 %v1302
        %v1304 = vpop.xlane.xlu0 %1303
        %v1305 = vsel %vm864, %v1289, 0.0
        %1306 = vadd.xlane.f32.xlu0 %v1305
        %v1307 = vpop.xlane.xlu0 %1306
        %v1308 = vsel %vm864, %v1291, 0.0
        %1309 = vadd.xlane.f32.xlu0 %v1308
        %v1310 = vpop.xlane.xlu0 %1309
        %v1311 = vsel %vm864, %v1293, 0.0
        %1312 = vadd.xlane.f32.xlu0 %v1311
        %v1313 = vpop.xlane.xlu0 %1312
        %v1314 = vsel %vm864, %v1295, 0.0
        %1315 = vadd.xlane.f32.xlu0 %v1314
        %v1316 = vpop.xlane.xlu0 %1315
        %v1317 = vsel %vm864, %v1297, 0.0
        %1318 = vadd.xlane.f32.xlu0 %v1317
        %v1319 = vpop.xlane.xlu0 %1318
        %v1320 = vsel %vm864, %v1299, 0.0
        %1321 = vadd.xlane.f32.xlu0 %v1320
        %v1322 = vpop.xlane.xlu0 %1321
        %v1323 = vsel %vm864, %v1301, 0.0
        %1324 = vadd.xlane.f32.xlu0 %v1323
        %v1325 = vpop.xlane.xlu0 %1324
        %v1326 = vrcp.pop %v1304
        %v1327 = vrcp.pop %v1307
        %v1328 = vrcp.pop %v1310
        %v1329 = vrcp.pop %v1313
        %v1330 = vrcp.pop %v1316
        %v1331 = vrcp.pop %v1319
        %v1332 = vrcp.pop %v1322
        %v1333 = vrcp.pop %v1325
        %v1334 = vmul.f32 %v1287, %v1326
        %v1335 = vmul.f32 %v1289, %v1327
        %v1336 = vmul.f32 %v1291, %v1328
        %v1337 = vmul.f32 %v1293, %v1329
        %v1338 = vmul.f32 %v1295, %v1330
        %v1339 = vmul.f32 %v1297, %v1331
        %v1340 = vmul.f32 %v1299, %v1332
        %v1341 = vmul.f32 %v1301, %v1333
        %v1342 = vpack.c.bf16 %v1334, %v1334
        %v1343 = vpack.c.bf16 %v1335, %v1335
        %v1344 = vpack.c.bf16 %v1336, %v1336
        %v1345 = vpack.c.bf16 %v1337, %v1337
        %v1346 = vpack.c.bf16 %v1338, %v1338
        %v1347 = vpack.c.bf16 %v1339, %v1339
        %v1348 = vpack.c.bf16 %v1340, %v1340
        %v1349 = vpack.c.bf16 %v1341, %v1341
        %1350 = vrot.lane.b32.xlu0 %v853, 64
        %v1351 = vpop.permute.xlu0 %1350
        %v1353 = vsel %vm864, %v1342, 0
        %vm1355 = vcmask 1043456
        %v1357 = vsel %vm1355, %v1351, 0
        %1359 = vmatprep.subr.bf16.mxu0 0
        %1360 = vmatpush1.bf16.msra.mxu0 0
        %1361 = vmatprep.subr.bf16.mxu0 0
        %1362 = vmatpush1.bf16.msra.mxu0 0
        %1363 = vmatprep.subr.bf16.mxu0 0
        %1364 = vmatpush1.bf16.msra.mxu0 0
        %1365 = vmatprep.subr.bf16.mxu0 0
        %1366 = vmatpush1.bf16.msra.mxu0 0
        %1367 = vmatprep.subr.bf16.mxu0 0
        %1368 = vmatpush1.bf16.msra.mxu0 0
        %1369 = vmatprep.subr.bf16.mxu0 0
        %1370 = vmatpush1.bf16.msra.mxu0 0
        %1371 = vmatprep.subr.bf16.mxu0 0
        %1372 = vmatpush1.bf16.msra.mxu0 0
        %1373 = vmatprep.subr.bf16.mxu0 0
        %1374 = vmatpush1.bf16.msra.mxu0 %v1357
        %1375 = vmatprep.subr.bf16.mxu0 0
        %1376 = vmatpush2.bf16.msra.mxu0 0
        %1377 = vmatprep.subr.bf16.mxu0 0
        %1378 = vmatpush2.bf16.msra.mxu0 0
        %1379 = vmatprep.subr.bf16.mxu0 0
        %1380 = vmatpush2.bf16.msra.mxu0 0
        %1381 = vmatprep.subr.bf16.mxu0 0
        %1382 = vmatpush2.bf16.msra.mxu0 0
        %1383 = vmatprep.subr.bf16.mxu0 0
        %1384 = vmatpush2.bf16.msra.mxu0 0
        %1385 = vmatprep.subr.bf16.mxu0 0
        %1386 = vmatpush2.bf16.msra.mxu0 0
        %1387 = vmatprep.subr.bf16.mxu0 0
        %1388 = vmatpush2.bf16.msra.mxu0 0
        %1389 = vmatprep.subr.bf16.mxu0 0
        %1390 = vmatpush2.bf16.msra.mxu0 0
        %1391 = vmatprep.mubr.bf16.mxu0 0
        %1392 = vmatmul.mubr.bf16.gmra.mxu0 %v1353
        %v1393 = vpop.f32.mrf.mxu0
        %v1394 = vadd.f32 0.0, %v1393
        %v1395 = vpop.f32.mrf.mxu0
        %v1396 = vpop.f32.mrf.mxu0
        %v1397 = vpop.f32.mrf.mxu0
        %1398 = vdwg.mxu0
        %1399 = vrot.lane.b32.xlu0 %v854, 64
        %v1400 = vpop.permute.xlu0 %1399
        %v1402 = vsel %vm864, %v1343, 0
        %v1405 = vsel %vm1355, %v1400, 0
        %1407 = vmatprep.subr.bf16.mxu0 0
        %1408 = vmatpush1.bf16.msra.mxu0 0
        %1409 = vmatprep.subr.bf16.mxu0 0
        %1410 = vmatpush1.bf16.msra.mxu0 0
        %1411 = vmatprep.subr.bf16.mxu0 0
        %1412 = vmatpush1.bf16.msra.mxu0 0
        %1413 = vmatprep.subr.bf16.mxu0 0
        %1414 = vmatpush1.bf16.msra.mxu0 0
        %1415 = vmatprep.subr.bf16.mxu0 0
        %1416 = vmatpush1.bf16.msra.mxu0 0
        %1417 = vmatprep.subr.bf16.mxu0 0
        %1418 = vmatpush1.bf16.msra.mxu0 0
        %1419 = vmatprep.subr.bf16.mxu0 0
        %1420 = vmatpush1.bf16.msra.mxu0 0
        %1421 = vmatprep.subr.bf16.mxu0 0
        %1422 = vmatpush1.bf16.msra.mxu0 %v1405
        %1423 = vmatprep.subr.bf16.mxu0 0
        %1424 = vmatpush2.bf16.msra.mxu0 0
        %1425 = vmatprep.subr.bf16.mxu0 0
        %1426 = vmatpush2.bf16.msra.mxu0 0
        %1427 = vmatprep.subr.bf16.mxu0 0
        %1428 = vmatpush2.bf16.msra.mxu0 0
        %1429 = vmatprep.subr.bf16.mxu0 0
        %1430 = vmatpush2.bf16.msra.mxu0 0
        %1431 = vmatprep.subr.bf16.mxu0 0
        %1432 = vmatpush2.bf16.msra.mxu0 0
        %1433 = vmatprep.subr.bf16.mxu0 0
        %1434 = vmatpush2.bf16.msra.mxu0 0
        %1435 = vmatprep.subr.bf16.mxu0 0
        %1436 = vmatpush2.bf16.msra.mxu0 0
        %1437 = vmatprep.subr.bf16.mxu0 0
        %1438 = vmatpush2.bf16.msra.mxu0 0
        %1439 = vmatprep.mubr.bf16.mxu0 0
        %1440 = vmatmul.mubr.bf16.gmra.mxu0 %v1402
        %v1441 = vpop.f32.mrf.mxu0
        %v1442 = vadd.f32 0.0, %v1441
        %v1443 = vpop.f32.mrf.mxu0
        %v1444 = vpop.f32.mrf.mxu0
        %v1445 = vpop.f32.mrf.mxu0
        %1446 = vdwg.mxu0
        %1447 = vrot.lane.b32.xlu0 %v855, 64
        %v1448 = vpop.permute.xlu0 %1447
        %v1450 = vsel %vm864, %v1344, 0
        %v1453 = vsel %vm1355, %v1448, 0
        %1455 = vmatprep.subr.bf16.mxu0 0
        %1456 = vmatpush1.bf16.msra.mxu0 0
        %1457 = vmatprep.subr.bf16.mxu0 0
        %1458 = vmatpush1.bf16.msra.mxu0 0
        %1459 = vmatprep.subr.bf16.mxu0 0
        %1460 = vmatpush1.bf16.msra.mxu0 0
        %1461 = vmatprep.subr.bf16.mxu0 0
        %1462 = vmatpush1.bf16.msra.mxu0 0
        %1463 = vmatprep.subr.bf16.mxu0 0
        %1464 = vmatpush1.bf16.msra.mxu0 0
        %1465 = vmatprep.subr.bf16.mxu0 0
        %1466 = vmatpush1.bf16.msra.mxu0 0
        %1467 = vmatprep.subr.bf16.mxu0 0
        %1468 = vmatpush1.bf16.msra.mxu0 0
        %1469 = vmatprep.subr.bf16.mxu0 0
        %1470 = vmatpush1.bf16.msra.mxu0 %v1453
        %1471 = vmatprep.subr.bf16.mxu0 0
        %1472 = vmatpush2.bf16.msra.mxu0 0
        %1473 = vmatprep.subr.bf16.mxu0 0
        %1474 = vmatpush2.bf16.msra.mxu0 0
        %1475 = vmatprep.subr.bf16.mxu0 0
        %1476 = vmatpush2.bf16.msra.mxu0 0
        %1477 = vmatprep.subr.bf16.mxu0 0
        %1478 = vmatpush2.bf16.msra.mxu0 0
        %1479 = vmatprep.subr.bf16.mxu0 0
        %1480 = vmatpush2.bf16.msra.mxu0 0
        %1481 = vmatprep.subr.bf16.mxu0 0
        %1482 = vmatpush2.bf16.msra.mxu0 0
        %1483 = vmatprep.subr.bf16.mxu0 0
        %1484 = vmatpush2.bf16.msra.mxu0 0
        %1485 = vmatprep.subr.bf16.mxu0 0
        %1486 = vmatpush2.bf16.msra.mxu0 0
        %1487 = vmatprep.mubr.bf16.mxu0 0
        %1488 = vmatmul.mubr.bf16.gmra.mxu0 %v1450
        %v1489 = vpop.f32.mrf.mxu0
        %v1490 = vadd.f32 0.0, %v1489
        %v1491 = vpop.f32.mrf.mxu0
        %v1492 = vpop.f32.mrf.mxu0
        %v1493 = vpop.f32.mrf.mxu0
        %1494 = vdwg.mxu0
        %1495 = vrot.lane.b32.xlu0 %v856, 64
        %v1496 = vpop.permute.xlu0 %1495
        %v1498 = vsel %vm864, %v1345, 0
        %v1501 = vsel %vm1355, %v1496, 0
        %1503 = vmatprep.subr.bf16.mxu0 0
        %1504 = vmatpush1.bf16.msra.mxu0 0
        %1505 = vmatprep.subr.bf16.mxu0 0
        %1506 = vmatpush1.bf16.msra.mxu0 0
        %1507 = vmatprep.subr.bf16.mxu0 0
        %1508 = vmatpush1.bf16.msra.mxu0 0
        %1509 = vmatprep.subr.bf16.mxu0 0
        %1510 = vmatpush1.bf16.msra.mxu0 0
        %1511 = vmatprep.subr.bf16.mxu0 0
        %1512 = vmatpush1.bf16.msra.mxu0 0
        %1513 = vmatprep.subr.bf16.mxu0 0
        %1514 = vmatpush1.bf16.msra.mxu0 0
        %1515 = vmatprep.subr.bf16.mxu0 0
        %1516 = vmatpush1.bf16.msra.mxu0 0
        %1517 = vmatprep.subr.bf16.mxu0 0
        %1518 = vmatpush1.bf16.msra.mxu0 %v1501
        %1519 = vmatprep.subr.bf16.mxu0 0
        %1520 = vmatpush2.bf16.msra.mxu0 0
        %1521 = vmatprep.subr.bf16.mxu0 0
        %1522 = vmatpush2.bf16.msra.mxu0 0
        %1523 = vmatprep.subr.bf16.mxu0 0
        %1524 = vmatpush2.bf16.msra.mxu0 0
        %1525 = vmatprep.subr.bf16.mxu0 0
        %1526 = vmatpush2.bf16.msra.mxu0 0
        %1527 = vmatprep.subr.bf16.mxu0 0
        %1528 = vmatpush2.bf16.msra.mxu0 0
        %1529 = vmatprep.subr.bf16.mxu0 0
        %1530 = vmatpush2.bf16.msra.mxu0 0
        %1531 = vmatprep.subr.bf16.mxu0 0
        %1532 = vmatpush2.bf16.msra.mxu0 0
        %1533 = vmatprep.subr.bf16.mxu0 0
        %1534 = vmatpush2.bf16.msra.mxu0 0
        %1535 = vmatprep.mubr.bf16.mxu0 0
        %1536 = vmatmul.mubr.bf16.gmra.mxu0 %v1498
        %v1537 = vpop.f32.mrf.mxu0
        %v1538 = vadd.f32 0.0, %v1537
        %v1539 = vpop.f32.mrf.mxu0
        %v1540 = vpop.f32.mrf.mxu0
        %v1541 = vpop.f32.mrf.mxu0
        %1542 = vdwg.mxu0
        %1543 = vrot.lane.b32.xlu0 %v857, 64
        %v1544 = vpop.permute.xlu0 %1543
        %v1546 = vsel %vm864, %v1346, 0
        %v1549 = vsel %vm1355, %v1544, 0
        %1551 = vmatprep.subr.bf16.mxu0 0
        %1552 = vmatpush1.bf16.msra.mxu0 0
        %1553 = vmatprep.subr.bf16.mxu0 0
        %1554 = vmatpush1.bf16.msra.mxu0 0
        %1555 = vmatprep.subr.bf16.mxu0 0
        %1556 = vmatpush1.bf16.msra.mxu0 0
        %1557 = vmatprep.subr.bf16.mxu0 0
        %1558 = vmatpush1.bf16.msra.mxu0 0
        %1559 = vmatprep.subr.bf16.mxu0 0
        %1560 = vmatpush1.bf16.msra.mxu0 0
        %1561 = vmatprep.subr.bf16.mxu0 0
        %1562 = vmatpush1.bf16.msra.mxu0 0
        %1563 = vmatprep.subr.bf16.mxu0 0
        %1564 = vmatpush1.bf16.msra.mxu0 0
        %1565 = vmatprep.subr.bf16.mxu0 0
        %1566 = vmatpush1.bf16.msra.mxu0 %v1549
        %1567 = vmatprep.subr.bf16.mxu0 0
        %1568 = vmatpush2.bf16.msra.mxu0 0
        %1569 = vmatprep.subr.bf16.mxu0 0
        %1570 = vmatpush2.bf16.msra.mxu0 0
        %1571 = vmatprep.subr.bf16.mxu0 0
        %1572 = vmatpush2.bf16.msra.mxu0 0
        %1573 = vmatprep.subr.bf16.mxu0 0
        %1574 = vmatpush2.bf16.msra.mxu0 0
        %1575 = vmatprep.subr.bf16.mxu0 0
        %1576 = vmatpush2.bf16.msra.mxu0 0
        %1577 = vmatprep.subr.bf16.mxu0 0
        %1578 = vmatpush2.bf16.msra.mxu0 0
        %1579 = vmatprep.subr.bf16.mxu0 0
        %1580 = vmatpush2.bf16.msra.mxu0 0
        %1581 = vmatprep.subr.bf16.mxu0 0
        %1582 = vmatpush2.bf16.msra.mxu0 0
        %1583 = vmatprep.mubr.bf16.mxu0 0
        %1584 = vmatmul.mubr.bf16.gmra.mxu0 %v1546
        %v1585 = vpop.f32.mrf.mxu0
        %v1586 = vadd.f32 0.0, %v1585
        %v1587 = vpop.f32.mrf.mxu0
        %v1588 = vpop.f32.mrf.mxu0
        %v1589 = vpop.f32.mrf.mxu0
        %1590 = vdwg.mxu0
        %1591 = vrot.lane.b32.xlu0 %v858, 64
        %v1592 = vpop.permute.xlu0 %1591
        %v1594 = vsel %vm864, %v1347, 0
        %v1597 = vsel %vm1355, %v1592, 0
        %1599 = vmatprep.subr.bf16.mxu0 0
        %1600 = vmatpush1.bf16.msra.mxu0 0
        %1601 = vmatprep.subr.bf16.mxu0 0
        %1602 = vmatpush1.bf16.msra.mxu0 0
        %1603 = vmatprep.subr.bf16.mxu0 0
        %1604 = vmatpush1.bf16.msra.mxu0 0
        %1605 = vmatprep.subr.bf16.mxu0 0
        %1606 = vmatpush1.bf16.msra.mxu0 0
        %1607 = vmatprep.subr.bf16.mxu0 0
        %1608 = vmatpush1.bf16.msra.mxu0 0
        %1609 = vmatprep.subr.bf16.mxu0 0
        %1610 = vmatpush1.bf16.msra.mxu0 0
        %1611 = vmatprep.subr.bf16.mxu0 0
        %1612 = vmatpush1.bf16.msra.mxu0 0
        %1613 = vmatprep.subr.bf16.mxu0 0
        %1614 = vmatpush1.bf16.msra.mxu0 %v1597
        %1615 = vmatprep.subr.bf16.mxu0 0
        %1616 = vmatpush2.bf16.msra.mxu0 0
        %1617 = vmatprep.subr.bf16.mxu0 0
        %1618 = vmatpush2.bf16.msra.mxu0 0
        %1619 = vmatprep.subr.bf16.mxu0 0
        %1620 = vmatpush2.bf16.msra.mxu0 0
        %1621 = vmatprep.subr.bf16.mxu0 0
        %1622 = vmatpush2.bf16.msra.mxu0 0
        %1623 = vmatprep.subr.bf16.mxu0 0
        %1624 = vmatpush2.bf16.msra.mxu0 0
        %1625 = vmatprep.subr.bf16.mxu0 0
        %1626 = vmatpush2.bf16.msra.mxu0 0
        %1627 = vmatprep.subr.bf16.mxu0 0
        %1628 = vmatpush2.bf16.msra.mxu0 0
        %1629 = vmatprep.subr.bf16.mxu0 0
        %1630 = vmatpush2.bf16.msra.mxu0 0
        %1631 = vmatprep.mubr.bf16.mxu0 0
        %1632 = vmatmul.mubr.bf16.gmra.mxu0 %v1594
        %v1633 = vpop.f32.mrf.mxu0
        %v1634 = vadd.f32 0.0, %v1633
        %v1635 = vpop.f32.mrf.mxu0
        %v1636 = vpop.f32.mrf.mxu0
        %v1637 = vpop.f32.mrf.mxu0
        %1638 = vdwg.mxu0
        %1639 = vrot.lane.b32.xlu0 %v859, 64
        %v1640 = vpop.permute.xlu0 %1639
        %v1642 = vsel %vm864, %v1348, 0
        %v1645 = vsel %vm1355, %v1640, 0
        %1647 = vmatprep.subr.bf16.mxu0 0
        %1648 = vmatpush1.bf16.msra.mxu0 0
        %1649 = vmatprep.subr.bf16.mxu0 0
        %1650 = vmatpush1.bf16.msra.mxu0 0
        %1651 = vmatprep.subr.bf16.mxu0 0
        %1652 = vmatpush1.bf16.msra.mxu0 0
        %1653 = vmatprep.subr.bf16.mxu0 0
        %1654 = vmatpush1.bf16.msra.mxu0 0
        %1655 = vmatprep.subr.bf16.mxu0 0
        %1656 = vmatpush1.bf16.msra.mxu0 0
        %1657 = vmatprep.subr.bf16.mxu0 0
        %1658 = vmatpush1.bf16.msra.mxu0 0
        %1659 = vmatprep.subr.bf16.mxu0 0
        %1660 = vmatpush1.bf16.msra.mxu0 0
        %1661 = vmatprep.subr.bf16.mxu0 0
        %1662 = vmatpush1.bf16.msra.mxu0 %v1645
        %1663 = vmatprep.subr.bf16.mxu0 0
        %1664 = vmatpush2.bf16.msra.mxu0 0
        %1665 = vmatprep.subr.bf16.mxu0 0
        %1666 = vmatpush2.bf16.msra.mxu0 0
        %1667 = vmatprep.subr.bf16.mxu0 0
        %1668 = vmatpush2.bf16.msra.mxu0 0
        %1669 = vmatprep.subr.bf16.mxu0 0
        %1670 = vmatpush2.bf16.msra.mxu0 0
        %1671 = vmatprep.subr.bf16.mxu0 0
        %1672 = vmatpush2.bf16.msra.mxu0 0
        %1673 = vmatprep.subr.bf16.mxu0 0
        %1674 = vmatpush2.bf16.msra.mxu0 0
        %1675 = vmatprep.subr.bf16.mxu0 0
        %1676 = vmatpush2.bf16.msra.mxu0 0
        %1677 = vmatprep.subr.bf16.mxu0 0
        %1678 = vmatpush2.bf16.msra.mxu0 0
        %1679 = vmatprep.mubr.bf16.mxu0 0
        %1680 = vmatmul.mubr.bf16.gmra.mxu0 %v1642
        %v1681 = vpop.f32.mrf.mxu0
        %v1682 = vadd.f32 0.0, %v1681
        %v1683 = vpop.f32.mrf.mxu0
        %v1684 = vpop.f32.mrf.mxu0
        %v1685 = vpop.f32.mrf.mxu0
        %1686 = vdwg.mxu0
        %1687 = vrot.lane.b32.xlu0 %v860, 64
        %v1688 = vpop.permute.xlu0 %1687
        %v1690 = vsel %vm864, %v1349, 0
        %v1693 = vsel %vm1355, %v1688, 0
        %1695 = vmatprep.subr.bf16.mxu0 0
        %1696 = vmatpush1.bf16.msra.mxu0 0
        %1697 = vmatprep.subr.bf16.mxu0 0
        %1698 = vmatpush1.bf16.msra.mxu0 0
        %1699 = vmatprep.subr.bf16.mxu0 0
        %1700 = vmatpush1.bf16.msra.mxu0 0
        %1701 = vmatprep.subr.bf16.mxu0 0
        %1702 = vmatpush1.bf16.msra.mxu0 0
        %1703 = vmatprep.subr.bf16.mxu0 0
        %1704 = vmatpush1.bf16.msra.mxu0 0
        %1705 = vmatprep.subr.bf16.mxu0 0
        %1706 = vmatpush1.bf16.msra.mxu0 0
        %1707 = vmatprep.subr.bf16.mxu0 0
        %1708 = vmatpush1.bf16.msra.mxu0 0
        %1709 = vmatprep.subr.bf16.mxu0 0
        %1710 = vmatpush1.bf16.msra.mxu0 %v1693
        %1711 = vmatprep.subr.bf16.mxu0 0
        %1712 = vmatpush2.bf16.msra.mxu0 0
        %1713 = vmatprep.subr.bf16.mxu0 0
        %1714 = vmatpush2.bf16.msra.mxu0 0
        %1715 = vmatprep.subr.bf16.mxu0 0
        %1716 = vmatpush2.bf16.msra.mxu0 0
        %1717 = vmatprep.subr.bf16.mxu0 0
        %1718 = vmatpush2.bf16.msra.mxu0 0
        %1719 = vmatprep.subr.bf16.mxu0 0
        %1720 = vmatpush2.bf16.msra.mxu0 0
        %1721 = vmatprep.subr.bf16.mxu0 0
        %1722 = vmatpush2.bf16.msra.mxu0 0
        %1723 = vmatprep.subr.bf16.mxu0 0
        %1724 = vmatpush2.bf16.msra.mxu0 0
        %1725 = vmatprep.subr.bf16.mxu0 0
        %1726 = vmatpush2.bf16.msra.mxu0 0
        %1727 = vmatprep.mubr.bf16.mxu0 0
        %1728 = vmatmul.mubr.bf16.gmra.mxu0 %v1690
        %v1729 = vpop.f32.mrf.mxu0
        %v1730 = vadd.f32 0.0, %v1729
        %v1731 = vpop.f32.mrf.mxu0
        %v1732 = vpop.f32.mrf.mxu0
        %v1733 = vpop.f32.mrf.mxu0
        %1734 = vdwg.mxu0
        %1736 = vrot.lane.b32.xlu0 %v1442, 8
        %v1737 = vpop.permute.xlu0 %1736
        %1740 = vrot.lane.b32.xlu0 %v1490, 16
        %v1741 = vpop.permute.xlu0 %1740
        %1744 = vrot.lane.b32.xlu0 %v1538, 24
        %v1745 = vpop.permute.xlu0 %1744
        %v1747 = vsel %vm864, %v1394, %v1737
        %vm1748 = vcmask 130048
        %v1749 = vsel %vm1748, %v1747, %v1741
        %vm1750 = vcmask 195584
        %v1751 = vsel %vm1750, %v1749, %v1745
        %1753 = vrot.lane.b32.xlu0 %v1634, 8
        %v1754 = vpop.permute.xlu0 %1753
        %1757 = vrot.lane.b32.xlu0 %v1682, 16
        %v1758 = vpop.permute.xlu0 %1757
        %1761 = vrot.lane.b32.xlu0 %v1730, 24
        %v1762 = vpop.permute.xlu0 %1761
        %v1764 = vsel %vm864, %v1586, %v1754
        %v1765 = vsel %vm1748, %v1764, %v1758
        %v1766 = vsel %vm1750, %v1765, %v1762
        %v1767 = vpack.c.bf16 %v1766, %v1751
        %v1768 = vld [vmem:[%s648] sm:$0xf]
        %v1769 = vld [vmem:[%s648 + $0x4] sm:$0xf]
        %v1770 = vld [vmem:[%s648 + $0x8] sm:$0xf]
        %v1771 = vld [vmem:[%s648 + $0xc] sm:$0xf]
        %v1772 = vld [vmem:[%s651] sm:$0x1]
        %v1774 = vlaneseq
        %v1775 = vshrl.u32 %v1774, 7
        %v1776 = vsub.s32 0, %v1775
        %v1777 = vrot.slane %v1772, %v1776
        %v1783 = vunpack.c.l.b16 %v1768
        %v1784 = vunpack.c.l.b16 %v1769
        %v1785 = vunpack.c.l.b16 %v1770
        %v1786 = vunpack.c.l.b16 %v1771
        %v1787 = vpack.c.b16 %v1784, %v1783
        %v1788 = vpack.c.b16 %v1786, %v1785
        %v1792 = vsel %vm788, %v1767, 0
        %1794 = vmatprep.subr.bf16.mxu0 0
        %1795 = vmatpush1.bf16.msra.mxu0 0
        %1796 = vmatprep.subr.bf16.mxu0 0
        %1797 = vmatpush1.bf16.msra.mxu0 0
        %1798 = vmatprep.subr.bf16.mxu0 0
        %1799 = vmatpush1.bf16.msra.mxu0 0
        %1800 = vmatprep.subr.bf16.mxu0 0
        %1801 = vmatpush1.bf16.msra.mxu0 0
        %1802 = vmatprep.subr.bf16.mxu0 0
        %1803 = vmatpush1.bf16.msra.mxu0 0
        %1804 = vmatprep.subr.bf16.mxu0 0
        %1805 = vmatpush1.bf16.msra.mxu0 0
        %1806 = vmatprep.subr.bf16.mxu0 0
        %1807 = vmatpush1.bf16.msra.mxu0 %v1788
        %1808 = vmatprep.subr.bf16.mxu0 0
        %1809 = vmatpush1.bf16.msra.mxu0 %v1787
        %1810 = vmatprep.subr.bf16.mxu0 0
        %1811 = vmatpush2.bf16.msra.mxu0 0
        %1812 = vmatprep.subr.bf16.mxu0 0
        %1813 = vmatpush2.bf16.msra.mxu0 0
        %1814 = vmatprep.subr.bf16.mxu0 0
        %1815 = vmatpush2.bf16.msra.mxu0 0
        %1816 = vmatprep.subr.bf16.mxu0 0
        %1817 = vmatpush2.bf16.msra.mxu0 0
        %1818 = vmatprep.subr.bf16.mxu0 0
        %1819 = vmatpush2.bf16.msra.mxu0 0
        %1820 = vmatprep.subr.bf16.mxu0 0
        %1821 = vmatpush2.bf16.msra.mxu0 0
        %1822 = vmatprep.subr.bf16.mxu0 0
        %1823 = vmatpush2.bf16.msra.mxu0 0
        %1824 = vmatprep.subr.bf16.mxu0 0
        %1825 = vmatpush2.bf16.msra.mxu0 0
        %1826 = vmatprep.mubr.bf16.mxu0 0
        %1827 = vmatmul.mubr.bf16.gmra.mxu0 %v1792
        %v1828 = vpop.f32.mrf.mxu0
        %v1829 = vadd.f32 %v1777, %v1828
        %v1830 = vpop.f32.mrf.mxu0
        %v1831 = vpop.f32.mrf.mxu0
        %v1832 = vadd.f32 %v1777, %v1831
        %v1833 = vpop.f32.mrf.mxu0
        %1834 = vdwg.mxu0
        %v1835 = vadd.f32 %v762, %v1829
        %v1836 = vadd.f32 %v763, %v1832
        %v1837 = vsel %vm788, %v1835, 0.0
        %1838 = vadd.xlane.f32.xlu0 %v1837
        %v1839 = vpop.xlane.xlu0 %1838
        %v1840 = vsel %vm788, %v1836, 0.0
        %1841 = vadd.xlane.f32.xlu0 %v1840
        %v1842 = vpop.xlane.xlu0 %1841
        %v1843 = vrcp.pop 32.0
        %v1844 = vmul.f32 %v1839, %v1843
        %v1845 = vmul.f32 %v1842, %v1843
        %v1846 = vsub.f32 %v1835, %v1844
        %v1847 = vsub.f32 %v1836, %v1845
        %v1848 = vmul.f32 %v1846, %v1846
        %v1849 = vmul.f32 %v1847, %v1847
        %v1850 = vsel %vm788, %v1848, 0.0
        %1851 = vadd.xlane.f32.xlu0 %v1850
        %v1852 = vpop.xlane.xlu0 %1851
        %v1853 = vsel %vm788, %v1849, 0.0
        %1854 = vadd.xlane.f32.xlu0 %v1853
        %v1855 = vpop.xlane.xlu0 %1854
        %v1856 = vmul.f32 %v1852, %v1843
        %v1857 = vmul.f32 %v1855, %v1843
        %v1858 = vadd.f32 %v1856, 1e-05
        %v1859 = vadd.f32 %v1857, 1e-05
        %v1860 = vrsqrt.pop %v1858
        %v1861 = vrsqrt.pop %v1859
        %v1862 = vmul.f32 %v1846, %v1860
        %v1863 = vmul.f32 %v1847, %v1861
        %v1864 = vld [vmem:[%s654] sm:$0x1]
        %v1866 = vlaneseq
        %v1867 = vshrl.u32 %v1866, 7
        %v1868 = vsub.s32 0, %v1867
        %v1869 = vrot.slane %v1864, %v1868
        %v1871 = vmul.f32 %v1862, %v1869
        %v1872 = vmul.f32 %v1863, %v1869
        %v1873 = vld [vmem:[%s657] sm:$0x1]
        %v1875 = vlaneseq
        %v1876 = vshrl.u32 %v1875, 7
        %v1877 = vsub.s32 0, %v1876
        %v1878 = vrot.slane %v1873, %v1877
        %v1880 = vadd.f32 %v1871, %v1878
        %v1881 = vadd.f32 %v1872, %v1878
        %v1882 = vpack.c.bf16 %v1881, %v1880
        %v1883 = vld [vmem:[%s662] sm:$0xf]
        %v1884 = vld [vmem:[%s662 + $0x4] sm:$0xf]
        %v1885 = vld [vmem:[%s662 + $0x8] sm:$0xf]
        %v1886 = vld [vmem:[%s662 + $0xc] sm:$0xf]
        %v1887 = vld [vmem:[%s665] sm:$0x1]
        %v1889 = vlaneseq
        %v1890 = vshrl.u32 %v1889, 7
        %v1891 = vsub.s32 0, %v1890
        %v1892 = vrot.slane %v1887, %v1891
        %v1898 = vunpack.c.l.b16 %v1883
        %v1899 = vunpack.c.l.b16 %v1884
        %v1900 = vunpack.c.l.b16 %v1885
        %v1901 = vunpack.c.l.b16 %v1886
        %v1902 = vpack.c.b16 %v1899, %v1898
        %v1903 = vpack.c.b16 %v1901, %v1900
        %v1907 = vsel %vm788, %v1882, 0
        %1909 = vmatprep.subr.bf16.mxu0 0
        %1910 = vmatpush1.bf16.msra.mxu0 0
        %1911 = vmatprep.subr.bf16.mxu0 0
        %1912 = vmatpush1.bf16.msra.mxu0 0
        %1913 = vmatprep.subr.bf16.mxu0 0
        %1914 = vmatpush1.bf16.msra.mxu0 0
        %1915 = vmatprep.subr.bf16.mxu0 0
        %1916 = vmatpush1.bf16.msra.mxu0 0
        %1917 = vmatprep.subr.bf16.mxu0 0
        %1918 = vmatpush1.bf16.msra.mxu0 0
        %1919 = vmatprep.subr.bf16.mxu0 0
        %1920 = vmatpush1.bf16.msra.mxu0 0
        %1921 = vmatprep.subr.bf16.mxu0 0
        %1922 = vmatpush1.bf16.msra.mxu0 %v1903
        %1923 = vmatprep.subr.bf16.mxu0 0
        %1924 = vmatpush1.bf16.msra.mxu0 %v1902
        %1925 = vmatprep.subr.bf16.mxu0 0
        %1926 = vmatpush2.bf16.msra.mxu0 0
        %1927 = vmatprep.subr.bf16.mxu0 0
        %1928 = vmatpush2.bf16.msra.mxu0 0
        %1929 = vmatprep.subr.bf16.mxu0 0
        %1930 = vmatpush2.bf16.msra.mxu0 0
        %1931 = vmatprep.subr.bf16.mxu0 0
        %1932 = vmatpush2.bf16.msra.mxu0 0
        %1933 = vmatprep.subr.bf16.mxu0 0
        %1934 = vmatpush2.bf16.msra.mxu0 0
        %1935 = vmatprep.subr.bf16.mxu0 0
        %1936 = vmatpush2.bf16.msra.mxu0 0
        %1937 = vmatprep.subr.bf16.mxu0 0
        %1938 = vmatpush2.bf16.msra.mxu0 0
        %1939 = vmatprep.subr.bf16.mxu0 0
        %1940 = vmatpush2.bf16.msra.mxu0 0
        %1941 = vmatprep.mubr.bf16.mxu0 0
        %1942 = vmatmul.mubr.bf16.gmra.mxu0 %v1907
        %v1943 = vpop.f32.mrf.mxu0
        %v1944 = vadd.f32 %v1892, %v1943
        %v1945 = vpop.f32.mrf.mxu0
        %v1946 = vpop.f32.mrf.mxu0
        %v1947 = vadd.f32 %v1892, %v1946
        %v1948 = vpop.f32.mrf.mxu0
        %1949 = vdwg.mxu0
        %v1950 = vmul.f32 %v1944, %v1944
        %v1951 = vmul.f32 %v1947, %v1947
        %v1952 = vmul.f32 %v1944, %v1950
        %v1953 = vmul.f32 %v1947, %v1951
        %v1954 = vmul.f32 %v1952, 0.044715
        %v1955 = vmul.f32 %v1953, 0.044715
        %v1956 = vadd.f32 %v1944, %v1954
        %v1957 = vadd.f32 %v1947, %v1955
        %v1958 = vmul.f32 %v1956, 0.7978846
        %v1959 = vmul.f32 %v1957, 0.7978846
        %v1960 = vtanh.pop %v1958
        %v1961 = vtanh.pop %v1959
        %v1962 = vadd.f32 %v1960, 1.0
        %v1963 = vadd.f32 %v1961, 1.0
        %v1964 = vmul.f32 %v1962, 0.5
        %v1965 = vmul.f32 %v1963, 0.5
        %v1966 = vmul.f32 %v1944, %v1964
        %v1967 = vmul.f32 %v1947, %v1965
        %v1968 = vpack.c.bf16 %v1967, %v1966
        %v1969 = vld [vmem:[%s670] sm:$0xf]
        %v1970 = vld [vmem:[%s670 + $0x4] sm:$0xf]
        %v1971 = vld [vmem:[%s670 + $0x8] sm:$0xf]
        %v1972 = vld [vmem:[%s670 + $0xc] sm:$0xf]
        %v1973 = vld [vmem:[%s670 + $0x10] sm:$0xf]
        %v1974 = vld [vmem:[%s670 + $0x14] sm:$0xf]
        %v1975 = vld [vmem:[%s670 + $0x18] sm:$0xf]
        %v1976 = vld [vmem:[%s670 + $0x1c] sm:$0xf]
        %v1977 = vld [vmem:[%s673] sm:$0x1]
        %v1979 = vlaneseq
        %v1980 = vshrl.u32 %v1979, 7
        %v1981 = vsub.s32 0, %v1980
        %v1982 = vrot.slane %v1977, %v1981
        %v1992 = vunpack.c.l.b16 %v1969
        %v1993 = vunpack.c.l.b16 %v1970
        %v1994 = vunpack.c.l.b16 %v1971
        %v1995 = vunpack.c.l.b16 %v1972
        %v1996 = vunpack.c.l.b16 %v1973
        %v1997 = vunpack.c.l.b16 %v1974
        %v1998 = vunpack.c.l.b16 %v1975
        %v1999 = vunpack.c.l.b16 %v1976
        %v2000 = vpack.c.b16 %v1993, %v1992
        %v2001 = vpack.c.b16 %v1995, %v1994
        %v2002 = vpack.c.b16 %v1997, %v1996
        %v2003 = vpack.c.b16 %v1999, %v1998
        %vm2008 = vcmask 523264
        %v2010 = vsel %vm2008, %v1968, 0
        %2012 = vmatprep.subr.bf16.mxu0 0
        %2013 = vmatpush1.bf16.msra.mxu0 0
        %2014 = vmatprep.subr.bf16.mxu0 0
        %2015 = vmatpush1.bf16.msra.mxu0 0
        %2016 = vmatprep.subr.bf16.mxu0 0
        %2017 = vmatpush1.bf16.msra.mxu0 0
        %2018 = vmatprep.subr.bf16.mxu0 0
        %2019 = vmatpush1.bf16.msra.mxu0 0
        %2020 = vmatprep.subr.bf16.mxu0 0
        %2021 = vmatpush1.bf16.msra.mxu0 %v2003
        %2022 = vmatprep.subr.bf16.mxu0 0
        %2023 = vmatpush1.bf16.msra.mxu0 %v2002
        %2024 = vmatprep.subr.bf16.mxu0 0
        %2025 = vmatpush1.bf16.msra.mxu0 %v2001
        %2026 = vmatprep.subr.bf16.mxu0 0
        %2027 = vmatpush1.bf16.msra.mxu0 %v2000
        %2028 = vmatprep.subr.bf16.mxu0 0
        %2029 = vmatpush2.bf16.msra.mxu0 0
        %2030 = vmatprep.subr.bf16.mxu0 0
        %2031 = vmatpush2.bf16.msra.mxu0 0
        %2032 = vmatprep.subr.bf16.mxu0 0
        %2033 = vmatpush2.bf16.msra.mxu0 0
        %2034 = vmatprep.subr.bf16.mxu0 0
        %2035 = vmatpush2.bf16.msra.mxu0 0
        %2036 = vmatprep.subr.bf16.mxu0 0
        %2037 = vmatpush2.bf16.msra.mxu0 0
        %2038 = vmatprep.subr.bf16.mxu0 0
        %2039 = vmatpush2.bf16.msra.mxu0 0
        %2040 = vmatprep.subr.bf16.mxu0 0
        %2041 = vmatpush2.bf16.msra.mxu0 0
        %2042 = vmatprep.subr.bf16.mxu0 0
        %2043 = vmatpush2.bf16.msra.mxu0 0
        %2044 = vmatprep.mubr.bf16.mxu0 0
        %2045 = vmatmul.mubr.bf16.gmra.mxu0 %v2010
        %v2046 = vpop.f32.mrf.mxu0
        %v2047 = vadd.f32 %v1982, %v2046
        %v2048 = vpop.f32.mrf.mxu0
        %v2049 = vpop.f32.mrf.mxu0
        %v2050 = vadd.f32 %v1982, %v2049
        %v2051 = vpop.f32.mrf.mxu0
        %2052 = vdwg.mxu0
        %v2053 = vadd.f32 %v1880, %v2047
        %v2054 = vadd.f32 %v1881, %v2050
        %v2055 = vsel %vm788, %v2053, 0.0
        %2056 = vadd.xlane.f32.xlu0 %v2055
        %v2057 = vpop.xlane.xlu0 %2056
        %v2058 = vsel %vm788, %v2054, 0.0
        %2059 = vadd.xlane.f32.xlu0 %v2058
        %v2060 = vpop.xlane.xlu0 %2059
        %v2061 = vmul.f32 %v2057, %v1843
        %v2062 = vmul.f32 %v2060, %v1843
        %v2063 = vsub.f32 %v2053, %v2061
        %v2064 = vsub.f32 %v2054, %v2062
        %v2065 = vmul.f32 %v2063, %v2063
        %v2066 = vmul.f32 %v2064, %v2064
        %v2067 = vsel %vm788, %v2065, 0.0
        %2068 = vadd.xlane.f32.xlu0 %v2067
        %v2069 = vpop.xlane.xlu0 %2068
        %v2070 = vsel %vm788, %v2066, 0.0
        %2071 = vadd.xlane.f32.xlu0 %v2070
        %v2072 = vpop.xlane.xlu0 %2071
        %v2073 = vmul.f32 %v2069, %v1843
        %v2074 = vmul.f32 %v2072, %v1843
        %v2075 = vadd.f32 %v2073, 1e-05
        %v2076 = vadd.f32 %v2074, 1e-05
        %v2077 = vrsqrt.pop %v2075
        %v2078 = vrsqrt.pop %v2076
        %v2079 = vmul.f32 %v2063, %v2077
        %v2080 = vmul.f32 %v2064, %v2078
        %v2081 = vld [vmem:[%s676] sm:$0x1]
        %v2083 = vlaneseq
        %v2084 = vshrl.u32 %v2083, 7
        %v2085 = vsub.s32 0, %v2084
        %v2086 = vrot.slane %v2081, %v2085
        %v2088 = vmul.f32 %v2079, %v2086
        %v2089 = vmul.f32 %v2080, %v2086
        %v2090 = vld [vmem:[%s679] sm:$0x1]
        %v2092 = vlaneseq
        %v2093 = vshrl.u32 %v2092, 7
        %v2094 = vsub.s32 0, %v2093
        %v2095 = vrot.slane %v2090, %v2094
        %v2097 = vadd.f32 %v2088, %v2095
        %v2098 = vadd.f32 %v2089, %v2095
        %2099 = vst.msk [vmem:[#allocation2] sm:$0xff] %vm788, %v2097
        %2100 = vst.msk [vmem:[#allocation2 + $0x8] sm:$0xff] %vm788, %v2098
        %2101 = vst.msk [vmem:[#allocation3] sm:$0xff] %vm788, %v2097
        %2102 = vst.msk [vmem:[#allocation3 + $0x8] sm:$0xff] %vm788, %v2098
        // Predicated region
        $region89: #{_lambda_.5} parent=83 // pred_check
          %p2103 = pneg %p437
        $region90: #{_lambda_.5} parent=83 // pred_check_branch
          %2105 = sbr.rel (%p2103) target = $region92
        $region91: #{_lambda_.5} parent=83 // pred_region
          %s2107 = ssub.s32 256, 256
          %2108 = vsyncadd [#allocation4], %s2107
          %s2109 = sshll.u32 [#allocation3], 4
          %s2110 = int_to_ptr.vmem [resolvable:$true] %s2109
          %2115 = dma.vmem_to_hbm [thread:$0]  %s2110, 256, %s16, [#allocation4], 128, 128, 8
        $region92: #{_lambda_.5} parent=83 // pred_fallthru
          _
        // Predicated region
        $region93: #{_lambda_.5} parent=83 // pred_check
          %p2116 = pneg %p437
        $region94: #{_lambda_.5} parent=83 // pred_check_branch
          %2118 = sbr.rel (%p2116) target = $region96
        $region95: #{_lambda_.5} parent=83 // pred_region
          %2119 = dma.done [#allocation4], 256
        $region96: #{_lambda_.5} parent=83 // pred_fallthru
          _
      $region84: #{_lambda_.5} parent=5 // pred_fallthru
        _
      %p2120 = scmp.le.s32.totalorder 2, %s23
      // Predicated region
      $region97: #{_lambda_.5} parent=5 // pred_check
        %p2121 = pneg %p2120
      $region98: #{_lambda_.5} parent=5 // pred_check_branch
        %2123 = sbr.rel (%p2121) target = $region100
      $region99: #{_lambda_.5} parent=5 // pred_region
        %s2124 = ssub.s32 %s23, 2
      $region100: #{_lambda_.5} parent=5 // pred_fallthru
        _
    $region6: #{_lambda_.5} parent=1 // loop_footer
      %s27 = sadd.s32 1, %s23
    $region7: #{_lambda_.5} parent=1 // loop_footer_branch
      %22 = sbr.rel target = $region3
    $region8: #{_lambda_.5} parent=1 // loop_exit
      _
    %2125 = vsyncpa [#allocation4], 1
    %s2126 = scalar_lea.sflag [#allocation4], 1
    %2127 = vsyncpa %s2126, 1

</llo_original>
